<compile_context>
chip_gen: v6e
topology: v6e:2x2x1
jax: 0.10.0
libtpu: 0.0.40
codegen_flags: <defaults>
</compile_context>

<pallas_src>
import functools
import math

import jax
import jax.numpy as jnp
from jax.experimental import pallas as pl
from jax.experimental.pallas import tpu as pltpu

LEAKY_SLOPE = 0.01
LN_EPS = 1e-5
BN_EPS = 1e-5

CONV_LAYERS = [
    dict(kernel=(41, 7), stride=(2, 1), padding=(20, 3)),
    dict(kernel=(21, 7), stride=(2, 1), padding=(10, 3)),
    dict(kernel=(11, 7), stride=(2, 1), padding=(5, 3)),
]


# --------------------------------------------------------------------------
# Pallas kernels
# --------------------------------------------------------------------------

def _matmul_kernel(a_ref, b_ref, bias_ref, o_ref, acc_ref, *,
                   nk, slope, ln_input, ln_eps):
    """[LayerNorm(a)] @ b + bias, optional LeakyReLU epilogue."""
    a = a_ref[...].astype(jnp.float32)
    if ln_input:
        mu = jnp.mean(a, axis=-1, keepdims=True)
        var = jnp.mean((a - mu) ** 2, axis=-1, keepdims=True)
        a = (a - mu) * jax.lax.rsqrt(var + ln_eps)

    if nk == 1:
        r = jnp.dot(a, b_ref[...], preferred_element_type=jnp.float32)
        r = r + bias_ref[...]
        if slope is not None:
            r = jnp.where(r >= 0, r, slope * r)
        o_ref[...] = r.astype(o_ref.dtype)
    else:
        k = pl.program_id(2)

        @pl.when(k == 0)
        def _():
            acc_ref[...] = jnp.zeros_like(acc_ref)

        acc_ref[...] += jnp.dot(a, b_ref[...],
                                preferred_element_type=jnp.float32)

        @pl.when(k == nk - 1)
        def _():
            r = acc_ref[...] + bias_ref[...]
            if slope is not None:
                r = jnp.where(r >= 0, r, slope * r)
            o_ref[...] = r.astype(o_ref.dtype)


def _conv_kernel(xt_ref, w_ref, b_ref, o_ref, *, fo, kf, sf, slope):
    """Conv2d (freq stride sf, time stride 1) + folded BN + LeakyReLU.

    xt_ref : (Fp, KT*Cin, Tt)  time-tap-stacked padded input (one image).
    w_ref  : (KF, Cout, KT*Cin) folded weights, one slab per frequency tap.
    b_ref  : (Cout, 1)          folded bias.
    o_ref  : (Fo, Cout, Tt)     output block (time on lanes).
    """
    cout = o_ref.shape[1]
    tt = o_ref.shape[2]
    bias = b_ref[...]

    def body_fo(f, carry):
        base = sf * f

        def body_kf(k, acc):
            return acc + jnp.dot(w_ref[k], xt_ref[base + k],
                                 preferred_element_type=jnp.float32)

        acc = jax.lax.fori_loop(0, kf, body_kf,
                                jnp.zeros((cout, tt), jnp.float32))
        r = acc + bias
        r = jnp.where(r >= 0, r, slope * r)
        o_ref[f] = r.astype(o_ref.dtype)
        return carry

    jax.lax.fori_loop(0, fo, body_fo, 0)


def _bilstm_kernel(xp_ref, whh_ref, o_ref, h_scr, c_scr, *, tc, hidden):
    """One direction (grid axis 0) x one time chunk (grid axis 1) of an LSTM.

    xp_ref  : (Tc, B, 4H) precomputed x@W_ih^T + b_ih + b_hh for this chunk.
    whh_ref : (H, 4H)     recurrent weight (transposed), gates [i|f|g|o].
    o_ref   : (B, Tc*H)   hidden states of the chunk, lane-dense.
    """
    c_idx = pl.program_id(1)

    @pl.when(c_idx == 0)
    def _():
        h_scr[...] = jnp.zeros_like(h_scr)
        c_scr[...] = jnp.zeros_like(c_scr)

    whh = whh_ref[...]
    h = h_scr[...]
    c = c_scr[...]

    for t in range(tc):                      # static unroll over the chunk
        g = xp_ref[t] + jnp.dot(h, whh, preferred_element_type=jnp.float32)
        i = jax.nn.sigmoid(g[:, 0 * hidden:1 * hidden])
        f = jax.nn.sigmoid(g[:, 1 * hidden:2 * hidden])
        gg = jnp.tanh(g[:, 2 * hidden:3 * hidden])
        o = jax.nn.sigmoid(g[:, 3 * hidden:4 * hidden])
        c = f * c + i * gg
        h = o * jnp.tanh(c)
        o_ref[:, t * hidden:(t + 1) * hidden] = h.astype(o_ref.dtype)

    h_scr[...] = h
    c_scr[...] = c


# --------------------------------------------------------------------------
# Pallas wrappers
# --------------------------------------------------------------------------

def _pad_to(x, mult, axis):
    rem = (-x.shape[axis]) % mult
    if rem == 0:
        return x
    pads = [(0, 0)] * x.ndim
    pads[axis] = (0, rem)
    return jnp.pad(x, pads)


def fused_matmul(a, b, bias, slope=None, ln_input=False,
                 tm=256, tn=512, tk=512, max_k_single=2048):
    """[leaky_relu]( [layernorm](a) @ b + bias ).  a:(M,K)  b:(K,N)  bias:(N,)

    * K is a single full block whenever it fits (no zero K-tiles, no copy of a).
    * M uses a cdiv grid; partial edge blocks are masked on store.
    * Only the (small) weight/bias get padded when N is tiled.
    """
    M, K = a.shape
    Kb, N = b.shape
    assert K == Kb
    bias2 = bias.reshape(1, N)

    # N axis: single block if small enough, else tile (weight-only padding).
    if N <= tn:
        tn_ = N
        bp, biasp = b, bias2
    else:
        tn_ = tn
        bp = _pad_to(b, tn_, 1)
        biasp = _pad_to(bias2, tn_, 1)
    Np = bp.shape[1]

    # K axis: single full block preferred; otherwise pad (zeros) and loop.
    if K <= max_k_single:
        tk_ = K
        ap, bp2 = a, bp
    else:
        assert not ln_input, "LayerNorm prologue needs the full row in-block"
        tk_ = tk
        ap = _pad_to(a, tk_, 1)
        bp2 = _pad_to(bp, tk_, 0)
    Kp = ap.shape[1]
    nk = Kp // tk_

    # M axis: no padding; partial edge block rows are discarded by masking.
    tm_ = M if M <= tm else tm
    gm = pl.cdiv(M, tm_)

    out = pl.pallas_call(
        functools.partial(_matmul_kernel, nk=nk, slope=slope,
                          ln_input=ln_input, ln_eps=LN_EPS),
        out_shape=jax.ShapeDtypeStruct((M, Np), jnp.float32),
        grid_spec=pltpu.PrefetchScalarGridSpec(
            num_scalar_prefetch=0,
            grid=(gm, Np // tn_, nk),
            in_specs=[
                pl.BlockSpec((tm_, tk_), lambda i, j, k: (i, k)),
                pl.BlockSpec((tk_, tn_), lambda i, j, k: (k, j)),
                pl.BlockSpec((1, tn_), lambda i, j, k: (0, j)),
            ],
            out_specs=pl.BlockSpec((tm_, tn_), lambda i, j, k: (i, j)),
            scratch_shapes=[pltpu.VMEM((tm_, tn_), jnp.float32)],
        ),
        compiler_params=pltpu.CompilerParams(
            dimension_semantics=("parallel", "parallel", "arbitrary")),
    )(ap, bp2, biasp)
    return out[:, :N] if Np != N else out


def conv_bn_lrelu(x_fct, cp, cfg, t_tile=256):
    """Conv2d + folded BatchNorm(eval) + LeakyReLU in (N, F, C, T) layout.

    Only the 7 time taps are pre-stacked in HBM (7x the *input*, vs ~140x for
    full im2col); the frequency taps are streamed inside the kernel.
    TODO(synk): build the time-tap stack in-kernel (lane-shifted concat) to
                remove the remaining 7x input expansion.
    """
    N, F, Cin, T = x_fct.shape
    w = cp["w"]                               # (Cout, Cin, KF, KT)
    Cout, _, KF, KT = w.shape
    sf, st = cfg["stride"]
    pf, pt = cfg["padding"]
    assert st == 1
    Fo = (F + 2 * pf - KF) // sf + 1
    To = (T + 2 * pt - KT) // st + 1
    Fp = F + 2 * pf
    KC = KT * Cin

    # Pad, then stack the KT time taps: xt[n,f,(kt,ci),to] = xpad[n,f,ci,to+kt]
    xp = jnp.pad(x_fct, ((0, 0), (pf, pf), (0, 0), (pt, pt)))
    xt = jnp.stack([xp[..., k:k + To] for k in range(KT)], axis=2)
    xt = xt.reshape(N, Fp, KC, To)

    # Fold eval-mode BatchNorm into weight/bias; weight -> (KF, Cout, KT*Cin).
    s = cp["gamma"] * jax.lax.rsqrt(cp["rvar"] + BN_EPS)
    wf = (w * s[:, None, None, None]).transpose(2, 0, 3, 1).reshape(KF, Cout, KC)
    bf = ((cp["b"] - cp["rmean"]) * s + cp["beta"]).reshape(Cout, 1)

    tt = To if To <= t_tile else t_tile
    gt = pl.cdiv(To, tt)

    out = pl.pallas_call(
        functools.partial(_conv_kernel, fo=Fo, kf=KF, sf=sf,
                          slope=LEAKY_SLOPE),
        out_shape=jax.ShapeDtypeStruct((N, Fo, Cout, To), jnp.float32),
        grid_spec=pltpu.PrefetchScalarGridSpec(
            num_scalar_prefetch=0,
            grid=(N, gt),
            in_specs=[
                pl.BlockSpec((None, Fp, KC, tt), lambda n, t: (n, 0, 0, t)),
                pl.BlockSpec((KF, Cout, KC), lambda n, t: (0, 0, 0)),
                pl.BlockSpec((Cout, 1), lambda n, t: (0, 0)),
            ],
            out_specs=pl.BlockSpec((None, Fo, Cout, tt),
                                   lambda n, t: (n, 0, 0, t)),
        ),
        compiler_params=pltpu.CompilerParams(
            dimension_semantics=("parallel", "parallel")),
    )(xt, wf, bf)
    return out                               # (N, Fo, Cout, To)


def _batch_rnn(x_bth, lp, hidden, tc=8):
    """LayerNorm(input) -> bidirectional LSTM -> sum of the two directions."""
    B, T, H = x_bth.shape

    # One gate-precompute matmul for BOTH directions, LN fused as prologue.
    w_cat = jnp.concatenate([lp["fwd"]["w_ih"].T, lp["bwd"]["w_ih"].T], axis=1)
    b_cat = jnp.concatenate([lp["fwd"]["b_ih"] + lp["fwd"]["b_hh"],
                             lp["bwd"]["b_ih"] + lp["bwd"]["b_hh"]], axis=0)
    xp = fused_matmul(x_bth.reshape(B * T, H), w_cat, b_cat,
                      slope=None, ln_input=True)          # (B*T, 8H)
    xp = xp.reshape(B, T, 2, 4 * hidden)
    xp_f = xp[:, :, 0]
    xp_b = jnp.flip(xp[:, :, 1], axis=1)                  # reversed stream
    xp2 = jnp.stack([xp_f, xp_b], axis=0)                 # (2, B, T, 4H)

    nc = -(-T // tc)
    tpad = nc * tc
    if tpad != T:
        xp2 = jnp.pad(xp2, ((0, 0), (0, 0), (0, tpad - T), (0, 0)))
    xp2 = xp2.transpose(0, 2, 1, 3).reshape(2, nc, tc, B, 4 * hidden)

    whh = jnp.stack([lp["fwd"]["w_hh"].T, lp["bwd"]["w_hh"].T], axis=0)

    out = pl.pallas_call(
        functools.partial(_bilstm_kernel, tc=tc, hidden=hidden),
        out_shape=jax.ShapeDtypeStruct((2, nc, B, tc * hidden), jnp.float32),
        grid_spec=pltpu.PrefetchScalarGridSpec(
            num_scalar_prefetch=0,
            grid=(2, nc),
            in_specs=[
                pl.BlockSpec((None, None, tc, B, 4 * hidden),
                             lambda d, c: (d, c, 0, 0, 0)),
                pl.BlockSpec((None, hidden, 4 * hidden),
                             lambda d, c: (d, 0, 0)),
            ],
            out_specs=pl.BlockSpec((None, None, B, tc * hidden),
                                   lambda d, c: (d, c, 0, 0)),
            scratch_shapes=[pltpu.VMEM((B, hidden), jnp.float32),
                            pltpu.VMEM((B, hidden), jnp.float32)],
        ),
        compiler_params=pltpu.CompilerParams(
            dimension_semantics=("parallel", "arbitrary")),
    )(xp2, whh)

    out = out.reshape(2, nc, B, tc, hidden)
    out = out.transpose(0, 2, 1, 3, 4).reshape(2, B, tpad, hidden)[:, :, :T]
    return out[0] + jnp.flip(out[1], axis=1)


# --------------------------------------------------------------------------
# Listener forward (glue around the Pallas kernels)
# --------------------------------------------------------------------------

def listener_forward(params, x, seq_lens):
    # conv stack in (N, F, C, T) layout
    h = x.transpose(0, 2, 1, 3)                            # (N, F0, C0, T)
    for cp, cfg in zip(params["conv"], CONV_LAYERS):
        h = conv_bn_lrelu(h, cp, cfg)

    N, F3, C3, T = h.shape
    H0 = C3 * F3
    # features ordered (c, f) to match PyTorch's view of (C3, F3)
    h = h.transpose(0, 3, 2, 1).reshape(N, T, H0)          # (N, T, H0)

    # fc1: Linear + Dropout(identity) + LeakyReLU
    h = fused_matmul(h.reshape(N * T, H0), params["fc1"]["w"].T,
                     params["fc1"]["b"], slope=LEAKY_SLOPE)
    hidden = h.shape[-1]
    h = h.reshape(N, T, hidden)

    y = _batch_rnn(h, params["rnns"][0], hidden)
    for i in range(1, len(params["rnns"])):
        y = y + h
        y = _batch_rnn(y, params["rnns"][i], hidden)

    # final fc: LayerNorm (fused prologue) -> Linear -> Dropout(identity)
    out = fused_matmul(y.reshape(N * T, hidden), params["fc"]["w"].T,
                       params["fc"]["b"], slope=None, ln_input=True)
    return out.reshape(N, T, -1), seq_lens


# --------------------------------------------------------------------------
# Deterministic parameter init (shapes follow Listener.__init__)
# --------------------------------------------------------------------------

def _uniform(key, shape, fan_in):
    k = 1.0 / math.sqrt(fan_in)
    return jax.random.uniform(key, shape, jnp.float32, -k, k)


def init_params(key, C0, hidden, num_layers, listen_vec):
    keys = iter(jax.random.split(key, 64))
    conv_chan = [(C0, 16), (16, 32), (32, 64)]
    conv = []
    for (cin, cout), cfg in zip(conv_chan, CONV_LAYERS):
        kf, kt = cfg["kernel"]
        fan = cin * kf * kt
        conv.append(dict(
            w=_uniform(next(keys), (cout, cin, kf, kt), fan),
            b=_uniform(next(keys), (cout,), fan),
            gamma=1.0 + 0.1 * jax.random.normal(next(keys), (cout,)),
            beta=0.1 * jax.random.normal(next(keys), (cout,)),
            rmean=0.1 * jax.random.normal(next(keys), (cout,)),
            rvar=1.0 + 0.1 * jnp.abs(jax.random.normal(next(keys), (cout,))),
        ))

    W = 129
    for cfg in CONV_LAYERS:
        kf, _ = cfg["kernel"]
        pf, _ = cfg["padding"]
        W = (W - kf + 2 * pf) // 2 + 1
    H0 = 64 * W   # C3 * W3

    fc1 = dict(w=_uniform(next(keys), (hidden, H0), H0),
               b=_uniform(next(keys), (hidden,), H0))

    rnns = []
    for _ in range(num_layers):
        layer = {}
        for d in ("fwd", "bwd"):
            layer[d] = dict(
                w_ih=_uniform(next(keys), (4 * hidden, hidden), hidden),
                w_hh=_uniform(next(keys), (4 * hidden, hidden), hidden),
                b_ih=_uniform(next(keys), (4 * hidden,), hidden),
                b_hh=_uniform(next(keys), (4 * hidden,), hidden),
            )
        rnns.append(layer)

    fc = dict(w=_uniform(next(keys), (listen_vec, hidden), hidden),
              b=_uniform(next(keys), (listen_vec,), hidden))
    return dict(conv=conv, fc1=fc1, rnns=rnns, fc=fc)


# --------------------------------------------------------------------------

if __name__ == "__main__":
    key = jax.random.PRNGKey(0)
    kp, kx = jax.random.split(key)

    N, T = 2, 8
    input_folding = 2
    C0 = 2 * input_folding
    F0 = 129                      # W0 hard-coded in Listener.__init__
    rnn_hidden = 32
    rnn_num_layers = 2
    listen_vec_size = 64

    params = init_params(kp, C0, rnn_hidden, rnn_num_layers, listen_vec_size)
    x = jax.random.normal(kx, (N, C0, F0, T), jnp.float32)
    seq_lens = jnp.full((N,), T, jnp.int32)   # full-length sequences

    fwd = jax.jit(listener_forward)
    y, out_lens = fwd(params, x, seq_lens)
    jax.block_until_ready(y)

    assert y.shape == (N, T, listen_vec_size), y.shape
    assert out_lens.shape == (N,)
    assert bool(jnp.all(jnp.isfinite(y)))
    print("KERNEL_OK")
</pallas_src>

<mosaic_0001>
module attributes {stable_mosaic.version = 11 : i64} {
  func.func @_conv_kernel(%arg0: i32, %arg1: i32, %arg2: memref<1x169x28x8xf32, #tpu.memory_space<vmem>>, %arg3: memref<41x16x28xf32, #tpu.memory_space<vmem>>, %arg4: memref<16x1xf32, #tpu.memory_space<vmem>>, %arg5: memref<1x65x16x8xf32, #tpu.memory_space<vmem>>) attributes {dimension_semantics = [#tpu.dimension_semantics<parallel>, #tpu.dimension_semantics<parallel>], iteration_bounds = array<i64: 2, 1>, scalar_prefetch = 0 : i64, scratch_operands = 0 : i64, tpu.core_type = #tpu.core_type<tc>, window_params = [{transform_indices = @transform_0, window_bounds = array<i64: 1, 169, 28, 8>}, {pipeline_mode = #tpu.pipeline_mode<synchronous>, transform_indices = @transform_1, window_bounds = array<i64: 41, 16, 28>}, {pipeline_mode = #tpu.pipeline_mode<synchronous>, transform_indices = @transform_2, window_bounds = array<i64: 16, 1>}, {transform_indices = @transform_3, window_bounds = array<i64: 1, 65, 16, 8>}]} {
    %c0 = arith.constant 0 : index
    %c0_0 = arith.constant 0 : index
    %0 = vector.load %arg4[%c0, %c0_0] : memref<16x1xf32, #tpu.memory_space<vmem>>, vector<16x1xf32>
    %c0_i32 = arith.constant 0 : i32
    %c65_i32 = arith.constant 65 : i32
    %1 = arith.addi %c0_i32, %c65_i32 : i32
    %c1_i32 = arith.constant 1 : i32
    scf.for %arg6 = %c0_i32 to %1 step %c1_i32  : i32 {
      %c2_i32 = arith.constant 2 : i32
      %2 = arith.muli %c2_i32, %arg6 : i32
      %cst = arith.constant 0.000000e+00 : f32
      %3 = vector.broadcast %cst : f32 to vector<16x8xf32>
      %c0_i32_2 = arith.constant 0 : i32
      %c41_i32 = arith.constant 41 : i32
      %4 = arith.addi %c0_i32_2, %c41_i32 : i32
      %c1_i32_3 = arith.constant 1 : i32
      %5 = scf.for %arg7 = %c0_i32_2 to %4 step %c1_i32_3 iter_args(%arg8 = %3) -> (vector<16x8xf32>)  : i32 {
        %17 = arith.index_cast %arg7 : i32 to index
        %c0_10 = arith.constant 0 : index
        %c0_11 = arith.constant 0 : index
        %18 = vector.load %arg3[%17, %c0_10, %c0_11] : memref<41x16x28xf32, #tpu.memory_space<vmem>>, vector<1x16x28xf32>
        %19 = vector.shape_cast %18 : vector<1x16x28xf32> to vector<16x28xf32>
        %20 = arith.addi %2, %arg7 : i32
        %c0_12 = arith.constant 0 : index
        %21 = arith.index_cast %20 : i32 to index
        %c0_13 = arith.constant 0 : index
        %c0_14 = arith.constant 0 : index
        %22 = vector.load %arg2[%c0_12, %21, %c0_13, %c0_14] : memref<1x169x28x8xf32, #tpu.memory_space<vmem>>, vector<1x1x28x8xf32>
        %23 = vector.shape_cast %22 : vector<1x1x28x8xf32> to vector<28x8xf32>
        %cst_15 = arith.constant dense<0.000000e+00> : vector<16x8xf32>
        %24 = tpu.matmul %19, %23, %cst_15 {dimension_numbers = #tpu.dot_dimension_numbers<[1], [0], [0], [1], [0, 0, 1, 1], [], []>} : vector<16x28xf32>, vector<28x8xf32>, vector<16x8xf32> -> vector<16x8xf32>
        %25 = arith.addf %arg8, %24 : vector<16x8xf32>
        scf.yield %25 : vector<16x8xf32>
      }
      %c41_i32_4 = arith.constant 41 : i32
      %6 = vector.broadcast %0 : vector<16x1xf32> to vector<16x8xf32>
      %7 = arith.addf %5, %6 : vector<16x8xf32>
      %cst_5 = arith.constant 0.000000e+00 : f32
      %8 = vector.broadcast %cst_5 : f32 to vector<16x8xf32>
      %9 = arith.cmpf oge, %7, %8 : vector<16x8xf32>
      %cst_6 = arith.constant 0.00999999977 : f32
      %10 = vector.broadcast %cst_6 : f32 to vector<16x8xf32>
      %11 = arith.mulf %10, %7 : vector<16x8xf32>
      %12 = arith.select %9, %7, %11 : vector<16x8xi1>, vector<16x8xf32>
      %c0_7 = arith.constant 0 : index
      %13 = arith.index_cast %arg6 : i32 to index
      %c0_8 = arith.constant 0 : index
      %c0_9 = arith.constant 0 : index
      %14 = vector.load %arg5[%c0_7, %13, %c0_8, %c0_9] : memref<1x65x16x8xf32, #tpu.memory_space<vmem>>, vector<1x1x16x8xf32>
      %15 = vector.shape_cast %14 : vector<1x1x16x8xf32> to vector<16x8xf32>
      %16 = vector.shape_cast %12 : vector<16x8xf32> to vector<1x1x16x8xf32>
      tpu.vector_store %arg5[%c0_7, %13, %c0_8, %c0_9], %16 {strides = array<i32>} : memref<1x65x16x8xf32, #tpu.memory_space<vmem>>, vector<1x1x16x8xf32>,
    }
    %c65_i32_1 = arith.constant 65 : i32
    return
  }
  func.func @transform_0(%arg0: i32, %arg1: i32) -> (i32, i32, i32, i32) {
    %c0_i32 = arith.constant 0 : i32
    %c0_i32_0 = arith.constant 0 : i32
    %c0_i32_1 = arith.constant 0 : i32
    return %arg0, %c0_i32, %c0_i32_0, %arg1 : i32, i32, i32, i32
  }
  func.func @transform_1(%arg0: i32, %arg1: i32) -> (i32, i32, i32) {
    %c0_i32 = arith.constant 0 : i32
    %c0_i32_0 = arith.constant 0 : i32
    %c0_i32_1 = arith.constant 0 : i32
    %c0_i32_2 = arith.constant 0 : i32
    return %c0_i32, %c0_i32_0, %c0_i32_1 : i32, i32, i32
  }
  func.func @transform_2(%arg0: i32, %arg1: i32) -> (i32, i32) {
    %c0_i32 = arith.constant 0 : i32
    %c0_i32_0 = arith.constant 0 : i32
    %c0_i32_1 = arith.constant 0 : i32
    return %c0_i32, %c0_i32_0 : i32, i32
  }
  func.func @transform_3(%arg0: i32, %arg1: i32) -> (i32, i32, i32, i32) {
    %c0_i32 = arith.constant 0 : i32
    %c0_i32_0 = arith.constant 0 : i32
    %c0_i32_1 = arith.constant 0 : i32
    return %arg0, %c0_i32, %c0_i32_0, %arg1 : i32, i32, i32, i32
  }
}

module attributes {stable_mosaic.version = 11 : i64} {
  func.func @_conv_kernel(%arg0: i32, %arg1: i32, %arg2: memref<1x85x112x8xf32, #tpu.memory_space<vmem>>, %arg3: memref<21x32x112xf32, #tpu.memory_space<vmem>>, %arg4: memref<32x1xf32, #tpu.memory_space<vmem>>, %arg5: memref<1x33x32x8xf32, #tpu.memory_space<vmem>>) attributes {dimension_semantics = [#tpu.dimension_semantics<parallel>, #tpu.dimension_semantics<parallel>], iteration_bounds = array<i64: 2, 1>, scalar_prefetch = 0 : i64, scratch_operands = 0 : i64, tpu.core_type = #tpu.core_type<tc>, window_params = [{transform_indices = @transform_0, window_bounds = array<i64: 1, 85, 112, 8>}, {pipeline_mode = #tpu.pipeline_mode<synchronous>, transform_indices = @transform_1, window_bounds = array<i64: 21, 32, 112>}, {pipeline_mode = #tpu.pipeline_mode<synchronous>, transform_indices = @transform_2, window_bounds = array<i64: 32, 1>}, {transform_indices = @transform_3, window_bounds = array<i64: 1, 33, 32, 8>}]} {
    %c0 = arith.constant 0 : index
    %c0_0 = arith.constant 0 : index
    %0 = vector.load %arg4[%c0, %c0_0] : memref<32x1xf32, #tpu.memory_space<vmem>>, vector<32x1xf32>
    %c0_i32 = arith.constant 0 : i32
    %c33_i32 = arith.constant 33 : i32
    %1 = arith.addi %c0_i32, %c33_i32 : i32
    %c1_i32 = arith.constant 1 : i32
    scf.for %arg6 = %c0_i32 to %1 step %c1_i32  : i32 {
      %c2_i32 = arith.constant 2 : i32
      %2 = arith.muli %c2_i32, %arg6 : i32
      %cst = arith.constant 0.000000e+00 : f32
      %3 = vector.broadcast %cst : f32 to vector<32x8xf32>
      %c0_i32_2 = arith.constant 0 : i32
      %c21_i32 = arith.constant 21 : i32
      %4 = arith.addi %c0_i32_2, %c21_i32 : i32
      %c1_i32_3 = arith.constant 1 : i32
      %5 = scf.for %arg7 = %c0_i32_2 to %4 step %c1_i32_3 iter_args(%arg8 = %3) -> (vector<32x8xf32>)  : i32 {
        %17 = arith.index_cast %arg7 : i32 to index
        %c0_10 = arith.constant 0 : index
        %c0_11 = arith.constant 0 : index
        %18 = vector.load %arg3[%17, %c0_10, %c0_11] : memref<21x32x112xf32, #tpu.memory_space<vmem>>, vector<1x32x112xf32>
        %19 = vector.shape_cast %18 : vector<1x32x112xf32> to vector<32x112xf32>
        %20 = arith.addi %2, %arg7 : i32
        %c0_12 = arith.constant 0 : index
        %21 = arith.index_cast %20 : i32 to index
        %c0_13 = arith.constant 0 : index
        %c0_14 = arith.constant 0 : index
        %22 = vector.load %arg2[%c0_12, %21, %c0_13, %c0_14] : memref<1x85x112x8xf32, #tpu.memory_space<vmem>>, vector<1x1x112x8xf32>
        %23 = vector.shape_cast %22 : vector<1x1x112x8xf32> to vector<112x8xf32>
        %cst_15 = arith.constant dense<0.000000e+00> : vector<32x8xf32>
        %24 = tpu.matmul %19, %23, %cst_15 {dimension_numbers = #tpu.dot_dimension_numbers<[1], [0], [0], [1], [0, 0, 1, 1], [], []>} : vector<32x112xf32>, vector<112x8xf32>, vector<32x8xf32> -> vector<32x8xf32>
        %25 = arith.addf %arg8, %24 : vector<32x8xf32>
        scf.yield %25 : vector<32x8xf32>
      }
      %c21_i32_4 = arith.constant 21 : i32
      %6 = vector.broadcast %0 : vector<32x1xf32> to vector<32x8xf32>
      %7 = arith.addf %5, %6 : vector<32x8xf32>
      %cst_5 = arith.constant 0.000000e+00 : f32
      %8 = vector.broadcast %cst_5 : f32 to vector<32x8xf32>
      %9 = arith.cmpf oge, %7, %8 : vector<32x8xf32>
      %cst_6 = arith.constant 0.00999999977 : f32
      %10 = vector.broadcast %cst_6 : f32 to vector<32x8xf32>
      %11 = arith.mulf %10, %7 : vector<32x8xf32>
      %12 = arith.select %9, %7, %11 : vector<32x8xi1>, vector<32x8xf32>
      %c0_7 = arith.constant 0 : index
      %13 = arith.index_cast %arg6 : i32 to index
      %c0_8 = arith.constant 0 : index
      %c0_9 = arith.constant 0 : index
      %14 = vector.load %arg5[%c0_7, %13, %c0_8, %c0_9] : memref<1x33x32x8xf32, #tpu.memory_space<vmem>>, vector<1x1x32x8xf32>
      %15 = vector.shape_cast %14 : vector<1x1x32x8xf32> to vector<32x8xf32>
      %16 = vector.shape_cast %12 : vector<32x8xf32> to vector<1x1x32x8xf32>
      tpu.vector_store %arg5[%c0_7, %13, %c0_8, %c0_9], %16 {strides = array<i32>} : memref<1x33x32x8xf32, #tpu.memory_space<vmem>>, vector<1x1x32x8xf32>,
    }
    %c33_i32_1 = arith.constant 33 : i32
    return
  }
  func.func @transform_0(%arg0: i32, %arg1: i32) -> (i32, i32, i32, i32) {
    %c0_i32 = arith.constant 0 : i32
    %c0_i32_0 = arith.constant 0 : i32
    %c0_i32_1 = arith.constant 0 : i32
    return %arg0, %c0_i32, %c0_i32_0, %arg1 : i32, i32, i32, i32
  }
  func.func @transform_1(%arg0: i32, %arg1: i32) -> (i32, i32, i32) {
    %c0_i32 = arith.constant 0 : i32
    %c0_i32_0 = arith.constant 0 : i32
    %c0_i32_1 = arith.constant 0 : i32
    %c0_i32_2 = arith.constant 0 : i32
    return %c0_i32, %c0_i32_0, %c0_i32_1 : i32, i32, i32
  }
  func.func @transform_2(%arg0: i32, %arg1: i32) -> (i32, i32) {
    %c0_i32 = arith.constant 0 : i32
    %c0_i32_0 = arith.constant 0 : i32
    %c0_i32_1 = arith.constant 0 : i32
    return %c0_i32, %c0_i32_0 : i32, i32
  }
  func.func @transform_3(%arg0: i32, %arg1: i32) -> (i32, i32, i32, i32) {
    %c0_i32 = arith.constant 0 : i32
    %c0_i32_0 = arith.constant 0 : i32
    %c0_i32_1 = arith.constant 0 : i32
    return %arg0, %c0_i32, %c0_i32_0, %arg1 : i32, i32, i32, i32
  }
}

module attributes {stable_mosaic.version = 11 : i64} {
  func.func @_conv_kernel(%arg0: i32, %arg1: i32, %arg2: memref<1x43x224x8xf32, #tpu.memory_space<vmem>>, %arg3: memref<11x64x224xf32, #tpu.memory_space<vmem>>, %arg4: memref<64x1xf32, #tpu.memory_space<vmem>>, %arg5: memref<1x17x64x8xf32, #tpu.memory_space<vmem>>) attributes {dimension_semantics = [#tpu.dimension_semantics<parallel>, #tpu.dimension_semantics<parallel>], iteration_bounds = array<i64: 2, 1>, scalar_prefetch = 0 : i64, scratch_operands = 0 : i64, tpu.core_type = #tpu.core_type<tc>, window_params = [{transform_indices = @transform_0, window_bounds = array<i64: 1, 43, 224, 8>}, {pipeline_mode = #tpu.pipeline_mode<synchronous>, transform_indices = @transform_1, window_bounds = array<i64: 11, 64, 224>}, {pipeline_mode = #tpu.pipeline_mode<synchronous>, transform_indices = @transform_2, window_bounds = array<i64: 64, 1>}, {transform_indices = @transform_3, window_bounds = array<i64: 1, 17, 64, 8>}]} {
    %c0 = arith.constant 0 : index
    %c0_0 = arith.constant 0 : index
    %0 = vector.load %arg4[%c0, %c0_0] : memref<64x1xf32, #tpu.memory_space<vmem>>, vector<64x1xf32>
    %c0_i32 = arith.constant 0 : i32
    %c17_i32 = arith.constant 17 : i32
    %1 = arith.addi %c0_i32, %c17_i32 : i32
    %c1_i32 = arith.constant 1 : i32
    scf.for %arg6 = %c0_i32 to %1 step %c1_i32  : i32 {
      %c2_i32 = arith.constant 2 : i32
      %2 = arith.muli %c2_i32, %arg6 : i32
      %cst = arith.constant 0.000000e+00 : f32
      %3 = vector.broadcast %cst : f32 to vector<64x8xf32>
      %c0_i32_2 = arith.constant 0 : i32
      %c11_i32 = arith.constant 11 : i32
      %4 = arith.addi %c0_i32_2, %c11_i32 : i32
      %c1_i32_3 = arith.constant 1 : i32
      %5 = scf.for %arg7 = %c0_i32_2 to %4 step %c1_i32_3 iter_args(%arg8 = %3) -> (vector<64x8xf32>)  : i32 {
        %17 = arith.index_cast %arg7 : i32 to index
        %c0_10 = arith.constant 0 : index
        %c0_11 = arith.constant 0 : index
        %18 = vector.load %arg3[%17, %c0_10, %c0_11] : memref<11x64x224xf32, #tpu.memory_space<vmem>>, vector<1x64x224xf32>
        %19 = vector.shape_cast %18 : vector<1x64x224xf32> to vector<64x224xf32>
        %20 = arith.addi %2, %arg7 : i32
        %c0_12 = arith.constant 0 : index
        %21 = arith.index_cast %20 : i32 to index
        %c0_13 = arith.constant 0 : index
        %c0_14 = arith.constant 0 : index
        %22 = vector.load %arg2[%c0_12, %21, %c0_13, %c0_14] : memref<1x43x224x8xf32, #tpu.memory_space<vmem>>, vector<1x1x224x8xf32>
        %23 = vector.shape_cast %22 : vector<1x1x224x8xf32> to vector<224x8xf32>
        %cst_15 = arith.constant dense<0.000000e+00> : vector<64x8xf32>
        %24 = tpu.matmul %19, %23, %cst_15 {dimension_numbers = #tpu.dot_dimension_numbers<[1], [0], [0], [1], [0, 0, 1, 1], [], []>} : vector<64x224xf32>, vector<224x8xf32>, vector<64x8xf32> -> vector<64x8xf32>
        %25 = arith.addf %arg8, %24 : vector<64x8xf32>
        scf.yield %25 : vector<64x8xf32>
      }
      %c11_i32_4 = arith.constant 11 : i32
      %6 = vector.broadcast %0 : vector<64x1xf32> to vector<64x8xf32>
      %7 = arith.addf %5, %6 : vector<64x8xf32>
      %cst_5 = arith.constant 0.000000e+00 : f32
      %8 = vector.broadcast %cst_5 : f32 to vector<64x8xf32>
      %9 = arith.cmpf oge, %7, %8 : vector<64x8xf32>
      %cst_6 = arith.constant 0.00999999977 : f32
      %10 = vector.broadcast %cst_6 : f32 to vector<64x8xf32>
      %11 = arith.mulf %10, %7 : vector<64x8xf32>
      %12 = arith.select %9, %7, %11 : vector<64x8xi1>, vector<64x8xf32>
      %c0_7 = arith.constant 0 : index
      %13 = arith.index_cast %arg6 : i32 to index
      %c0_8 = arith.constant 0 : index
      %c0_9 = arith.constant 0 : index
      %14 = vector.load %arg5[%c0_7, %13, %c0_8, %c0_9] : memref<1x17x64x8xf32, #tpu.memory_space<vmem>>, vector<1x1x64x8xf32>
      %15 = vector.shape_cast %14 : vector<1x1x64x8xf32> to vector<64x8xf32>
      %16 = vector.shape_cast %12 : vector<64x8xf32> to vector<1x1x64x8xf32>
      tpu.vector_store %arg5[%c0_7, %13, %c0_8, %c0_9], %16 {strides = array<i32>} : memref<1x17x64x8xf32, #tpu.memory_space<vmem>>, vector<1x1x64x8xf32>,
    }
    %c17_i32_1 = arith.constant 17 : i32
    return
  }
  func.func @transform_0(%arg0: i32, %arg1: i32) -> (i32, i32, i32, i32) {
    %c0_i32 = arith.constant 0 : i32
    %c0_i32_0 = arith.constant 0 : i32
    %c0_i32_1 = arith.constant 0 : i32
    return %arg0, %c0_i32, %c0_i32_0, %arg1 : i32, i32, i32, i32
  }
  func.func @transform_1(%arg0: i32, %arg1: i32) -> (i32, i32, i32) {
    %c0_i32 = arith.constant 0 : i32
    %c0_i32_0 = arith.constant 0 : i32
    %c0_i32_1 = arith.constant 0 : i32
    %c0_i32_2 = arith.constant 0 : i32
    return %c0_i32, %c0_i32_0, %c0_i32_1 : i32, i32, i32
  }
  func.func @transform_2(%arg0: i32, %arg1: i32) -> (i32, i32) {
    %c0_i32 = arith.constant 0 : i32
    %c0_i32_0 = arith.constant 0 : i32
    %c0_i32_1 = arith.constant 0 : i32
    return %c0_i32, %c0_i32_0 : i32, i32
  }
  func.func @transform_3(%arg0: i32, %arg1: i32) -> (i32, i32, i32, i32) {
    %c0_i32 = arith.constant 0 : i32
    %c0_i32_0 = arith.constant 0 : i32
    %c0_i32_1 = arith.constant 0 : i32
    return %arg0, %c0_i32, %c0_i32_0, %arg1 : i32, i32, i32, i32
  }
}

module attributes {stable_mosaic.version = 11 : i64} {
  func.func @_matmul_kernel(%arg0: i32, %arg1: i32, %arg2: i32, %arg3: memref<16x1088xf32, #tpu.memory_space<vmem>>, %arg4: memref<1088x32xf32, #tpu.memory_space<vmem>>, %arg5: memref<1x32xf32, #tpu.memory_space<vmem>>, %arg6: memref<16x32xf32, #tpu.memory_space<vmem>>, %arg7: memref<16x32xf32, #tpu.memory_space<vmem>>) attributes {dimension_semantics = [#tpu.dimension_semantics<parallel>, #tpu.dimension_semantics<parallel>, #tpu.dimension_semantics<arbitrary>], iteration_bounds = array<i64: 1, 1, 1>, scalar_prefetch = 0 : i64, scratch_operands = 1 : i64, tpu.core_type = #tpu.core_type<tc>, window_params = [{transform_indices = @transform_0, window_bounds = array<i64: 16, 1088>}, {transform_indices = @transform_1, window_bounds = array<i64: 1088, 32>}, {transform_indices = @transform_2, window_bounds = array<i64: 1, 32>}, {transform_indices = @transform_3, window_bounds = array<i64: 16, 32>}]} {
    %c0 = arith.constant 0 : index
    %c0_0 = arith.constant 0 : index
    %0 = vector.load %arg3[%c0, %c0_0] : memref<16x1088xf32, #tpu.memory_space<vmem>>, vector<16x1088xf32>
    %c0_1 = arith.constant 0 : index
    %c0_2 = arith.constant 0 : index
    %1 = vector.load %arg4[%c0_1, %c0_2] : memref<1088x32xf32, #tpu.memory_space<vmem>>, vector<1088x32xf32>
    %cst = arith.constant dense<0.000000e+00> : vector<16x32xf32>
    %2 = tpu.matmul %0, %1, %cst {dimension_numbers = #tpu.dot_dimension_numbers<[1], [0], [0], [1], [0, 0, 1, 1], [], []>} : vector<16x1088xf32>, vector<1088x32xf32>, vector<16x32xf32> -> vector<16x32xf32>
    %c0_3 = arith.constant 0 : index
    %c0_4 = arith.constant 0 : index
    %3 = vector.load %arg5[%c0_3, %c0_4] : memref<1x32xf32, #tpu.memory_space<vmem>>, vector<1x32xf32>
    %4 = vector.broadcast %3 : vector<1x32xf32> to vector<16x32xf32>
    %5 = arith.addf %2, %4 : vector<16x32xf32>
    %cst_5 = arith.constant 0.000000e+00 : f32
    %6 = vector.broadcast %cst_5 : f32 to vector<16x32xf32>
    %7 = arith.cmpf oge, %5, %6 : vector<16x32xf32>
    %cst_6 = arith.constant 0.00999999977 : f32
    %8 = vector.broadcast %cst_6 : f32 to vector<16x32xf32>
    %9 = arith.mulf %8, %5 : vector<16x32xf32>
    %10 = arith.select %7, %5, %9 : vector<16x32xi1>, vector<16x32xf32>
    %c0_7 = arith.constant 0 : index
    %c0_8 = arith.constant 0 : index
    %11 = vector.load %arg6[%c0_7, %c0_8] : memref<16x32xf32, #tpu.memory_space<vmem>>, vector<16x32xf32>
    tpu.vector_store %arg6[%c0_7, %c0_8], %10 {strides = array<i32>} : memref<16x32xf32, #tpu.memory_space<vmem>>, vector<16x32xf32>,
    return
  }
  func.func @transform_0(%arg0: i32, %arg1: i32, %arg2: i32) -> (i32, i32) {
    %c0_i32 = arith.constant 0 : i32
    return %arg0, %arg2 : i32, i32
  }
  func.func @transform_1(%arg0: i32, %arg1: i32, %arg2: i32) -> (i32, i32) {
    %c0_i32 = arith.constant 0 : i32
    return %arg2, %arg1 : i32, i32
  }
  func.func @transform_2(%arg0: i32, %arg1: i32, %arg2: i32) -> (i32, i32) {
    %c0_i32 = arith.constant 0 : i32
    %c0_i32_0 = arith.constant 0 : i32
    return %c0_i32, %arg1 : i32, i32
  }
  func.func @transform_3(%arg0: i32, %arg1: i32, %arg2: i32) -> (i32, i32) {
    %c0_i32 = arith.constant 0 : i32
    return %arg0, %arg1 : i32, i32
  }
}

module attributes {stable_mosaic.version = 11 : i64} {
  func.func @_matmul_kernel(%arg0: i32, %arg1: i32, %arg2: i32, %arg3: memref<16x32xf32, #tpu.memory_space<vmem>>, %arg4: memref<32x256xf32, #tpu.memory_space<vmem>>, %arg5: memref<1x256xf32, #tpu.memory_space<vmem>>, %arg6: memref<16x256xf32, #tpu.memory_space<vmem>>, %arg7: memref<16x256xf32, #tpu.memory_space<vmem>>) attributes {dimension_semantics = [#tpu.dimension_semantics<parallel>, #tpu.dimension_semantics<parallel>, #tpu.dimension_semantics<arbitrary>], iteration_bounds = array<i64: 1, 1, 1>, scalar_prefetch = 0 : i64, scratch_operands = 1 : i64, tpu.core_type = #tpu.core_type<tc>, window_params = [{transform_indices = @transform_0, window_bounds = array<i64: 16, 32>}, {transform_indices = @transform_1, window_bounds = array<i64: 32, 256>}, {transform_indices = @transform_2, window_bounds = array<i64: 1, 256>}, {transform_indices = @transform_3, window_bounds = array<i64: 16, 256>}]} {
    %c0 = arith.constant 0 : index
    %c0_0 = arith.constant 0 : index
    %0 = vector.load %arg3[%c0, %c0_0] : memref<16x32xf32, #tpu.memory_space<vmem>>, vector<16x32xf32>
    %cst = arith.constant dense<0.000000e+00> : vector<16xf32>
    %1 = vector.multi_reduction <add>, %0, %cst [1] : vector<16x32xf32> to vector<16xf32>
    %2 = vector.shape_cast %1 : vector<16xf32> to vector<16x1xf32>
    %cst_1 = arith.constant 3.200000e+01 : f32
    %3 = vector.broadcast %cst_1 : f32 to vector<16x1xf32>
    %4 = arith.divf %2, %3 : vector<16x1xf32>
    %5 = vector.broadcast %4 : vector<16x1xf32> to vector<16x32xf32>
    %6 = arith.subf %0, %5 : vector<16x32xf32>
    %7 = arith.mulf %6, %6 : vector<16x32xf32>
    %cst_2 = arith.constant dense<0.000000e+00> : vector<16xf32>
    %8 = vector.multi_reduction <add>, %7, %cst_2 [1] : vector<16x32xf32> to vector<16xf32>
    %9 = vector.shape_cast %8 : vector<16xf32> to vector<16x1xf32>
    %cst_3 = arith.constant 3.200000e+01 : f32
    %10 = vector.broadcast %cst_3 : f32 to vector<16x1xf32>
    %11 = arith.divf %9, %10 : vector<16x1xf32>
    %12 = vector.broadcast %4 : vector<16x1xf32> to vector<16x32xf32>
    %13 = arith.subf %0, %12 : vector<16x32xf32>
    %cst_4 = arith.constant 9.99999974E-6 : f32
    %14 = vector.broadcast %cst_4 : f32 to vector<16x1xf32>
    %15 = arith.addf %11, %14 : vector<16x1xf32>
    %16 = math.rsqrt %15 : vector<16x1xf32>
    %17 = vector.broadcast %16 : vector<16x1xf32> to vector<16x32xf32>
    %18 = arith.mulf %13, %17 : vector<16x32xf32>
    %c0_5 = arith.constant 0 : index
    %c0_6 = arith.constant 0 : index
    %19 = vector.load %arg4[%c0_5, %c0_6] : memref<32x256xf32, #tpu.memory_space<vmem>>, vector<32x256xf32>
    %cst_7 = arith.constant dense<0.000000e+00> : vector<16x256xf32>
    %20 = tpu.matmul %18, %19, %cst_7 {dimension_numbers = #tpu.dot_dimension_numbers<[1], [0], [0], [1], [0, 0, 1, 1], [], []>} : vector<16x32xf32>, vector<32x256xf32>, vector<16x256xf32> -> vector<16x256xf32>
    %c0_8 = arith.constant 0 : index
    %c0_9 = arith.constant 0 : index
    %21 = vector.load %arg5[%c0_8, %c0_9] : memref<1x256xf32, #tpu.memory_space<vmem>>, vector<1x256xf32>
    %22 = vector.broadcast %21 : vector<1x256xf32> to vector<16x256xf32>
    %23 = arith.addf %20, %22 : vector<16x256xf32>
    %c0_10 = arith.constant 0 : index
    %c0_11 = arith.constant 0 : index
    %24 = vector.load %arg6[%c0_10, %c0_11] : memref<16x256xf32, #tpu.memory_space<vmem>>, vector<16x256xf32>
    tpu.vector_store %arg6[%c0_10, %c0_11], %23 {strides = array<i32>} : memref<16x256xf32, #tpu.memory_space<vmem>>, vector<16x256xf32>,
    return
  }
  func.func @transform_0(%arg0: i32, %arg1: i32, %arg2: i32) -> (i32, i32) {
    %c0_i32 = arith.constant 0 : i32
    return %arg0, %arg2 : i32, i32
  }
  func.func @transform_1(%arg0: i32, %arg1: i32, %arg2: i32) -> (i32, i32) {
    %c0_i32 = arith.constant 0 : i32
    return %arg2, %arg1 : i32, i32
  }
  func.func @transform_2(%arg0: i32, %arg1: i32, %arg2: i32) -> (i32, i32) {
    %c0_i32 = arith.constant 0 : i32
    %c0_i32_0 = arith.constant 0 : i32
    return %c0_i32, %arg1 : i32, i32
  }
  func.func @transform_3(%arg0: i32, %arg1: i32, %arg2: i32) -> (i32, i32) {
    %c0_i32 = arith.constant 0 : i32
    return %arg0, %arg1 : i32, i32
  }
}

module attributes {stable_mosaic.version = 11 : i64} {
  func.func @_bilstm_kernel(%arg0: i32, %arg1: i32, %arg2: memref<1x1x8x2x128xf32, #tpu.memory_space<vmem>>, %arg3: memref<1x32x128xf32, #tpu.memory_space<vmem>>, %arg4: memref<1x1x2x256xf32, #tpu.memory_space<vmem>>, %arg5: memref<2x32xf32, #tpu.memory_space<vmem>>, %arg6: memref<2x32xf32, #tpu.memory_space<vmem>>) attributes {dimension_semantics = [#tpu.dimension_semantics<parallel>, #tpu.dimension_semantics<arbitrary>], iteration_bounds = array<i64: 2, 1>, scalar_prefetch = 0 : i64, scratch_operands = 2 : i64, tpu.core_type = #tpu.core_type<tc>, window_params = [{transform_indices = @transform_0, window_bounds = array<i64: 1, 1, 8, 2, 128>}, {transform_indices = @transform_1, window_bounds = array<i64: 1, 32, 128>}, {transform_indices = @transform_2, window_bounds = array<i64: 1, 1, 2, 256>}]} {
    %c0_i32 = arith.constant 0 : i32
    %0 = arith.cmpi eq, %arg1, %c0_i32 : i32
    %1 = arith.extui %0 : i1 to i32
    %c0_i32_0 = arith.constant 0 : i32
    %2 = arith.cmpi ne, %1, %c0_i32_0 : i32
    scf.if %2 {
      %cst_100 = arith.constant 0.000000e+00 : f32
      %265 = vector.broadcast %cst_100 : f32 to vector<2x32xf32>
      %c0_101 = arith.constant 0 : index
      %c0_102 = arith.constant 0 : index
      %266 = vector.load %arg5[%c0_101, %c0_102] : memref<2x32xf32, #tpu.memory_space<vmem>>, vector<2x32xf32>
      tpu.vector_store %arg5[%c0_101, %c0_102], %265 {strides = array<i32>} : memref<2x32xf32, #tpu.memory_space<vmem>>, vector<2x32xf32>,
      %cst_103 = arith.constant 0.000000e+00 : f32
      %267 = vector.broadcast %cst_103 : f32 to vector<2x32xf32>
      %c0_104 = arith.constant 0 : index
      %c0_105 = arith.constant 0 : index
      %268 = vector.load %arg6[%c0_104, %c0_105] : memref<2x32xf32, #tpu.memory_space<vmem>>, vector<2x32xf32>
      tpu.vector_store %arg6[%c0_104, %c0_105], %267 {strides = array<i32>} : memref<2x32xf32, #tpu.memory_space<vmem>>, vector<2x32xf32>,
    } else {
    }
    %c0 = arith.constant 0 : index
    %c0_1 = arith.constant 0 : index
    %c0_2 = arith.constant 0 : index
    %3 = vector.load %arg3[%c0, %c0_1, %c0_2] : memref<1x32x128xf32, #tpu.memory_space<vmem>>, vector<1x32x128xf32>
    %4 = vector.shape_cast %3 : vector<1x32x128xf32> to vector<32x128xf32>
    %c0_3 = arith.constant 0 : index
    %c0_4 = arith.constant 0 : index
    %5 = vector.load %arg5[%c0_3, %c0_4] : memref<2x32xf32, #tpu.memory_space<vmem>>, vector<2x32xf32>
    %c0_5 = arith.constant 0 : index
    %c0_6 = arith.constant 0 : index
    %6 = vector.load %arg6[%c0_5, %c0_6] : memref<2x32xf32, #tpu.memory_space<vmem>>, vector<2x32xf32>
    %c0_7 = arith.constant 0 : index
    %c0_8 = arith.constant 0 : index
    %c0_9 = arith.constant 0 : index
    %c0_10 = arith.constant 0 : index
    %c0_11 = arith.constant 0 : index
    %7 = vector.load %arg2[%c0_7, %c0_8, %c0_9, %c0_10, %c0_11] : memref<1x1x8x2x128xf32, #tpu.memory_space<vmem>>, vector<1x1x1x2x128xf32>
    %8 = vector.shape_cast %7 : vector<1x1x1x2x128xf32> to vector<2x128xf32>
    %cst = arith.constant dense<0.000000e+00> : vector<2x128xf32>
    %9 = tpu.matmul %5, %4, %cst {dimension_numbers = #tpu.dot_dimension_numbers<[1], [0], [0], [1], [0, 0, 1, 1], [], []>} : vector<2x32xf32>, vector<32x128xf32>, vector<2x128xf32> -> vector<2x128xf32>
    %10 = arith.addf %8, %9 : vector<2x128xf32>
    %11 = vector.extract_strided_slice %10 {offsets = [0, 0], sizes = [2, 32], strides = [1, 1]} : vector<2x128xf32> to vector<2x32xf32>
    %12 = arith.negf %11 : vector<2x32xf32>
    %13 = math.exp %12 : vector<2x32xf32>
    %cst_12 = arith.constant 1.000000e+00 : f32
    %14 = vector.broadcast %cst_12 : f32 to vector<2x32xf32>
    %15 = arith.addf %14, %13 : vector<2x32xf32>
    %16 = arith.divf %14, %15 : vector<2x32xf32>
    %17 = vector.extract_strided_slice %10 {offsets = [0, 32], sizes = [2, 32], strides = [1, 1]} : vector<2x128xf32> to vector<2x32xf32>
    %18 = arith.negf %17 : vector<2x32xf32>
    %19 = math.exp %18 : vector<2x32xf32>
    %cst_13 = arith.constant 1.000000e+00 : f32
    %20 = vector.broadcast %cst_13 : f32 to vector<2x32xf32>
    %21 = arith.addf %20, %19 : vector<2x32xf32>
    %22 = arith.divf %20, %21 : vector<2x32xf32>
    %23 = vector.extract_strided_slice %10 {offsets = [0, 64], sizes = [2, 32], strides = [1, 1]} : vector<2x128xf32> to vector<2x32xf32>
    %24 = math.tanh %23 : vector<2x32xf32>
    %25 = vector.extract_strided_slice %10 {offsets = [0, 96], sizes = [2, 32], strides = [1, 1]} : vector<2x128xf32> to vector<2x32xf32>
    %26 = arith.negf %25 : vector<2x32xf32>
    %27 = math.exp %26 : vector<2x32xf32>
    %cst_14 = arith.constant 1.000000e+00 : f32
    %28 = vector.broadcast %cst_14 : f32 to vector<2x32xf32>
    %29 = arith.addf %28, %27 : vector<2x32xf32>
    %30 = arith.divf %28, %29 : vector<2x32xf32>
    %31 = arith.mulf %22, %6 : vector<2x32xf32>
    %32 = arith.mulf %16, %24 : vector<2x32xf32>
    %33 = arith.addf %31, %32 : vector<2x32xf32>
    %34 = math.tanh %33 : vector<2x32xf32>
    %35 = arith.mulf %30, %34 : vector<2x32xf32>
    %c0_15 = arith.constant 0 : index
    %c0_16 = arith.constant 0 : index
    %c0_17 = arith.constant 0 : index
    %c0_18 = arith.constant 0 : index
    %36 = vector.load %arg4[%c0_15, %c0_16, %c0_17, %c0_18] : memref<1x1x2x256xf32, #tpu.memory_space<vmem>>, vector<1x1x2x32xf32>
    %37 = vector.shape_cast %36 : vector<1x1x2x32xf32> to vector<2x32xf32>
    %38 = vector.shape_cast %35 : vector<2x32xf32> to vector<1x1x2x32xf32>
    tpu.vector_store %arg4[%c0_15, %c0_16, %c0_17, %c0_18], %38 {strides = array<i32>} : memref<1x1x2x256xf32, #tpu.memory_space<vmem>>, vector<1x1x2x32xf32>,
    %c0_19 = arith.constant 0 : index
    %c0_20 = arith.constant 0 : index
    %c1 = arith.constant 1 : index
    %c0_21 = arith.constant 0 : index
    %c0_22 = arith.constant 0 : index
    %39 = vector.load %arg2[%c0_19, %c0_20, %c1, %c0_21, %c0_22] : memref<1x1x8x2x128xf32, #tpu.memory_space<vmem>>, vector<1x1x1x2x128xf32>
    %40 = vector.shape_cast %39 : vector<1x1x1x2x128xf32> to vector<2x128xf32>
    %cst_23 = arith.constant dense<0.000000e+00> : vector<2x128xf32>
    %41 = tpu.matmul %35, %4, %cst_23 {dimension_numbers = #tpu.dot_dimension_numbers<[1], [0], [0], [1], [0, 0, 1, 1], [], []>} : vector<2x32xf32>, vector<32x128xf32>, vector<2x128xf32> -> vector<2x128xf32>
    %42 = arith.addf %40, %41 : vector<2x128xf32>
    %43 = vector.extract_strided_slice %42 {offsets = [0, 0], sizes = [2, 32], strides = [1, 1]} : vector<2x128xf32> to vector<2x32xf32>
    %44 = arith.negf %43 : vector<2x32xf32>
    %45 = math.exp %44 : vector<2x32xf32>
    %cst_24 = arith.constant 1.000000e+00 : f32
    %46 = vector.broadcast %cst_24 : f32 to vector<2x32xf32>
    %47 = arith.addf %46, %45 : vector<2x32xf32>
    %48 = arith.divf %46, %47 : vector<2x32xf32>
    %49 = vector.extract_strided_slice %42 {offsets = [0, 32], sizes = [2, 32], strides = [1, 1]} : vector<2x128xf32> to vector<2x32xf32>
    %50 = arith.negf %49 : vector<2x32xf32>
    %51 = math.exp %50 : vector<2x32xf32>
    %cst_25 = arith.constant 1.000000e+00 : f32
    %52 = vector.broadcast %cst_25 : f32 to vector<2x32xf32>
    %53 = arith.addf %52, %51 : vector<2x32xf32>
    %54 = arith.divf %52, %53 : vector<2x32xf32>
    %55 = vector.extract_strided_slice %42 {offsets = [0, 64], sizes = [2, 32], strides = [1, 1]} : vector<2x128xf32> to vector<2x32xf32>
    %56 = math.tanh %55 : vector<2x32xf32>
    %57 = vector.extract_strided_slice %42 {offsets = [0, 96], sizes = [2, 32], strides = [1, 1]} : vector<2x128xf32> to vector<2x32xf32>
    %58 = arith.negf %57 : vector<2x32xf32>
    %59 = math.exp %58 : vector<2x32xf32>
    %cst_26 = arith.constant 1.000000e+00 : f32
    %60 = vector.broadcast %cst_26 : f32 to vector<2x32xf32>
    %61 = arith.addf %60, %59 : vector<2x32xf32>
    %62 = arith.divf %60, %61 : vector<2x32xf32>
    %63 = arith.mulf %54, %33 : vector<2x32xf32>
    %64 = arith.mulf %48, %56 : vector<2x32xf32>
    %65 = arith.addf %63, %64 : vector<2x32xf32>
    %66 = math.tanh %65 : vector<2x32xf32>
    %67 = arith.mulf %62, %66 : vector<2x32xf32>
    %c0_27 = arith.constant 0 : index
    %c0_28 = arith.constant 0 : index
    %c0_29 = arith.constant 0 : index
    %c32 = arith.constant 32 : index
    %68 = vector.load %arg4[%c0_27, %c0_28, %c0_29, %c32] : memref<1x1x2x256xf32, #tpu.memory_space<vmem>>, vector<1x1x2x32xf32>
    %69 = vector.shape_cast %68 : vector<1x1x2x32xf32> to vector<2x32xf32>
    %70 = vector.shape_cast %67 : vector<2x32xf32> to vector<1x1x2x32xf32>
    tpu.vector_store %arg4[%c0_27, %c0_28, %c0_29, %c32], %70 {strides = array<i32>} : memref<1x1x2x256xf32, #tpu.memory_space<vmem>>, vector<1x1x2x32xf32>,
    %c0_30 = arith.constant 0 : index
    %c0_31 = arith.constant 0 : index
    %c2 = arith.constant 2 : index
    %c0_32 = arith.constant 0 : index
    %c0_33 = arith.constant 0 : index
    %71 = vector.load %arg2[%c0_30, %c0_31, %c2, %c0_32, %c0_33] : memref<1x1x8x2x128xf32, #tpu.memory_space<vmem>>, vector<1x1x1x2x128xf32>
    %72 = vector.shape_cast %71 : vector<1x1x1x2x128xf32> to vector<2x128xf32>
    %cst_34 = arith.constant dense<0.000000e+00> : vector<2x128xf32>
    %73 = tpu.matmul %67, %4, %cst_34 {dimension_numbers = #tpu.dot_dimension_numbers<[1], [0], [0], [1], [0, 0, 1, 1], [], []>} : vector<2x32xf32>, vector<32x128xf32>, vector<2x128xf32> -> vector<2x128xf32>
    %74 = arith.addf %72, %73 : vector<2x128xf32>
    %75 = vector.extract_strided_slice %74 {offsets = [0, 0], sizes = [2, 32], strides = [1, 1]} : vector<2x128xf32> to vector<2x32xf32>
    %76 = arith.negf %75 : vector<2x32xf32>
    %77 = math.exp %76 : vector<2x32xf32>
    %cst_35 = arith.constant 1.000000e+00 : f32
    %78 = vector.broadcast %cst_35 : f32 to vector<2x32xf32>
    %79 = arith.addf %78, %77 : vector<2x32xf32>
    %80 = arith.divf %78, %79 : vector<2x32xf32>
    %81 = vector.extract_strided_slice %74 {offsets = [0, 32], sizes = [2, 32], strides = [1, 1]} : vector<2x128xf32> to vector<2x32xf32>
    %82 = arith.negf %81 : vector<2x32xf32>
    %83 = math.exp %82 : vector<2x32xf32>
    %cst_36 = arith.constant 1.000000e+00 : f32
    %84 = vector.broadcast %cst_36 : f32 to vector<2x32xf32>
    %85 = arith.addf %84, %83 : vector<2x32xf32>
    %86 = arith.divf %84, %85 : vector<2x32xf32>
    %87 = vector.extract_strided_slice %74 {offsets = [0, 64], sizes = [2, 32], strides = [1, 1]} : vector<2x128xf32> to vector<2x32xf32>
    %88 = math.tanh %87 : vector<2x32xf32>
    %89 = vector.extract_strided_slice %74 {offsets = [0, 96], sizes = [2, 32], strides = [1, 1]} : vector<2x128xf32> to vector<2x32xf32>
    %90 = arith.negf %89 : vector<2x32xf32>
    %91 = math.exp %90 : vector<2x32xf32>
    %cst_37 = arith.constant 1.000000e+00 : f32
    %92 = vector.broadcast %cst_37 : f32 to vector<2x32xf32>
    %93 = arith.addf %92, %91 : vector<2x32xf32>
    %94 = arith.divf %92, %93 : vector<2x32xf32>
    %95 = arith.mulf %86, %65 : vector<2x32xf32>
    %96 = arith.mulf %80, %88 : vector<2x32xf32>
    %97 = arith.addf %95, %96 : vector<2x32xf32>
    %98 = math.tanh %97 : vector<2x32xf32>
    %99 = arith.mulf %94, %98 : vector<2x32xf32>
    %c0_38 = arith.constant 0 : index
    %c0_39 = arith.constant 0 : index
    %c0_40 = arith.constant 0 : index
    %c64 = arith.constant 64 : index
    %100 = vector.load %arg4[%c0_38, %c0_39, %c0_40, %c64] : memref<1x1x2x256xf32, #tpu.memory_space<vmem>>, vector<1x1x2x32xf32>
    %101 = vector.shape_cast %100 : vector<1x1x2x32xf32> to vector<2x32xf32>
    %102 = vector.shape_cast %99 : vector<2x32xf32> to vector<1x1x2x32xf32>
    tpu.vector_store %arg4[%c0_38, %c0_39, %c0_40, %c64], %102 {strides = array<i32>} : memref<1x1x2x256xf32, #tpu.memory_space<vmem>>, vector<1x1x2x32xf32>,
    %c0_41 = arith.constant 0 : index
    %c0_42 = arith.constant 0 : index
    %c3 = arith.constant 3 : index
    %c0_43 = arith.constant 0 : index
    %c0_44 = arith.constant 0 : index
    %103 = vector.load %arg2[%c0_41, %c0_42, %c3, %c0_43, %c0_44] : memref<1x1x8x2x128xf32, #tpu.memory_space<vmem>>, vector<1x1x1x2x128xf32>
    %104 = vector.shape_cast %103 : vector<1x1x1x2x128xf32> to vector<2x128xf32>
    %cst_45 = arith.constant dense<0.000000e+00> : vector<2x128xf32>
    %105 = tpu.matmul %99, %4, %cst_45 {dimension_numbers = #tpu.dot_dimension_numbers<[1], [0], [0], [1], [0, 0, 1, 1], [], []>} : vector<2x32xf32>, vector<32x128xf32>, vector<2x128xf32> -> vector<2x128xf32>
    %106 = arith.addf %104, %105 : vector<2x128xf32>
    %107 = vector.extract_strided_slice %106 {offsets = [0, 0], sizes = [2, 32], strides = [1, 1]} : vector<2x128xf32> to vector<2x32xf32>
    %108 = arith.negf %107 : vector<2x32xf32>
    %109 = math.exp %108 : vector<2x32xf32>
    %cst_46 = arith.constant 1.000000e+00 : f32
    %110 = vector.broadcast %cst_46 : f32 to vector<2x32xf32>
    %111 = arith.addf %110, %109 : vector<2x32xf32>
    %112 = arith.divf %110, %111 : vector<2x32xf32>
    %113 = vector.extract_strided_slice %106 {offsets = [0, 32], sizes = [2, 32], strides = [1, 1]} : vector<2x128xf32> to vector<2x32xf32>
    %114 = arith.negf %113 : vector<2x32xf32>
    %115 = math.exp %114 : vector<2x32xf32>
    %cst_47 = arith.constant 1.000000e+00 : f32
    %116 = vector.broadcast %cst_47 : f32 to vector<2x32xf32>
    %117 = arith.addf %116, %115 : vector<2x32xf32>
    %118 = arith.divf %116, %117 : vector<2x32xf32>
    %119 = vector.extract_strided_slice %106 {offsets = [0, 64], sizes = [2, 32], strides = [1, 1]} : vector<2x128xf32> to vector<2x32xf32>
    %120 = math.tanh %119 : vector<2x32xf32>
    %121 = vector.extract_strided_slice %106 {offsets = [0, 96], sizes = [2, 32], strides = [1, 1]} : vector<2x128xf32> to vector<2x32xf32>
    %122 = arith.negf %121 : vector<2x32xf32>
    %123 = math.exp %122 : vector<2x32xf32>
    %cst_48 = arith.constant 1.000000e+00 : f32
    %124 = vector.broadcast %cst_48 : f32 to vector<2x32xf32>
    %125 = arith.addf %124, %123 : vector<2x32xf32>
    %126 = arith.divf %124, %125 : vector<2x32xf32>
    %127 = arith.mulf %118, %97 : vector<2x32xf32>
    %128 = arith.mulf %112, %120 : vector<2x32xf32>
    %129 = arith.addf %127, %128 : vector<2x32xf32>
    %130 = math.tanh %129 : vector<2x32xf32>
    %131 = arith.mulf %126, %130 : vector<2x32xf32>
    %c0_49 = arith.constant 0 : index
    %c0_50 = arith.constant 0 : index
    %c0_51 = arith.constant 0 : index
    %c96 = arith.constant 96 : index
    %132 = vector.load %arg4[%c0_49, %c0_50, %c0_51, %c96] : memref<1x1x2x256xf32, #tpu.memory_space<vmem>>, vector<1x1x2x32xf32>
    %133 = vector.shape_cast %132 : vector<1x1x2x32xf32> to vector<2x32xf32>
    %134 = vector.shape_cast %131 : vector<2x32xf32> to vector<1x1x2x32xf32>
    tpu.vector_store %arg4[%c0_49, %c0_50, %c0_51, %c96], %134 {strides = array<i32>} : memref<1x1x2x256xf32, #tpu.memory_space<vmem>>, vector<1x1x2x32xf32>,
    %c0_52 = arith.constant 0 : index
    %c0_53 = arith.constant 0 : index
    %c4 = arith.constant 4 : index
    %c0_54 = arith.constant 0 : index
    %c0_55 = arith.constant 0 : index
    %135 = vector.load %arg2[%c0_52, %c0_53, %c4, %c0_54, %c0_55] : memref<1x1x8x2x128xf32, #tpu.memory_space<vmem>>, vector<1x1x1x2x128xf32>
    %136 = vector.shape_cast %135 : vector<1x1x1x2x128xf32> to vector<2x128xf32>
    %cst_56 = arith.constant dense<0.000000e+00> : vector<2x128xf32>
    %137 = tpu.matmul %131, %4, %cst_56 {dimension_numbers = #tpu.dot_dimension_numbers<[1], [0], [0], [1], [0, 0, 1, 1], [], []>} : vector<2x32xf32>, vector<32x128xf32>, vector<2x128xf32> -> vector<2x128xf32>
    %138 = arith.addf %136, %137 : vector<2x128xf32>
    %139 = vector.extract_strided_slice %138 {offsets = [0, 0], sizes = [2, 32], strides = [1, 1]} : vector<2x128xf32> to vector<2x32xf32>
    %140 = arith.negf %139 : vector<2x32xf32>
    %141 = math.exp %140 : vector<2x32xf32>
    %cst_57 = arith.constant 1.000000e+00 : f32
    %142 = vector.broadcast %cst_57 : f32 to vector<2x32xf32>
    %143 = arith.addf %142, %141 : vector<2x32xf32>
    %144 = arith.divf %142, %143 : vector<2x32xf32>
    %145 = vector.extract_strided_slice %138 {offsets = [0, 32], sizes = [2, 32], strides = [1, 1]} : vector<2x128xf32> to vector<2x32xf32>
    %146 = arith.negf %145 : vector<2x32xf32>
    %147 = math.exp %146 : vector<2x32xf32>
    %cst_58 = arith.constant 1.000000e+00 : f32
    %148 = vector.broadcast %cst_58 : f32 to vector<2x32xf32>
    %149 = arith.addf %148, %147 : vector<2x32xf32>
    %150 = arith.divf %148, %149 : vector<2x32xf32>
    %151 = vector.extract_strided_slice %138 {offsets = [0, 64], sizes = [2, 32], strides = [1, 1]} : vector<2x128xf32> to vector<2x32xf32>
    %152 = math.tanh %151 : vector<2x32xf32>
    %153 = vector.extract_strided_slice %138 {offsets = [0, 96], sizes = [2, 32], strides = [1, 1]} : vector<2x128xf32> to vector<2x32xf32>
    %154 = arith.negf %153 : vector<2x32xf32>
    %155 = math.exp %154 : vector<2x32xf32>
    %cst_59 = arith.constant 1.000000e+00 : f32
    %156 = vector.broadcast %cst_59 : f32 to vector<2x32xf32>
    %157 = arith.addf %156, %155 : vector<2x32xf32>
    %158 = arith.divf %156, %157 : vector<2x32xf32>
    %159 = arith.mulf %150, %129 : vector<2x32xf32>
    %160 = arith.mulf %144, %152 : vector<2x32xf32>
    %161 = arith.addf %159, %160 : vector<2x32xf32>
    %162 = math.tanh %161 : vector<2x32xf32>
    %163 = arith.mulf %158, %162 : vector<2x32xf32>
    %c0_60 = arith.constant 0 : index
    %c0_61 = arith.constant 0 : index
    %c0_62 = arith.constant 0 : index
    %c128 = arith.constant 128 : index
    %164 = vector.load %arg4[%c0_60, %c0_61, %c0_62, %c128] : memref<1x1x2x256xf32, #tpu.memory_space<vmem>>, vector<1x1x2x32xf32>
    %165 = vector.shape_cast %164 : vector<1x1x2x32xf32> to vector<2x32xf32>
    %166 = vector.shape_cast %163 : vector<2x32xf32> to vector<1x1x2x32xf32>
    tpu.vector_store %arg4[%c0_60, %c0_61, %c0_62, %c128], %166 {strides = array<i32>} : memref<1x1x2x256xf32, #tpu.memory_space<vmem>>, vector<1x1x2x32xf32>,
    %c0_63 = arith.constant 0 : index
    %c0_64 = arith.constant 0 : index
    %c5 = arith.constant 5 : index
    %c0_65 = arith.constant 0 : index
    %c0_66 = arith.constant 0 : index
    %167 = vector.load %arg2[%c0_63, %c0_64, %c5, %c0_65, %c0_66] : memref<1x1x8x2x128xf32, #tpu.memory_space<vmem>>, vector<1x1x1x2x128xf32>
    %168 = vector.shape_cast %167 : vector<1x1x1x2x128xf32> to vector<2x128xf32>
    %cst_67 = arith.constant dense<0.000000e+00> : vector<2x128xf32>
    %169 = tpu.matmul %163, %4, %cst_67 {dimension_numbers = #tpu.dot_dimension_numbers<[1], [0], [0], [1], [0, 0, 1, 1], [], []>} : vector<2x32xf32>, vector<32x128xf32>, vector<2x128xf32> -> vector<2x128xf32>
    %170 = arith.addf %168, %169 : vector<2x128xf32>
    %171 = vector.extract_strided_slice %170 {offsets = [0, 0], sizes = [2, 32], strides = [1, 1]} : vector<2x128xf32> to vector<2x32xf32>
    %172 = arith.negf %171 : vector<2x32xf32>
    %173 = math.exp %172 : vector<2x32xf32>
    %cst_68 = arith.constant 1.000000e+00 : f32
    %174 = vector.broadcast %cst_68 : f32 to vector<2x32xf32>
    %175 = arith.addf %174, %173 : vector<2x32xf32>
    %176 = arith.divf %174, %175 : vector<2x32xf32>
    %177 = vector.extract_strided_slice %170 {offsets = [0, 32], sizes = [2, 32], strides = [1, 1]} : vector<2x128xf32> to vector<2x32xf32>
    %178 = arith.negf %177 : vector<2x32xf32>
    %179 = math.exp %178 : vector<2x32xf32>
    %cst_69 = arith.constant 1.000000e+00 : f32
    %180 = vector.broadcast %cst_69 : f32 to vector<2x32xf32>
    %181 = arith.addf %180, %179 : vector<2x32xf32>
    %182 = arith.divf %180, %181 : vector<2x32xf32>
    %183 = vector.extract_strided_slice %170 {offsets = [0, 64], sizes = [2, 32], strides = [1, 1]} : vector<2x128xf32> to vector<2x32xf32>
    %184 = math.tanh %183 : vector<2x32xf32>
    %185 = vector.extract_strided_slice %170 {offsets = [0, 96], sizes = [2, 32], strides = [1, 1]} : vector<2x128xf32> to vector<2x32xf32>
    %186 = arith.negf %185 : vector<2x32xf32>
    %187 = math.exp %186 : vector<2x32xf32>
    %cst_70 = arith.constant 1.000000e+00 : f32
    %188 = vector.broadcast %cst_70 : f32 to vector<2x32xf32>
    %189 = arith.addf %188, %187 : vector<2x32xf32>
    %190 = arith.divf %188, %189 : vector<2x32xf32>
    %191 = arith.mulf %182, %161 : vector<2x32xf32>
    %192 = arith.mulf %176, %184 : vector<2x32xf32>
    %193 = arith.addf %191, %192 : vector<2x32xf32>
    %194 = math.tanh %193 : vector<2x32xf32>
    %195 = arith.mulf %190, %194 : vector<2x32xf32>
    %c0_71 = arith.constant 0 : index
    %c0_72 = arith.constant 0 : index
    %c0_73 = arith.constant 0 : index
    %c160 = arith.constant 160 : index
    %196 = vector.load %arg4[%c0_71, %c0_72, %c0_73, %c160] : memref<1x1x2x256xf32, #tpu.memory_space<vmem>>, vector<1x1x2x32xf32>
    %197 = vector.shape_cast %196 : vector<1x1x2x32xf32> to vector<2x32xf32>
    %198 = vector.shape_cast %195 : vector<2x32xf32> to vector<1x1x2x32xf32>
    tpu.vector_store %arg4[%c0_71, %c0_72, %c0_73, %c160], %198 {strides = array<i32>} : memref<1x1x2x256xf32, #tpu.memory_space<vmem>>, vector<1x1x2x32xf32>,
    %c0_74 = arith.constant 0 : index
    %c0_75 = arith.constant 0 : index
    %c6 = arith.constant 6 : index
    %c0_76 = arith.constant 0 : index
    %c0_77 = arith.constant 0 : index
    %199 = vector.load %arg2[%c0_74, %c0_75, %c6, %c0_76, %c0_77] : memref<1x1x8x2x128xf32, #tpu.memory_space<vmem>>, vector<1x1x1x2x128xf32>
    %200 = vector.shape_cast %199 : vector<1x1x1x2x128xf32> to vector<2x128xf32>
    %cst_78 = arith.constant dense<0.000000e+00> : vector<2x128xf32>
    %201 = tpu.matmul %195, %4, %cst_78 {dimension_numbers = #tpu.dot_dimension_numbers<[1], [0], [0], [1], [0, 0, 1, 1], [], []>} : vector<2x32xf32>, vector<32x128xf32>, vector<2x128xf32> -> vector<2x128xf32>
    %202 = arith.addf %200, %201 : vector<2x128xf32>
    %203 = vector.extract_strided_slice %202 {offsets = [0, 0], sizes = [2, 32], strides = [1, 1]} : vector<2x128xf32> to vector<2x32xf32>
    %204 = arith.negf %203 : vector<2x32xf32>
    %205 = math.exp %204 : vector<2x32xf32>
    %cst_79 = arith.constant 1.000000e+00 : f32
    %206 = vector.broadcast %cst_79 : f32 to vector<2x32xf32>
    %207 = arith.addf %206, %205 : vector<2x32xf32>
    %208 = arith.divf %206, %207 : vector<2x32xf32>
    %209 = vector.extract_strided_slice %202 {offsets = [0, 32], sizes = [2, 32], strides = [1, 1]} : vector<2x128xf32> to vector<2x32xf32>
    %210 = arith.negf %209 : vector<2x32xf32>
    %211 = math.exp %210 : vector<2x32xf32>
    %cst_80 = arith.constant 1.000000e+00 : f32
    %212 = vector.broadcast %cst_80 : f32 to vector<2x32xf32>
    %213 = arith.addf %212, %211 : vector<2x32xf32>
    %214 = arith.divf %212, %213 : vector<2x32xf32>
    %215 = vector.extract_strided_slice %202 {offsets = [0, 64], sizes = [2, 32], strides = [1, 1]} : vector<2x128xf32> to vector<2x32xf32>
    %216 = math.tanh %215 : vector<2x32xf32>
    %217 = vector.extract_strided_slice %202 {offsets = [0, 96], sizes = [2, 32], strides = [1, 1]} : vector<2x128xf32> to vector<2x32xf32>
    %218 = arith.negf %217 : vector<2x32xf32>
    %219 = math.exp %218 : vector<2x32xf32>
    %cst_81 = arith.constant 1.000000e+00 : f32
    %220 = vector.broadcast %cst_81 : f32 to vector<2x32xf32>
    %221 = arith.addf %220, %219 : vector<2x32xf32>
    %222 = arith.divf %220, %221 : vector<2x32xf32>
    %223 = arith.mulf %214, %193 : vector<2x32xf32>
    %224 = arith.mulf %208, %216 : vector<2x32xf32>
    %225 = arith.addf %223, %224 : vector<2x32xf32>
    %226 = math.tanh %225 : vector<2x32xf32>
    %227 = arith.mulf %222, %226 : vector<2x32xf32>
    %c0_82 = arith.constant 0 : index
    %c0_83 = arith.constant 0 : index
    %c0_84 = arith.constant 0 : index
    %c192 = arith.constant 192 : index
    %228 = vector.load %arg4[%c0_82, %c0_83, %c0_84, %c192] : memref<1x1x2x256xf32, #tpu.memory_space<vmem>>, vector<1x1x2x32xf32>
    %229 = vector.shape_cast %228 : vector<1x1x2x32xf32> to vector<2x32xf32>
    %230 = vector.shape_cast %227 : vector<2x32xf32> to vector<1x1x2x32xf32>
    tpu.vector_store %arg4[%c0_82, %c0_83, %c0_84, %c192], %230 {strides = array<i32>} : memref<1x1x2x256xf32, #tpu.memory_space<vmem>>, vector<1x1x2x32xf32>,
    %c0_85 = arith.constant 0 : index
    %c0_86 = arith.constant 0 : index
    %c7 = arith.constant 7 : index
    %c0_87 = arith.constant 0 : index
    %c0_88 = arith.constant 0 : index
    %231 = vector.load %arg2[%c0_85, %c0_86, %c7, %c0_87, %c0_88] : memref<1x1x8x2x128xf32, #tpu.memory_space<vmem>>, vector<1x1x1x2x128xf32>
    %232 = vector.shape_cast %231 : vector<1x1x1x2x128xf32> to vector<2x128xf32>
    %cst_89 = arith.constant dense<0.000000e+00> : vector<2x128xf32>
    %233 = tpu.matmul %227, %4, %cst_89 {dimension_numbers = #tpu.dot_dimension_numbers<[1], [0], [0], [1], [0, 0, 1, 1], [], []>} : vector<2x32xf32>, vector<32x128xf32>, vector<2x128xf32> -> vector<2x128xf32>
    %234 = arith.addf %232, %233 : vector<2x128xf32>
    %235 = vector.extract_strided_slice %234 {offsets = [0, 0], sizes = [2, 32], strides = [1, 1]} : vector<2x128xf32> to vector<2x32xf32>
    %236 = arith.negf %235 : vector<2x32xf32>
    %237 = math.exp %236 : vector<2x32xf32>
    %cst_90 = arith.constant 1.000000e+00 : f32
    %238 = vector.broadcast %cst_90 : f32 to vector<2x32xf32>
    %239 = arith.addf %238, %237 : vector<2x32xf32>
    %240 = arith.divf %238, %239 : vector<2x32xf32>
    %241 = vector.extract_strided_slice %234 {offsets = [0, 32], sizes = [2, 32], strides = [1, 1]} : vector<2x128xf32> to vector<2x32xf32>
    %242 = arith.negf %241 : vector<2x32xf32>
    %243 = math.exp %242 : vector<2x32xf32>
    %cst_91 = arith.constant 1.000000e+00 : f32
    %244 = vector.broadcast %cst_91 : f32 to vector<2x32xf32>
    %245 = arith.addf %244, %243 : vector<2x32xf32>
    %246 = arith.divf %244, %245 : vector<2x32xf32>
    %247 = vector.extract_strided_slice %234 {offsets = [0, 64], sizes = [2, 32], strides = [1, 1]} : vector<2x128xf32> to vector<2x32xf32>
    %248 = math.tanh %247 : vector<2x32xf32>
    %249 = vector.extract_strided_slice %234 {offsets = [0, 96], sizes = [2, 32], strides = [1, 1]} : vector<2x128xf32> to vector<2x32xf32>
    %250 = arith.negf %249 : vector<2x32xf32>
    %251 = math.exp %250 : vector<2x32xf32>
    %cst_92 = arith.constant 1.000000e+00 : f32
    %252 = vector.broadcast %cst_92 : f32 to vector<2x32xf32>
    %253 = arith.addf %252, %251 : vector<2x32xf32>
    %254 = arith.divf %252, %253 : vector<2x32xf32>
    %255 = arith.mulf %246, %225 : vector<2x32xf32>
    %256 = arith.mulf %240, %248 : vector<2x32xf32>
    %257 = arith.addf %255, %256 : vector<2x32xf32>
    %258 = math.tanh %257 : vector<2x32xf32>
    %259 = arith.mulf %254, %258 : vector<2x32xf32>
    %c0_93 = arith.constant 0 : index
    %c0_94 = arith.constant 0 : index
    %c0_95 = arith.constant 0 : index
    %c224 = arith.constant 224 : index
    %260 = vector.load %arg4[%c0_93, %c0_94, %c0_95, %c224] : memref<1x1x2x256xf32, #tpu.memory_space<vmem>>, vector<1x1x2x32xf32>
    %261 = vector.shape_cast %260 : vector<1x1x2x32xf32> to vector<2x32xf32>
    %262 = vector.shape_cast %259 : vector<2x32xf32> to vector<1x1x2x32xf32>
    tpu.vector_store %arg4[%c0_93, %c0_94, %c0_95, %c224], %262 {strides = array<i32>} : memref<1x1x2x256xf32, #tpu.memory_space<vmem>>, vector<1x1x2x32xf32>,
    %c0_96 = arith.constant 0 : index
    %c0_97 = arith.constant 0 : index
    %263 = vector.load %arg5[%c0_96, %c0_97] : memref<2x32xf32, #tpu.memory_space<vmem>>, vector<2x32xf32>
    tpu.vector_store %arg5[%c0_96, %c0_97], %259 {strides = array<i32>} : memref<2x32xf32, #tpu.memory_space<vmem>>, vector<2x32xf32>,
    %c0_98 = arith.constant 0 : index
    %c0_99 = arith.constant 0 : index
    %264 = vector.load %arg6[%c0_98, %c0_99] : memref<2x32xf32, #tpu.memory_space<vmem>>, vector<2x32xf32>
    tpu.vector_store %arg6[%c0_98, %c0_99], %257 {strides = array<i32>} : memref<2x32xf32, #tpu.memory_space<vmem>>, vector<2x32xf32>,
    return
  }
  func.func @transform_0(%arg0: i32, %arg1: i32) -> (i32, i32, i32, i32, i32) {
    %c0_i32 = arith.constant 0 : i32
    %c0_i32_0 = arith.constant 0 : i32
    %c0_i32_1 = arith.constant 0 : i32
    %c0_i32_2 = arith.constant 0 : i32
    return %arg0, %arg1, %c0_i32, %c0_i32_0, %c0_i32_1 : i32, i32, i32, i32, i32
  }
  func.func @transform_1(%arg0: i32, %arg1: i32) -> (i32, i32, i32) {
    %c0_i32 = arith.constant 0 : i32
    %c0_i32_0 = arith.constant 0 : i32
    %c0_i32_1 = arith.constant 0 : i32
    return %arg0, %c0_i32, %c0_i32_0 : i32, i32, i32
  }
  func.func @transform_2(%arg0: i32, %arg1: i32) -> (i32, i32, i32, i32) {
    %c0_i32 = arith.constant 0 : i32
    %c0_i32_0 = arith.constant 0 : i32
    %c0_i32_1 = arith.constant 0 : i32
    return %arg0, %arg1, %c0_i32, %c0_i32_0 : i32, i32, i32, i32
  }
}

module attributes {stable_mosaic.version = 11 : i64} {
  func.func @_matmul_kernel(%arg0: i32, %arg1: i32, %arg2: i32, %arg3: memref<16x32xf32, #tpu.memory_space<vmem>>, %arg4: memref<32x64xf32, #tpu.memory_space<vmem>>, %arg5: memref<1x64xf32, #tpu.memory_space<vmem>>, %arg6: memref<16x64xf32, #tpu.memory_space<vmem>>, %arg7: memref<16x64xf32, #tpu.memory_space<vmem>>) attributes {dimension_semantics = [#tpu.dimension_semantics<parallel>, #tpu.dimension_semantics<parallel>, #tpu.dimension_semantics<arbitrary>], iteration_bounds = array<i64: 1, 1, 1>, scalar_prefetch = 0 : i64, scratch_operands = 1 : i64, tpu.core_type = #tpu.core_type<tc>, window_params = [{transform_indices = @transform_0, window_bounds = array<i64: 16, 32>}, {transform_indices = @transform_1, window_bounds = array<i64: 32, 64>}, {transform_indices = @transform_2, window_bounds = array<i64: 1, 64>}, {transform_indices = @transform_3, window_bounds = array<i64: 16, 64>}]} {
    %c0 = arith.constant 0 : index
    %c0_0 = arith.constant 0 : index
    %0 = vector.load %arg3[%c0, %c0_0] : memref<16x32xf32, #tpu.memory_space<vmem>>, vector<16x32xf32>
    %cst = arith.constant dense<0.000000e+00> : vector<16xf32>
    %1 = vector.multi_reduction <add>, %0, %cst [1] : vector<16x32xf32> to vector<16xf32>
    %2 = vector.shape_cast %1 : vector<16xf32> to vector<16x1xf32>
    %cst_1 = arith.constant 3.200000e+01 : f32
    %3 = vector.broadcast %cst_1 : f32 to vector<16x1xf32>
    %4 = arith.divf %2, %3 : vector<16x1xf32>
    %5 = vector.broadcast %4 : vector<16x1xf32> to vector<16x32xf32>
    %6 = arith.subf %0, %5 : vector<16x32xf32>
    %7 = arith.mulf %6, %6 : vector<16x32xf32>
    %cst_2 = arith.constant dense<0.000000e+00> : vector<16xf32>
    %8 = vector.multi_reduction <add>, %7, %cst_2 [1] : vector<16x32xf32> to vector<16xf32>
    %9 = vector.shape_cast %8 : vector<16xf32> to vector<16x1xf32>
    %cst_3 = arith.constant 3.200000e+01 : f32
    %10 = vector.broadcast %cst_3 : f32 to vector<16x1xf32>
    %11 = arith.divf %9, %10 : vector<16x1xf32>
    %12 = vector.broadcast %4 : vector<16x1xf32> to vector<16x32xf32>
    %13 = arith.subf %0, %12 : vector<16x32xf32>
    %cst_4 = arith.constant 9.99999974E-6 : f32
    %14 = vector.broadcast %cst_4 : f32 to vector<16x1xf32>
    %15 = arith.addf %11, %14 : vector<16x1xf32>
    %16 = math.rsqrt %15 : vector<16x1xf32>
    %17 = vector.broadcast %16 : vector<16x1xf32> to vector<16x32xf32>
    %18 = arith.mulf %13, %17 : vector<16x32xf32>
    %c0_5 = arith.constant 0 : index
    %c0_6 = arith.constant 0 : index
    %19 = vector.load %arg4[%c0_5, %c0_6] : memref<32x64xf32, #tpu.memory_space<vmem>>, vector<32x64xf32>
    %cst_7 = arith.constant dense<0.000000e+00> : vector<16x64xf32>
    %20 = tpu.matmul %18, %19, %cst_7 {dimension_numbers = #tpu.dot_dimension_numbers<[1], [0], [0], [1], [0, 0, 1, 1], [], []>} : vector<16x32xf32>, vector<32x64xf32>, vector<16x64xf32> -> vector<16x64xf32>
    %c0_8 = arith.constant 0 : index
    %c0_9 = arith.constant 0 : index
    %21 = vector.load %arg5[%c0_8, %c0_9] : memref<1x64xf32, #tpu.memory_space<vmem>>, vector<1x64xf32>
    %22 = vector.broadcast %21 : vector<1x64xf32> to vector<16x64xf32>
    %23 = arith.addf %20, %22 : vector<16x64xf32>
    %c0_10 = arith.constant 0 : index
    %c0_11 = arith.constant 0 : index
    %24 = vector.load %arg6[%c0_10, %c0_11] : memref<16x64xf32, #tpu.memory_space<vmem>>, vector<16x64xf32>
    tpu.vector_store %arg6[%c0_10, %c0_11], %23 {strides = array<i32>} : memref<16x64xf32, #tpu.memory_space<vmem>>, vector<16x64xf32>,
    return
  }
  func.func @transform_0(%arg0: i32, %arg1: i32, %arg2: i32) -> (i32, i32) {
    %c0_i32 = arith.constant 0 : i32
    return %arg0, %arg2 : i32, i32
  }
  func.func @transform_1(%arg0: i32, %arg1: i32, %arg2: i32) -> (i32, i32) {
    %c0_i32 = arith.constant 0 : i32
    return %arg2, %arg1 : i32, i32
  }
  func.func @transform_2(%arg0: i32, %arg1: i32, %arg2: i32) -> (i32, i32) {
    %c0_i32 = arith.constant 0 : i32
    %c0_i32_0 = arith.constant 0 : i32
    return %c0_i32, %arg1 : i32, i32
  }
  func.func @transform_3(%arg0: i32, %arg1: i32, %arg2: i32) -> (i32, i32) {
    %c0_i32 = arith.constant 0 : i32
    return %arg0, %arg1 : i32, i32
  }
}

</mosaic_0001>

<llo_original>
// kernel: listener_forward.9
$region0: #{listener_forward.9}
  #allocation0 [shape = 'u32[]', space=smem, size = 0x4, offset = 0x4, fixed_abs, tag = 'smem constant byte address 0x4 - core index']
  #allocation1 [shape = 'u32[144,128]{1,0:T(1,128)}', space=vmem, size = 0x12000, scoped, tag = 'internal scratch']
  %s0 = inlined_call_operand.vmem [shape: f32[2,169,28,8], index: 0, kind: input, shape index: {}]
  %s1 = inlined_call_operand.vmem [shape: f32[41,16,28], index: 1, kind: input, shape index: {}]
  %s2 = inlined_call_operand.vmem [shape: f32[16,1], index: 2, kind: input, shape index: {}]
  %s3 = inlined_call_operand.vmem [shape: f32[2,65,16,8], index: 3, kind: output, shape index: {}]
  %s4 = sld [smem:[#allocation0]]
  $region59: #{listener_forward.9} parent=0
    _
  %s6 = ssub.s32 1, %s4
  %s7 = scalar_select 0, %s6, %s4
  loop: start=0, step=1, limit=4
  $region2: #{listener_forward.9} parent=0 // loop_pre_header
    _
  $region3: #{listener_forward.9} parent=0 // loop_header
    %s9 = sphi 0, %s13
    %p10 = scmp.ge.s32.totalorder %s9, 4
    %s16 = sphi 0, %s28
    %s17 = sphi 0, %s24
    %s18 = sphi 0, %s16
    %s19 = sphi 0, %s17
    %s20 = sphi 0, %s18
    %s21 = sphi 0, %s19
    %s33 = sphi 0, %s35
    %s36 = sphi 0, %s33
    %s37 = sphi 0, %s36
    %s53 = sphi 0, %s37
    %s57 = sphi 0, %s57
    %s59 = sphi 0, %s57
    %s60 = sphi 0, %s59
    %s74 = sphi 0, %s60
    %s78 = sphi 0, %s78
    %s80 = sphi 0, %s78
    %s81 = sphi 0, %s80
    %s95 = sphi 0, %s81
    %s103 = sphi 0, %s105
    %s106 = sphi 0, %s103
    %s107 = sphi 0, %s106
    %s123 = sphi 0, %s107
  $region4: #{listener_forward.9} parent=0 // loop_header_branch
    %12 = sbr.rel (%p10) target = $region8
  $region5: #{listener_forward.9} parent=0 // loop_body
    %s14 = ssub.s32 %s9, 1
    %s15 = ssub.s32 %s9, 2
    %s22 = sadd.s32 1, %s17
    %p23 = scmp.ge.s32.totalorder %s22, 1
    %s24 = scalar_select %p23, 0, %s22
    %s25 = sadd.s32 1, %s16
    %s26 = scalar_select %p23, %s25, %s16
    %p27 = scmp.ge.s32.totalorder %s26, 2
    %s28 = scalar_select %p27, 0, %s26
    %s29 = ssub.s32 %s16, %s28
    %s30 = ssub.s32 %s17, %s24
    %s31 = sor.u32 %s29, %s30
    %p32 = scmp.eq.s32.totalorder %s31, 0
    %s34 = sadd.s32 %s33, 1
    %s35 = scalar_select %p32, %s33, %s34
    %p38 = pneg %p32
    %p39 = scmp.eq.s32.totalorder %s9, 1
    %p40 = por %p38, %p39
    %p41 = scmp.ne.s32.totalorder %s33, %s36
    %p42 = scmp.eq.s32.totalorder %s9, 0
    %p43 = por %p41, %p42
    %p44 = scmp.ne.s32.totalorder %s33, %s36
    %p45 = scmp.eq.s32.totalorder %s14, 1
    %p46 = por %p44, %p45
    %p47 = scmp.ne.s32.totalorder %s36, %s37
    %p48 = scmp.eq.s32.totalorder %s14, 0
    %p49 = por %p47, %p48
    %p50 = scmp.ne.s32.totalorder %s36, %s37
    %p51 = scmp.eq.s32.totalorder %s15, 1
    %p52 = por %p50, %p51
    %p54 = scmp.ne.s32.totalorder %s37, %s53
    %p55 = scmp.eq.s32.totalorder %s15, 0
    %p56 = por %p54, %p55
    %s58 = sadd.s32 %s57, 1
    %p61 = scmp.eq.s32.totalorder %s9, 1
    %p62 = scmp.ne.s32.totalorder %s57, %s59
    %p63 = scmp.eq.s32.totalorder %s9, 0
    %p64 = por %p62, %p63
    %p65 = scmp.ne.s32.totalorder %s57, %s59
    %p66 = scmp.eq.s32.totalorder %s14, 1
    %p67 = por %p65, %p66
    %p68 = scmp.ne.s32.totalorder %s59, %s60
    %p69 = scmp.eq.s32.totalorder %s14, 0
    %p70 = por %p68, %p69
    %p71 = scmp.ne.s32.totalorder %s59, %s60
    %p72 = scmp.eq.s32.totalorder %s15, 1
    %p73 = por %p71, %p72
    %p75 = scmp.ne.s32.totalorder %s60, %s74
    %p76 = scmp.eq.s32.totalorder %s15, 0
    %p77 = por %p75, %p76
    %s79 = sadd.s32 %s78, 1
    %p82 = scmp.eq.s32.totalorder %s9, 1
    %p83 = scmp.ne.s32.totalorder %s78, %s80
    %p84 = scmp.eq.s32.totalorder %s9, 0
    %p85 = por %p83, %p84
    %p86 = scmp.ne.s32.totalorder %s78, %s80
    %p87 = scmp.eq.s32.totalorder %s14, 1
    %p88 = por %p86, %p87
    %p89 = scmp.ne.s32.totalorder %s80, %s81
    %p90 = scmp.eq.s32.totalorder %s14, 0
    %p91 = por %p89, %p90
    %p92 = scmp.ne.s32.totalorder %s80, %s81
    %p93 = scmp.eq.s32.totalorder %s15, 1
    %p94 = por %p92, %p93
    %p96 = scmp.ne.s32.totalorder %s81, %s95
    %p97 = scmp.eq.s32.totalorder %s15, 0
    %p98 = por %p96, %p97
    %s99 = ssub.s32 %s16, %s28
    %s100 = ssub.s32 %s17, %s24
    %s101 = sor.u32 %s99, %s100
    %p102 = scmp.eq.s32.totalorder %s101, 0
    %s104 = sadd.s32 %s103, 1
    %s105 = scalar_select %p102, %s103, %s104
    %p108 = pneg %p102
    %p109 = scmp.eq.s32.totalorder %s9, 1
    %p110 = por %p108, %p109
    %p111 = scmp.ne.s32.totalorder %s103, %s106
    %p112 = scmp.eq.s32.totalorder %s9, 0
    %p113 = por %p111, %p112
    %p114 = scmp.ne.s32.totalorder %s103, %s106
    %p115 = scmp.eq.s32.totalorder %s14, 1
    %p116 = por %p114, %p115
    %p117 = scmp.ne.s32.totalorder %s106, %s107
    %p118 = scmp.eq.s32.totalorder %s14, 0
    %p119 = por %p117, %p118
    %p120 = scmp.ne.s32.totalorder %s106, %s107
    %p121 = scmp.eq.s32.totalorder %s15, 1
    %p122 = por %p120, %p121
    %p124 = scmp.ne.s32.totalorder %s107, %s123
    %p125 = scmp.eq.s32.totalorder %s15, 0
    %p126 = por %p124, %p125
    %p127 = scmp.le.s32.totalorder 1, %s9
    %p128 = scmp.lt.s32.totalorder %s9, 3
    %p129 = pnand %p127, %p128
    %p130 = pneg %p129
    // Predicated region
    $region9: #{listener_forward.9} parent=5 // pred_check
      _
    $region10: #{listener_forward.9} parent=5 // pred_check_branch
      %132 = sbr.rel (%p129) target = $region12
    $region11: #{listener_forward.9} parent=5 // pred_region
      %s133 = ssub.s32 %s9, 1
      // Predicated region
      $region13: #{listener_forward.9} parent=11 // pred_check
        %p134 = pneg %p70
      $region14: #{listener_forward.9} parent=11 // pred_check_branch
        %136 = sbr.rel (%p134) target = $region16
      $region15: #{listener_forward.9} parent=11 // pred_region
        _
      $region16: #{listener_forward.9} parent=11 // pred_fallthru
        _
      // Predicated region
      $region17: #{listener_forward.9} parent=11 // pred_check
        %p137 = pneg %p91
      $region18: #{listener_forward.9} parent=11 // pred_check_branch
        %139 = sbr.rel (%p137) target = $region20
      $region19: #{listener_forward.9} parent=11 // pred_region
        _
      $region20: #{listener_forward.9} parent=11 // pred_fallthru
        _
    $region12: #{listener_forward.9} parent=5 // pred_fallthru
      _
    %p140 = scmp.lt.s32.totalorder %s9, 2
    // Predicated region
    $region21: #{listener_forward.9} parent=5 // pred_check
      %p141 = pneg %p140
    $region22: #{listener_forward.9} parent=5 // pred_check_branch
      %143 = sbr.rel (%p141) target = $region24
    $region23: #{listener_forward.9} parent=5 // pred_region
      // Predicated region
      $region25: #{listener_forward.9} parent=23 // pred_check
        %p144 = pneg %p43
      $region26: #{listener_forward.9} parent=23 // pred_check_branch
        %146 = sbr.rel (%p144) target = $region28
      $region27: #{listener_forward.9} parent=23 // pred_region
        %p147 = scmp.lt.s32.totalorder %s16, 1
        %s148 = scalar_select %p147, %s16, 1
        %p149 = scmp.lt.s32.totalorder %s17, 0
        %s150 = scalar_select %p149, %s17, 0
        %s151 = smul.addr %s148, 676
        %s152 = sadd.s32 %s150, %s151
        %s153 = smul.addr %s152, 8
        %s154 = scalar_lea.vmem %s0, %s153
      $region28: #{listener_forward.9} parent=23 // pred_fallthru
        _
    $region24: #{listener_forward.9} parent=5 // pred_fallthru
      _
    %p155 = scmp.le.s32.totalorder 1, %s9
    %p156 = scmp.lt.s32.totalorder %s9, 3
    %p157 = pnand %p155, %p156
    %p158 = pneg %p157
    // Predicated region
    $region29: #{listener_forward.9} parent=5 // pred_check
      _
    $region30: #{listener_forward.9} parent=5 // pred_check_branch
      %160 = sbr.rel (%p157) target = $region32
    $region31: #{listener_forward.9} parent=5 // pred_region
      %s161 = ssub.s32 %s9, 1
      %p162 = scmp.lt.s32.totalorder %s18, 1
      %s163 = scalar_select %p162, %s18, 1
      %p164 = scmp.lt.s32.totalorder %s19, 0
      %s165 = scalar_select %p164, %s19, 0
      %s166 = smul.addr %s163, 676
      %s167 = sadd.s32 %s165, %s166
      %s168 = smul.addr %s167, 8
      %s169 = scalar_lea.vmem %s0, %s168
      %p170 = pneg %p49
      %p171 = pneg %p46
      %p172 = pneg %p70
      %p173 = pneg %p67
      %p174 = pneg %p91
      %p175 = pneg %p88
      %p176 = pneg %p119
      %p177 = pneg %p116
      %p178 = scmp.lt.s32.totalorder %s18, 1
      %s179 = scalar_select %p178, %s18, 1
      %p180 = scmp.lt.s32.totalorder %s19, 0
      %s181 = scalar_select %p180, %s19, 0
      %s182 = smul.addr %s179, 130
      %s183 = sadd.s32 %s181, %s182
      %s184 = smul.addr %s183, 8
      %s185 = scalar_lea.vmem %s3, %s184
      %p186 = scmp.lt.s32.totalorder %s18, 1
      %s187 = scalar_select %p186, %s18, 1
      %p188 = scmp.lt.s32.totalorder %s19, 0
      %s189 = scalar_select %p188, %s19, 0
      %s190 = smul.addr %s187, 676
      %s191 = sadd.s32 %s189, %s190
      %s192 = smul.addr %s191, 8
      %s193 = scalar_lea.vmem %s0, %s192
      %p194 = scmp.lt.s32.totalorder %s18, 1
      %s195 = scalar_select %p194, %s18, 1
      %p196 = scmp.lt.s32.totalorder %s19, 0
      %s197 = scalar_select %p196, %s19, 0
      %s198 = smul.addr %s195, 130
      %s199 = sadd.s32 %s197, %s198
      %s200 = smul.addr %s199, 8
      %s201 = scalar_lea.vmem %s3, %s200
      %v202 = vld [vmem:[%s2] sm:$0xff]
      %v203 = vld [vmem:[%s2 + $0x8] sm:$0xff]
      loop: start=0, step=1, limit=65
      $region33: #{listener_forward.9} parent=31 // loop_pre_header
        _
      $region34: #{listener_forward.9} parent=31 // loop_header
        %s205 = sphi 0, %s209
        %p206 = scmp.ge.s32.totalorder %s205, 65
      $region35: #{listener_forward.9} parent=31 // loop_header_branch
        %208 = sbr.rel (%p206) target = $region39
      $region36: #{listener_forward.9} parent=31 // loop_body
        %s210 = smul.u32 %s205, 2
        loop: start=0, step=1, limit=41
        $region40: #{listener_forward.9} parent=36 // loop_pre_header
          _
        $region41: #{listener_forward.9} parent=36 // loop_header
          %s212 = sphi 0, %s216
          %p213 = scmp.ge.s32.totalorder %s212, 41
          %v217 = vphi 0.0, %v316
          %v218 = vphi 0.0, %v317
        $region42: #{listener_forward.9} parent=36 // loop_header_branch
          %215 = sbr.rel (%p213) target = $region46
        $region43: #{listener_forward.9} parent=36 // loop_body
          %s219 = smul.u32 %s212, 16
          %s220 = scalar_lea.vmem %s1, %s219
          %v221 = vld [vmem:[%s220] sm:$0xff]
          %v222 = vld [vmem:[%s220 + $0x8] sm:$0xff]
          %s223 = sadd.s32 %s210, %s212
          %s224 = smul.u32 %s223, 32
          %s225 = scalar_lea.vmem %s193, %s224
          %v226 = vld [vmem:[%s225] sm:$0xff]
          %v227 = vld [vmem:[%s225 + $0x8] sm:$0xff]
          %v228 = vld [vmem:[%s225 + $0x10] sm:$0xff]
          %v229 = vld [vmem:[%s225 + $0x18] sm:$0xf]
          %vm230 = vcmask 228352
          %v232 = vsel %vm230, %v221, 0
          %v235 = vsel %vm230, %v222, 0
          %vm237 = vcmask 1043456
          %v239 = vsel %vm237, %v229, 0
          %241 = vmatprep.subr.mxu0 0.0
          %242 = vmatpush1.msra.mxu0 0.0
          %243 = vmatprep.subr.mxu0 0.0
          %244 = vmatpush1.msra.mxu0 0.0
          %245 = vmatprep.subr.mxu0 0.0
          %246 = vmatpush1.msra.mxu0 0.0
          %247 = vmatprep.subr.mxu0 0.0
          %248 = vmatpush1.msra.mxu0 0.0
          %249 = vmatprep.subr.mxu0 0.0
          %250 = vmatpush1.msra.mxu0 0.0
          %251 = vmatprep.subr.mxu0 0.0
          %252 = vmatpush1.msra.mxu0 0.0
          %253 = vmatprep.subr.mxu0 0.0
          %254 = vmatpush1.msra.mxu0 0.0
          %255 = vmatprep.subr.mxu0 0.0
          %256 = vmatpush1.msra.mxu0 0.0
          %257 = vmatprep.subr.mxu0 0.0
          %258 = vmatpush1.msra.mxu0 0.0
          %259 = vmatprep.subr.mxu0 0.0
          %260 = vmatpush1.msra.mxu0 0.0
          %261 = vmatprep.subr.mxu0 0.0
          %262 = vmatpush1.msra.mxu0 0.0
          %263 = vmatprep.subr.mxu0 0.0
          %264 = vmatpush1.msra.mxu0 0.0
          %265 = vmatprep.subr.mxu0 0.0
          %266 = vmatpush1.msra.mxu0 %v239
          %267 = vmatprep.subr.mxu0 0.0
          %268 = vmatpush1.msra.mxu0 %v228
          %269 = vmatprep.subr.mxu0 0.0
          %270 = vmatpush1.msra.mxu0 %v227
          %271 = vmatprep.subr.mxu0 0.0
          %272 = vmatpush1.msra.mxu0 %v226
          %273 = vmatprep.subr.mxu0 0.0
          %274 = vmatpush2.msra.mxu0 0.0
          %275 = vmatprep.subr.mxu0 0.0
          %276 = vmatpush2.msra.mxu0 0.0
          %277 = vmatprep.subr.mxu0 0.0
          %278 = vmatpush2.msra.mxu0 0.0
          %279 = vmatprep.subr.mxu0 0.0
          %280 = vmatpush2.msra.mxu0 0.0
          %281 = vmatprep.subr.mxu0 0.0
          %282 = vmatpush2.msra.mxu0 0.0
          %283 = vmatprep.subr.mxu0 0.0
          %284 = vmatpush2.msra.mxu0 0.0
          %285 = vmatprep.subr.mxu0 0.0
          %286 = vmatpush2.msra.mxu0 0.0
          %287 = vmatprep.subr.mxu0 0.0
          %288 = vmatpush2.msra.mxu0 0.0
          %289 = vmatprep.subr.mxu0 0.0
          %290 = vmatpush2.msra.mxu0 0.0
          %291 = vmatprep.subr.mxu0 0.0
          %292 = vmatpush2.msra.mxu0 0.0
          %293 = vmatprep.subr.mxu0 0.0
          %294 = vmatpush2.msra.mxu0 0.0
          %295 = vmatprep.subr.mxu0 0.0
          %296 = vmatpush2.msra.mxu0 0.0
          %297 = vmatprep.subr.mxu0 0.0
          %298 = vmatpush2.msra.mxu0 0.0
          %299 = vmatprep.subr.mxu0 0.0
          %300 = vmatpush2.msra.mxu0 0.0
          %301 = vmatprep.subr.mxu0 0.0
          %302 = vmatpush2.msra.mxu0 0.0
          %303 = vmatprep.subr.mxu0 0.0
          %304 = vmatpush2.msra.mxu0 0.0
          %305 = vmatprep.mubr.f32.mxu0 0.0
          %306 = vmatmul.mubr.f32.gmra.mxu0 %v232
          %v307 = vpop.f32.mrf.mxu0
          %v308 = vadd.f32 0.0, %v307
          %v309 = vpop.f32.mrf.mxu0
          %310 = vmatprep.mubr.f32.mxu0 0.0
          %311 = vmatmul.mubr.f32.gmra.mxu0 %v235
          %v312 = vpop.f32.mrf.mxu0
          %v313 = vadd.f32 0.0, %v312
          %v314 = vpop.f32.mrf.mxu0
          %315 = vdwg.mxu0
          %v316 = vadd.f32 %v217, %v308
          %v317 = vadd.f32 %v218, %v313
        $region44: #{listener_forward.9} parent=36 // loop_footer
          %s216 = sadd.s32 1, %s212
        $region45: #{listener_forward.9} parent=36 // loop_footer_branch
          %211 = sbr.rel target = $region41
        $region46: #{listener_forward.9} parent=36 // loop_exit
          _
        %319 = vset.pattern.permute.xlu0 0
        %320 = vperm.xlu0 %319, %v202
        %v321 = vpop.permute.xlu0 %320
        %324 = vset.pattern.permute.xlu0 0
        %325 = vperm.xlu0 %324, %v203
        %v326 = vpop.permute.xlu0 %325
        %v328 = vadd.f32 %v217, %v321
        %v329 = vadd.f32 %v218, %v326
        %vm330 = vcmp.ge.f32.partialorder %v328, 0.0
        %vm331 = vcmp.ge.f32.partialorder %v329, 0.0
        %v332 = vmul.f32 %v328, 0.01
        %v333 = vmul.f32 %v329, 0.01
        %v334 = vsel %vm330, %v328, %v332
        %v335 = vsel %vm331, %v329, %v333
        %s336 = smul.u32 %s205, 16
        %s337 = scalar_lea.vmem %s201, %s336
        %vm338 = vcmask 64512
        %339 = vst.msk [vmem:[%s337] sm:$0xff] %vm338, %v334
        %340 = vst.msk [vmem:[%s337 + $0x8] sm:$0xff] %vm338, %v335
      $region37: #{listener_forward.9} parent=31 // loop_footer
        %s209 = sadd.s32 1, %s205
      $region38: #{listener_forward.9} parent=31 // loop_footer_branch
        %204 = sbr.rel target = $region34
      $region39: #{listener_forward.9} parent=31 // loop_exit
        _
      %p341 = scmp.lt.s32.totalorder %s18, 1
      %s342 = scalar_select %p341, %s18, 1
      %p343 = scmp.lt.s32.totalorder %s19, 0
      %s344 = scalar_select %p343, %s19, 0
      %s345 = smul.addr %s342, 130
      %s346 = sadd.s32 %s344, %s345
      %s347 = smul.addr %s346, 8
      %s348 = scalar_lea.vmem %s3, %s347
      // Predicated region
      $region47: #{listener_forward.9} parent=31 // pred_check
        %p349 = pneg %p116
      $region48: #{listener_forward.9} parent=31 // pred_check_branch
        %351 = sbr.rel (%p349) target = $region50
      $region49: #{listener_forward.9} parent=31 // pred_region
        _
      $region50: #{listener_forward.9} parent=31 // pred_fallthru
        _
    $region32: #{listener_forward.9} parent=5 // pred_fallthru
      _
    %p352 = scmp.le.s32.totalorder 2, %s9
    // Predicated region
    $region51: #{listener_forward.9} parent=5 // pred_check
      %p353 = pneg %p352
    $region52: #{listener_forward.9} parent=5 // pred_check_branch
      %355 = sbr.rel (%p353) target = $region54
    $region53: #{listener_forward.9} parent=5 // pred_region
      %s356 = ssub.s32 %s9, 2
      // Predicated region
      $region55: #{listener_forward.9} parent=53 // pred_check
        %p357 = pneg %p122
      $region56: #{listener_forward.9} parent=53 // pred_check_branch
        %359 = sbr.rel (%p357) target = $region58
      $region57: #{listener_forward.9} parent=53 // pred_region
        %p360 = scmp.lt.s32.totalorder %s20, 1
        %s361 = scalar_select %p360, %s20, 1
        %p362 = scmp.lt.s32.totalorder %s21, 0
        %s363 = scalar_select %p362, %s21, 0
        %s364 = smul.addr %s361, 130
        %s365 = sadd.s32 %s363, %s364
        %s366 = smul.addr %s365, 8
        %s367 = scalar_lea.vmem %s3, %s366
      $region58: #{listener_forward.9} parent=53 // pred_fallthru
        _
    $region54: #{listener_forward.9} parent=5 // pred_fallthru
      _
  $region6: #{listener_forward.9} parent=0 // loop_footer
    %s13 = sadd.s32 1, %s9
  $region7: #{listener_forward.9} parent=0 // loop_footer_branch
    %8 = sbr.rel target = $region3
  $region8: #{listener_forward.9} parent=0 // loop_exit
    _

// kernel: listener_forward.10
$region0: #{listener_forward.10}
  #allocation0 [shape = 'u32[]', space=smem, size = 0x4, offset = 0x4, fixed_abs, tag = 'smem constant byte address 0x4 - core index']
  #allocation1 [shape = 'u32[144,128]{1,0:T(1,128)}', space=vmem, size = 0x12000, scoped, tag = 'internal scratch']
  %s0 = inlined_call_operand.vmem [shape: f32[2,85,112,8], index: 0, kind: input, shape index: {}]
  %s1 = inlined_call_operand.vmem [shape: f32[21,32,112], index: 1, kind: input, shape index: {}]
  %s2 = inlined_call_operand.vmem [shape: f32[32,1], index: 2, kind: input, shape index: {}]
  %s3 = inlined_call_operand.vmem [shape: f32[2,33,32,8], index: 3, kind: output, shape index: {}]
  %s4 = sld [smem:[#allocation0]]
  $region59: #{listener_forward.10} parent=0
    _
  %s6 = ssub.s32 1, %s4
  %s7 = scalar_select 0, %s6, %s4
  loop: start=0, step=1, limit=4
  $region2: #{listener_forward.10} parent=0 // loop_pre_header
    _
  $region3: #{listener_forward.10} parent=0 // loop_header
    %s9 = sphi 0, %s13
    %p10 = scmp.ge.s32.totalorder %s9, 4
    %s16 = sphi 0, %s28
    %s17 = sphi 0, %s24
    %s18 = sphi 0, %s16
    %s19 = sphi 0, %s17
    %s20 = sphi 0, %s18
    %s21 = sphi 0, %s19
    %s33 = sphi 0, %s35
    %s36 = sphi 0, %s33
    %s37 = sphi 0, %s36
    %s53 = sphi 0, %s37
    %s57 = sphi 0, %s57
    %s59 = sphi 0, %s57
    %s60 = sphi 0, %s59
    %s74 = sphi 0, %s60
    %s78 = sphi 0, %s78
    %s80 = sphi 0, %s78
    %s81 = sphi 0, %s80
    %s95 = sphi 0, %s81
    %s103 = sphi 0, %s105
    %s106 = sphi 0, %s103
    %s107 = sphi 0, %s106
    %s123 = sphi 0, %s107
  $region4: #{listener_forward.10} parent=0 // loop_header_branch
    %12 = sbr.rel (%p10) target = $region8
  $region5: #{listener_forward.10} parent=0 // loop_body
    %s14 = ssub.s32 %s9, 1
    %s15 = ssub.s32 %s9, 2
    %s22 = sadd.s32 1, %s17
    %p23 = scmp.ge.s32.totalorder %s22, 1
    %s24 = scalar_select %p23, 0, %s22
    %s25 = sadd.s32 1, %s16
    %s26 = scalar_select %p23, %s25, %s16
    %p27 = scmp.ge.s32.totalorder %s26, 2
    %s28 = scalar_select %p27, 0, %s26
    %s29 = ssub.s32 %s16, %s28
    %s30 = ssub.s32 %s17, %s24
    %s31 = sor.u32 %s29, %s30
    %p32 = scmp.eq.s32.totalorder %s31, 0
    %s34 = sadd.s32 %s33, 1
    %s35 = scalar_select %p32, %s33, %s34
    %p38 = pneg %p32
    %p39 = scmp.eq.s32.totalorder %s9, 1
    %p40 = por %p38, %p39
    %p41 = scmp.ne.s32.totalorder %s33, %s36
    %p42 = scmp.eq.s32.totalorder %s9, 0
    %p43 = por %p41, %p42
    %p44 = scmp.ne.s32.totalorder %s33, %s36
    %p45 = scmp.eq.s32.totalorder %s14, 1
    %p46 = por %p44, %p45
    %p47 = scmp.ne.s32.totalorder %s36, %s37
    %p48 = scmp.eq.s32.totalorder %s14, 0
    %p49 = por %p47, %p48
    %p50 = scmp.ne.s32.totalorder %s36, %s37
    %p51 = scmp.eq.s32.totalorder %s15, 1
    %p52 = por %p50, %p51
    %p54 = scmp.ne.s32.totalorder %s37, %s53
    %p55 = scmp.eq.s32.totalorder %s15, 0
    %p56 = por %p54, %p55
    %s58 = sadd.s32 %s57, 1
    %p61 = scmp.eq.s32.totalorder %s9, 1
    %p62 = scmp.ne.s32.totalorder %s57, %s59
    %p63 = scmp.eq.s32.totalorder %s9, 0
    %p64 = por %p62, %p63
    %p65 = scmp.ne.s32.totalorder %s57, %s59
    %p66 = scmp.eq.s32.totalorder %s14, 1
    %p67 = por %p65, %p66
    %p68 = scmp.ne.s32.totalorder %s59, %s60
    %p69 = scmp.eq.s32.totalorder %s14, 0
    %p70 = por %p68, %p69
    %p71 = scmp.ne.s32.totalorder %s59, %s60
    %p72 = scmp.eq.s32.totalorder %s15, 1
    %p73 = por %p71, %p72
    %p75 = scmp.ne.s32.totalorder %s60, %s74
    %p76 = scmp.eq.s32.totalorder %s15, 0
    %p77 = por %p75, %p76
    %s79 = sadd.s32 %s78, 1
    %p82 = scmp.eq.s32.totalorder %s9, 1
    %p83 = scmp.ne.s32.totalorder %s78, %s80
    %p84 = scmp.eq.s32.totalorder %s9, 0
    %p85 = por %p83, %p84
    %p86 = scmp.ne.s32.totalorder %s78, %s80
    %p87 = scmp.eq.s32.totalorder %s14, 1
    %p88 = por %p86, %p87
    %p89 = scmp.ne.s32.totalorder %s80, %s81
    %p90 = scmp.eq.s32.totalorder %s14, 0
    %p91 = por %p89, %p90
    %p92 = scmp.ne.s32.totalorder %s80, %s81
    %p93 = scmp.eq.s32.totalorder %s15, 1
    %p94 = por %p92, %p93
    %p96 = scmp.ne.s32.totalorder %s81, %s95
    %p97 = scmp.eq.s32.totalorder %s15, 0
    %p98 = por %p96, %p97
    %s99 = ssub.s32 %s16, %s28
    %s100 = ssub.s32 %s17, %s24
    %s101 = sor.u32 %s99, %s100
    %p102 = scmp.eq.s32.totalorder %s101, 0
    %s104 = sadd.s32 %s103, 1
    %s105 = scalar_select %p102, %s103, %s104
    %p108 = pneg %p102
    %p109 = scmp.eq.s32.totalorder %s9, 1
    %p110 = por %p108, %p109
    %p111 = scmp.ne.s32.totalorder %s103, %s106
    %p112 = scmp.eq.s32.totalorder %s9, 0
    %p113 = por %p111, %p112
    %p114 = scmp.ne.s32.totalorder %s103, %s106
    %p115 = scmp.eq.s32.totalorder %s14, 1
    %p116 = por %p114, %p115
    %p117 = scmp.ne.s32.totalorder %s106, %s107
    %p118 = scmp.eq.s32.totalorder %s14, 0
    %p119 = por %p117, %p118
    %p120 = scmp.ne.s32.totalorder %s106, %s107
    %p121 = scmp.eq.s32.totalorder %s15, 1
    %p122 = por %p120, %p121
    %p124 = scmp.ne.s32.totalorder %s107, %s123
    %p125 = scmp.eq.s32.totalorder %s15, 0
    %p126 = por %p124, %p125
    %p127 = scmp.le.s32.totalorder 1, %s9
    %p128 = scmp.lt.s32.totalorder %s9, 3
    %p129 = pnand %p127, %p128
    %p130 = pneg %p129
    // Predicated region
    $region9: #{listener_forward.10} parent=5 // pred_check
      _
    $region10: #{listener_forward.10} parent=5 // pred_check_branch
      %132 = sbr.rel (%p129) target = $region12
    $region11: #{listener_forward.10} parent=5 // pred_region
      %s133 = ssub.s32 %s9, 1
      // Predicated region
      $region13: #{listener_forward.10} parent=11 // pred_check
        %p134 = pneg %p70
      $region14: #{listener_forward.10} parent=11 // pred_check_branch
        %136 = sbr.rel (%p134) target = $region16
      $region15: #{listener_forward.10} parent=11 // pred_region
        _
      $region16: #{listener_forward.10} parent=11 // pred_fallthru
        _
      // Predicated region
      $region17: #{listener_forward.10} parent=11 // pred_check
        %p137 = pneg %p91
      $region18: #{listener_forward.10} parent=11 // pred_check_branch
        %139 = sbr.rel (%p137) target = $region20
      $region19: #{listener_forward.10} parent=11 // pred_region
        _
      $region20: #{listener_forward.10} parent=11 // pred_fallthru
        _
    $region12: #{listener_forward.10} parent=5 // pred_fallthru
      _
    %p140 = scmp.lt.s32.totalorder %s9, 2
    // Predicated region
    $region21: #{listener_forward.10} parent=5 // pred_check
      %p141 = pneg %p140
    $region22: #{listener_forward.10} parent=5 // pred_check_branch
      %143 = sbr.rel (%p141) target = $region24
    $region23: #{listener_forward.10} parent=5 // pred_region
      // Predicated region
      $region25: #{listener_forward.10} parent=23 // pred_check
        %p144 = pneg %p43
      $region26: #{listener_forward.10} parent=23 // pred_check_branch
        %146 = sbr.rel (%p144) target = $region28
      $region27: #{listener_forward.10} parent=23 // pred_region
        %p147 = scmp.lt.s32.totalorder %s16, 1
        %s148 = scalar_select %p147, %s16, 1
        %p149 = scmp.lt.s32.totalorder %s17, 0
        %s150 = scalar_select %p149, %s17, 0
        %s151 = smul.addr %s148, 1190
        %s152 = sadd.s32 %s150, %s151
        %s153 = smul.addr %s152, 8
        %s154 = scalar_lea.vmem %s0, %s153
      $region28: #{listener_forward.10} parent=23 // pred_fallthru
        _
    $region24: #{listener_forward.10} parent=5 // pred_fallthru
      _
    %p155 = scmp.le.s32.totalorder 1, %s9
    %p156 = scmp.lt.s32.totalorder %s9, 3
    %p157 = pnand %p155, %p156
    %p158 = pneg %p157
    // Predicated region
    $region29: #{listener_forward.10} parent=5 // pred_check
      _
    $region30: #{listener_forward.10} parent=5 // pred_check_branch
      %160 = sbr.rel (%p157) target = $region32
    $region31: #{listener_forward.10} parent=5 // pred_region
      %s161 = ssub.s32 %s9, 1
      %p162 = scmp.lt.s32.totalorder %s18, 1
      %s163 = scalar_select %p162, %s18, 1
      %p164 = scmp.lt.s32.totalorder %s19, 0
      %s165 = scalar_select %p164, %s19, 0
      %s166 = smul.addr %s163, 1190
      %s167 = sadd.s32 %s165, %s166
      %s168 = smul.addr %s167, 8
      %s169 = scalar_lea.vmem %s0, %s168
      %p170 = pneg %p49
      %p171 = pneg %p46
      %p172 = pneg %p70
      %p173 = pneg %p67
      %p174 = pneg %p91
      %p175 = pneg %p88
      %p176 = pneg %p119
      %p177 = pneg %p116
      %p178 = scmp.lt.s32.totalorder %s18, 1
      %s179 = scalar_select %p178, %s18, 1
      %p180 = scmp.lt.s32.totalorder %s19, 0
      %s181 = scalar_select %p180, %s19, 0
      %s182 = smul.addr %s179, 132
      %s183 = sadd.s32 %s181, %s182
      %s184 = smul.addr %s183, 8
      %s185 = scalar_lea.vmem %s3, %s184
      %p186 = scmp.lt.s32.totalorder %s18, 1
      %s187 = scalar_select %p186, %s18, 1
      %p188 = scmp.lt.s32.totalorder %s19, 0
      %s189 = scalar_select %p188, %s19, 0
      %s190 = smul.addr %s187, 1190
      %s191 = sadd.s32 %s189, %s190
      %s192 = smul.addr %s191, 8
      %s193 = scalar_lea.vmem %s0, %s192
      %p194 = scmp.lt.s32.totalorder %s18, 1
      %s195 = scalar_select %p194, %s18, 1
      %p196 = scmp.lt.s32.totalorder %s19, 0
      %s197 = scalar_select %p196, %s19, 0
      %s198 = smul.addr %s195, 132
      %s199 = sadd.s32 %s197, %s198
      %s200 = smul.addr %s199, 8
      %s201 = scalar_lea.vmem %s3, %s200
      %v202 = vld [vmem:[%s2] sm:$0xff]
      %v203 = vld [vmem:[%s2 + $0x8] sm:$0xff]
      %v204 = vld [vmem:[%s2 + $0x10] sm:$0xff]
      %v205 = vld [vmem:[%s2 + $0x18] sm:$0xff]
      loop: start=0, step=1, limit=33
      $region33: #{listener_forward.10} parent=31 // loop_pre_header
        _
      $region34: #{listener_forward.10} parent=31 // loop_header
        %s207 = sphi 0, %s211
        %p208 = scmp.ge.s32.totalorder %s207, 33
      $region35: #{listener_forward.10} parent=31 // loop_header_branch
        %210 = sbr.rel (%p208) target = $region39
      $region36: #{listener_forward.10} parent=31 // loop_body
        %s212 = smul.u32 %s207, 2
        loop: start=0, step=1, limit=21
        $region40: #{listener_forward.10} parent=36 // loop_pre_header
          _
        $region41: #{listener_forward.10} parent=36 // loop_header
          %s214 = sphi 0, %s218
          %p215 = scmp.ge.s32.totalorder %s214, 21
          %v219 = vphi 0.0, %v344
          %v220 = vphi 0.0, %v345
          %v221 = vphi 0.0, %v346
          %v222 = vphi 0.0, %v347
        $region42: #{listener_forward.10} parent=36 // loop_header_branch
          %217 = sbr.rel (%p215) target = $region46
        $region43: #{listener_forward.10} parent=36 // loop_body
          %s223 = smul.u32 %s214, 32
          %s224 = scalar_lea.vmem %s1, %s223
          %v225 = vld [vmem:[%s224] sm:$0xff]
          %v226 = vld [vmem:[%s224 + $0x8] sm:$0xff]
          %v227 = vld [vmem:[%s224 + $0x10] sm:$0xff]
          %v228 = vld [vmem:[%s224 + $0x18] sm:$0xff]
          %s229 = sadd.s32 %s212, %s214
          %s230 = smul.u32 %s229, 112
          %s231 = scalar_lea.vmem %s193, %s230
          %v232 = vld [vmem:[%s231] sm:$0xff]
          %v233 = vld [vmem:[%s231 + $0x8] sm:$0xff]
          %v234 = vld [vmem:[%s231 + $0x10] sm:$0xff]
          %v235 = vld [vmem:[%s231 + $0x18] sm:$0xff]
          %v236 = vld [vmem:[%s231 + $0x20] sm:$0xff]
          %v237 = vld [vmem:[%s231 + $0x28] sm:$0xff]
          %v238 = vld [vmem:[%s231 + $0x30] sm:$0xff]
          %v239 = vld [vmem:[%s231 + $0x38] sm:$0xff]
          %v240 = vld [vmem:[%s231 + $0x40] sm:$0xff]
          %v241 = vld [vmem:[%s231 + $0x48] sm:$0xff]
          %v242 = vld [vmem:[%s231 + $0x50] sm:$0xff]
          %v243 = vld [vmem:[%s231 + $0x58] sm:$0xff]
          %v244 = vld [vmem:[%s231 + $0x60] sm:$0xff]
          %v245 = vld [vmem:[%s231 + $0x68] sm:$0xff]
          %vm246 = vcmask 916480
          %v248 = vsel %vm246, %v225, 0
          %v251 = vsel %vm246, %v226, 0
          %v254 = vsel %vm246, %v227, 0
          %v257 = vsel %vm246, %v228, 0
          %259 = vmatprep.subr.mxu0 0.0
          %260 = vmatpush1.msra.mxu0 0.0
          %261 = vmatprep.subr.mxu0 0.0
          %262 = vmatpush1.msra.mxu0 0.0
          %263 = vmatprep.subr.mxu0 0.0
          %264 = vmatpush1.msra.mxu0 %v245
          %265 = vmatprep.subr.mxu0 0.0
          %266 = vmatpush1.msra.mxu0 %v244
          %267 = vmatprep.subr.mxu0 0.0
          %268 = vmatpush1.msra.mxu0 %v243
          %269 = vmatprep.subr.mxu0 0.0
          %270 = vmatpush1.msra.mxu0 %v242
          %271 = vmatprep.subr.mxu0 0.0
          %272 = vmatpush1.msra.mxu0 %v241
          %273 = vmatprep.subr.mxu0 0.0
          %274 = vmatpush1.msra.mxu0 %v240
          %275 = vmatprep.subr.mxu0 0.0
          %276 = vmatpush1.msra.mxu0 %v239
          %277 = vmatprep.subr.mxu0 0.0
          %278 = vmatpush1.msra.mxu0 %v238
          %279 = vmatprep.subr.mxu0 0.0
          %280 = vmatpush1.msra.mxu0 %v237
          %281 = vmatprep.subr.mxu0 0.0
          %282 = vmatpush1.msra.mxu0 %v236
          %283 = vmatprep.subr.mxu0 0.0
          %284 = vmatpush1.msra.mxu0 %v235
          %285 = vmatprep.subr.mxu0 0.0
          %286 = vmatpush1.msra.mxu0 %v234
          %287 = vmatprep.subr.mxu0 0.0
          %288 = vmatpush1.msra.mxu0 %v233
          %289 = vmatprep.subr.mxu0 0.0
          %290 = vmatpush1.msra.mxu0 %v232
          %291 = vmatprep.subr.mxu0 0.0
          %292 = vmatpush2.msra.mxu0 0.0
          %293 = vmatprep.subr.mxu0 0.0
          %294 = vmatpush2.msra.mxu0 0.0
          %295 = vmatprep.subr.mxu0 0.0
          %296 = vmatpush2.msra.mxu0 0.0
          %297 = vmatprep.subr.mxu0 0.0
          %298 = vmatpush2.msra.mxu0 0.0
          %299 = vmatprep.subr.mxu0 0.0
          %300 = vmatpush2.msra.mxu0 0.0
          %301 = vmatprep.subr.mxu0 0.0
          %302 = vmatpush2.msra.mxu0 0.0
          %303 = vmatprep.subr.mxu0 0.0
          %304 = vmatpush2.msra.mxu0 0.0
          %305 = vmatprep.subr.mxu0 0.0
          %306 = vmatpush2.msra.mxu0 0.0
          %307 = vmatprep.subr.mxu0 0.0
          %308 = vmatpush2.msra.mxu0 0.0
          %309 = vmatprep.subr.mxu0 0.0
          %310 = vmatpush2.msra.mxu0 0.0
          %311 = vmatprep.subr.mxu0 0.0
          %312 = vmatpush2.msra.mxu0 0.0
          %313 = vmatprep.subr.mxu0 0.0
          %314 = vmatpush2.msra.mxu0 0.0
          %315 = vmatprep.subr.mxu0 0.0
          %316 = vmatpush2.msra.mxu0 0.0
          %317 = vmatprep.subr.mxu0 0.0
          %318 = vmatpush2.msra.mxu0 0.0
          %319 = vmatprep.subr.mxu0 0.0
          %320 = vmatpush2.msra.mxu0 0.0
          %321 = vmatprep.subr.mxu0 0.0
          %322 = vmatpush2.msra.mxu0 0.0
          %323 = vmatprep.mubr.f32.mxu0 0.0
          %324 = vmatmul.mubr.f32.gmra.mxu0 %v248
          %v325 = vpop.f32.mrf.mxu0
          %v326 = vadd.f32 0.0, %v325
          %v327 = vpop.f32.mrf.mxu0
          %328 = vmatprep.mubr.f32.mxu0 0.0
          %329 = vmatmul.mubr.f32.gmra.mxu0 %v251
          %v330 = vpop.f32.mrf.mxu0
          %v331 = vadd.f32 0.0, %v330
          %v332 = vpop.f32.mrf.mxu0
          %333 = vmatprep.mubr.f32.mxu0 0.0
          %334 = vmatmul.mubr.f32.gmra.mxu0 %v254
          %v335 = vpop.f32.mrf.mxu0
          %v336 = vadd.f32 0.0, %v335
          %v337 = vpop.f32.mrf.mxu0
          %338 = vmatprep.mubr.f32.mxu0 0.0
          %339 = vmatmul.mubr.f32.gmra.mxu0 %v257
          %v340 = vpop.f32.mrf.mxu0
          %v341 = vadd.f32 0.0, %v340
          %v342 = vpop.f32.mrf.mxu0
          %343 = vdwg.mxu0
          %v344 = vadd.f32 %v219, %v326
          %v345 = vadd.f32 %v220, %v331
          %v346 = vadd.f32 %v221, %v336
          %v347 = vadd.f32 %v222, %v341
        $region44: #{listener_forward.10} parent=36 // loop_footer
          %s218 = sadd.s32 1, %s214
        $region45: #{listener_forward.10} parent=36 // loop_footer_branch
          %213 = sbr.rel target = $region41
        $region46: #{listener_forward.10} parent=36 // loop_exit
          _
        %349 = vset.pattern.permute.xlu0 0
        %350 = vperm.xlu0 %349, %v202
        %v351 = vpop.permute.xlu0 %350
        %354 = vset.pattern.permute.xlu0 0
        %355 = vperm.xlu0 %354, %v203
        %v356 = vpop.permute.xlu0 %355
        %359 = vset.pattern.permute.xlu0 0
        %360 = vperm.xlu0 %359, %v204
        %v361 = vpop.permute.xlu0 %360
        %364 = vset.pattern.permute.xlu0 0
        %365 = vperm.xlu0 %364, %v205
        %v366 = vpop.permute.xlu0 %365
        %v368 = vadd.f32 %v219, %v351
        %v369 = vadd.f32 %v220, %v356
        %v370 = vadd.f32 %v221, %v361
        %v371 = vadd.f32 %v222, %v366
        %vm372 = vcmp.ge.f32.partialorder %v368, 0.0
        %vm373 = vcmp.ge.f32.partialorder %v369, 0.0
        %vm374 = vcmp.ge.f32.partialorder %v370, 0.0
        %vm375 = vcmp.ge.f32.partialorder %v371, 0.0
        %v376 = vmul.f32 %v368, 0.01
        %v377 = vmul.f32 %v369, 0.01
        %v378 = vmul.f32 %v370, 0.01
        %v379 = vmul.f32 %v371, 0.01
        %v380 = vsel %vm372, %v368, %v376
        %v381 = vsel %vm373, %v369, %v377
        %v382 = vsel %vm374, %v370, %v378
        %v383 = vsel %vm375, %v371, %v379
        %s384 = smul.u32 %s207, 32
        %s385 = scalar_lea.vmem %s201, %s384
        %vm386 = vcmask 64512
        %387 = vst.msk [vmem:[%s385] sm:$0xff] %vm386, %v380
        %388 = vst.msk [vmem:[%s385 + $0x8] sm:$0xff] %vm386, %v381
        %389 = vst.msk [vmem:[%s385 + $0x10] sm:$0xff] %vm386, %v382
        %390 = vst.msk [vmem:[%s385 + $0x18] sm:$0xff] %vm386, %v383
      $region37: #{listener_forward.10} parent=31 // loop_footer
        %s211 = sadd.s32 1, %s207
      $region38: #{listener_forward.10} parent=31 // loop_footer_branch
        %206 = sbr.rel target = $region34
      $region39: #{listener_forward.10} parent=31 // loop_exit
        _
      %p391 = scmp.lt.s32.totalorder %s18, 1
      %s392 = scalar_select %p391, %s18, 1
      %p393 = scmp.lt.s32.totalorder %s19, 0
      %s394 = scalar_select %p393, %s19, 0
      %s395 = smul.addr %s392, 132
      %s396 = sadd.s32 %s394, %s395
      %s397 = smul.addr %s396, 8
      %s398 = scalar_lea.vmem %s3, %s397
      // Predicated region
      $region47: #{listener_forward.10} parent=31 // pred_check
        %p399 = pneg %p116
      $region48: #{listener_forward.10} parent=31 // pred_check_branch
        %401 = sbr.rel (%p399) target = $region50
      $region49: #{listener_forward.10} parent=31 // pred_region
        _
      $region50: #{listener_forward.10} parent=31 // pred_fallthru
        _
    $region32: #{listener_forward.10} parent=5 // pred_fallthru
      _
    %p402 = scmp.le.s32.totalorder 2, %s9
    // Predicated region
    $region51: #{listener_forward.10} parent=5 // pred_check
      %p403 = pneg %p402
    $region52: #{listener_forward.10} parent=5 // pred_check_branch
      %405 = sbr.rel (%p403) target = $region54
    $region53: #{listener_forward.10} parent=5 // pred_region
      %s406 = ssub.s32 %s9, 2
      // Predicated region
      $region55: #{listener_forward.10} parent=53 // pred_check
        %p407 = pneg %p122
      $region56: #{listener_forward.10} parent=53 // pred_check_branch
        %409 = sbr.rel (%p407) target = $region58
      $region57: #{listener_forward.10} parent=53 // pred_region
        %p410 = scmp.lt.s32.totalorder %s20, 1
        %s411 = scalar_select %p410, %s20, 1
        %p412 = scmp.lt.s32.totalorder %s21, 0
        %s413 = scalar_select %p412, %s21, 0
        %s414 = smul.addr %s411, 132
        %s415 = sadd.s32 %s413, %s414
        %s416 = smul.addr %s415, 8
        %s417 = scalar_lea.vmem %s3, %s416
      $region58: #{listener_forward.10} parent=53 // pred_fallthru
        _
    $region54: #{listener_forward.10} parent=5 // pred_fallthru
      _
  $region6: #{listener_forward.10} parent=0 // loop_footer
    %s13 = sadd.s32 1, %s9
  $region7: #{listener_forward.10} parent=0 // loop_footer_branch
    %8 = sbr.rel target = $region3
  $region8: #{listener_forward.10} parent=0 // loop_exit
    _

// kernel: listener_forward.11
$region0: #{listener_forward.11}
  #allocation0 [shape = 'u32[]', space=smem, size = 0x4, offset = 0x4, fixed_abs, tag = 'smem constant byte address 0x4 - core index']
  #allocation1 [shape = 'u32[144,128]{1,0:T(1,128)}', space=vmem, size = 0x12000, scoped, tag = 'internal scratch']
  %s0 = inlined_call_operand.vmem [shape: f32[2,43,224,8], index: 0, kind: input, shape index: {}]
  %s1 = inlined_call_operand.vmem [shape: f32[11,64,224], index: 1, kind: input, shape index: {}]
  %s2 = inlined_call_operand.vmem [shape: f32[64,1], index: 2, kind: input, shape index: {}]
  %s3 = inlined_call_operand.vmem [shape: f32[2,17,64,8], index: 3, kind: output, shape index: {}]
  %s4 = sld [smem:[#allocation0]]
  $region59: #{listener_forward.11} parent=0
    _
  %s6 = ssub.s32 1, %s4
  %s7 = scalar_select 0, %s6, %s4
  loop: start=0, step=1, limit=4
  $region2: #{listener_forward.11} parent=0 // loop_pre_header
    _
  $region3: #{listener_forward.11} parent=0 // loop_header
    %s9 = sphi 0, %s13
    %p10 = scmp.ge.s32.totalorder %s9, 4
    %s16 = sphi 0, %s28
    %s17 = sphi 0, %s24
    %s18 = sphi 0, %s16
    %s19 = sphi 0, %s17
    %s20 = sphi 0, %s18
    %s21 = sphi 0, %s19
    %s33 = sphi 0, %s35
    %s36 = sphi 0, %s33
    %s37 = sphi 0, %s36
    %s53 = sphi 0, %s37
    %s57 = sphi 0, %s57
    %s59 = sphi 0, %s57
    %s60 = sphi 0, %s59
    %s74 = sphi 0, %s60
    %s78 = sphi 0, %s78
    %s80 = sphi 0, %s78
    %s81 = sphi 0, %s80
    %s95 = sphi 0, %s81
    %s103 = sphi 0, %s105
    %s106 = sphi 0, %s103
    %s107 = sphi 0, %s106
    %s123 = sphi 0, %s107
  $region4: #{listener_forward.11} parent=0 // loop_header_branch
    %12 = sbr.rel (%p10) target = $region8
  $region5: #{listener_forward.11} parent=0 // loop_body
    %s14 = ssub.s32 %s9, 1
    %s15 = ssub.s32 %s9, 2
    %s22 = sadd.s32 1, %s17
    %p23 = scmp.ge.s32.totalorder %s22, 1
    %s24 = scalar_select %p23, 0, %s22
    %s25 = sadd.s32 1, %s16
    %s26 = scalar_select %p23, %s25, %s16
    %p27 = scmp.ge.s32.totalorder %s26, 2
    %s28 = scalar_select %p27, 0, %s26
    %s29 = ssub.s32 %s16, %s28
    %s30 = ssub.s32 %s17, %s24
    %s31 = sor.u32 %s29, %s30
    %p32 = scmp.eq.s32.totalorder %s31, 0
    %s34 = sadd.s32 %s33, 1
    %s35 = scalar_select %p32, %s33, %s34
    %p38 = pneg %p32
    %p39 = scmp.eq.s32.totalorder %s9, 1
    %p40 = por %p38, %p39
    %p41 = scmp.ne.s32.totalorder %s33, %s36
    %p42 = scmp.eq.s32.totalorder %s9, 0
    %p43 = por %p41, %p42
    %p44 = scmp.ne.s32.totalorder %s33, %s36
    %p45 = scmp.eq.s32.totalorder %s14, 1
    %p46 = por %p44, %p45
    %p47 = scmp.ne.s32.totalorder %s36, %s37
    %p48 = scmp.eq.s32.totalorder %s14, 0
    %p49 = por %p47, %p48
    %p50 = scmp.ne.s32.totalorder %s36, %s37
    %p51 = scmp.eq.s32.totalorder %s15, 1
    %p52 = por %p50, %p51
    %p54 = scmp.ne.s32.totalorder %s37, %s53
    %p55 = scmp.eq.s32.totalorder %s15, 0
    %p56 = por %p54, %p55
    %s58 = sadd.s32 %s57, 1
    %p61 = scmp.eq.s32.totalorder %s9, 1
    %p62 = scmp.ne.s32.totalorder %s57, %s59
    %p63 = scmp.eq.s32.totalorder %s9, 0
    %p64 = por %p62, %p63
    %p65 = scmp.ne.s32.totalorder %s57, %s59
    %p66 = scmp.eq.s32.totalorder %s14, 1
    %p67 = por %p65, %p66
    %p68 = scmp.ne.s32.totalorder %s59, %s60
    %p69 = scmp.eq.s32.totalorder %s14, 0
    %p70 = por %p68, %p69
    %p71 = scmp.ne.s32.totalorder %s59, %s60
    %p72 = scmp.eq.s32.totalorder %s15, 1
    %p73 = por %p71, %p72
    %p75 = scmp.ne.s32.totalorder %s60, %s74
    %p76 = scmp.eq.s32.totalorder %s15, 0
    %p77 = por %p75, %p76
    %s79 = sadd.s32 %s78, 1
    %p82 = scmp.eq.s32.totalorder %s9, 1
    %p83 = scmp.ne.s32.totalorder %s78, %s80
    %p84 = scmp.eq.s32.totalorder %s9, 0
    %p85 = por %p83, %p84
    %p86 = scmp.ne.s32.totalorder %s78, %s80
    %p87 = scmp.eq.s32.totalorder %s14, 1
    %p88 = por %p86, %p87
    %p89 = scmp.ne.s32.totalorder %s80, %s81
    %p90 = scmp.eq.s32.totalorder %s14, 0
    %p91 = por %p89, %p90
    %p92 = scmp.ne.s32.totalorder %s80, %s81
    %p93 = scmp.eq.s32.totalorder %s15, 1
    %p94 = por %p92, %p93
    %p96 = scmp.ne.s32.totalorder %s81, %s95
    %p97 = scmp.eq.s32.totalorder %s15, 0
    %p98 = por %p96, %p97
    %s99 = ssub.s32 %s16, %s28
    %s100 = ssub.s32 %s17, %s24
    %s101 = sor.u32 %s99, %s100
    %p102 = scmp.eq.s32.totalorder %s101, 0
    %s104 = sadd.s32 %s103, 1
    %s105 = scalar_select %p102, %s103, %s104
    %p108 = pneg %p102
    %p109 = scmp.eq.s32.totalorder %s9, 1
    %p110 = por %p108, %p109
    %p111 = scmp.ne.s32.totalorder %s103, %s106
    %p112 = scmp.eq.s32.totalorder %s9, 0
    %p113 = por %p111, %p112
    %p114 = scmp.ne.s32.totalorder %s103, %s106
    %p115 = scmp.eq.s32.totalorder %s14, 1
    %p116 = por %p114, %p115
    %p117 = scmp.ne.s32.totalorder %s106, %s107
    %p118 = scmp.eq.s32.totalorder %s14, 0
    %p119 = por %p117, %p118
    %p120 = scmp.ne.s32.totalorder %s106, %s107
    %p121 = scmp.eq.s32.totalorder %s15, 1
    %p122 = por %p120, %p121
    %p124 = scmp.ne.s32.totalorder %s107, %s123
    %p125 = scmp.eq.s32.totalorder %s15, 0
    %p126 = por %p124, %p125
    %p127 = scmp.le.s32.totalorder 1, %s9
    %p128 = scmp.lt.s32.totalorder %s9, 3
    %p129 = pnand %p127, %p128
    %p130 = pneg %p129
    // Predicated region
    $region9: #{listener_forward.11} parent=5 // pred_check
      _
    $region10: #{listener_forward.11} parent=5 // pred_check_branch
      %132 = sbr.rel (%p129) target = $region12
    $region11: #{listener_forward.11} parent=5 // pred_region
      %s133 = ssub.s32 %s9, 1
      // Predicated region
      $region13: #{listener_forward.11} parent=11 // pred_check
        %p134 = pneg %p70
      $region14: #{listener_forward.11} parent=11 // pred_check_branch
        %136 = sbr.rel (%p134) target = $region16
      $region15: #{listener_forward.11} parent=11 // pred_region
        _
      $region16: #{listener_forward.11} parent=11 // pred_fallthru
        _
      // Predicated region
      $region17: #{listener_forward.11} parent=11 // pred_check
        %p137 = pneg %p91
      $region18: #{listener_forward.11} parent=11 // pred_check_branch
        %139 = sbr.rel (%p137) target = $region20
      $region19: #{listener_forward.11} parent=11 // pred_region
        _
      $region20: #{listener_forward.11} parent=11 // pred_fallthru
        _
    $region12: #{listener_forward.11} parent=5 // pred_fallthru
      _
    %p140 = scmp.lt.s32.totalorder %s9, 2
    // Predicated region
    $region21: #{listener_forward.11} parent=5 // pred_check
      %p141 = pneg %p140
    $region22: #{listener_forward.11} parent=5 // pred_check_branch
      %143 = sbr.rel (%p141) target = $region24
    $region23: #{listener_forward.11} parent=5 // pred_region
      // Predicated region
      $region25: #{listener_forward.11} parent=23 // pred_check
        %p144 = pneg %p43
      $region26: #{listener_forward.11} parent=23 // pred_check_branch
        %146 = sbr.rel (%p144) target = $region28
      $region27: #{listener_forward.11} parent=23 // pred_region
        %p147 = scmp.lt.s32.totalorder %s16, 1
        %s148 = scalar_select %p147, %s16, 1
        %p149 = scmp.lt.s32.totalorder %s17, 0
        %s150 = scalar_select %p149, %s17, 0
        %s151 = smul.addr %s148, 1204
        %s152 = sadd.s32 %s150, %s151
        %s153 = smul.addr %s152, 8
        %s154 = scalar_lea.vmem %s0, %s153
      $region28: #{listener_forward.11} parent=23 // pred_fallthru
        _
    $region24: #{listener_forward.11} parent=5 // pred_fallthru
      _
    %p155 = scmp.le.s32.totalorder 1, %s9
    %p156 = scmp.lt.s32.totalorder %s9, 3
    %p157 = pnand %p155, %p156
    %p158 = pneg %p157
    // Predicated region
    $region29: #{listener_forward.11} parent=5 // pred_check
      _
    $region30: #{listener_forward.11} parent=5 // pred_check_branch
      %160 = sbr.rel (%p157) target = $region32
    $region31: #{listener_forward.11} parent=5 // pred_region
      %s161 = ssub.s32 %s9, 1
      %p162 = scmp.lt.s32.totalorder %s18, 1
      %s163 = scalar_select %p162, %s18, 1
      %p164 = scmp.lt.s32.totalorder %s19, 0
      %s165 = scalar_select %p164, %s19, 0
      %s166 = smul.addr %s163, 1204
      %s167 = sadd.s32 %s165, %s166
      %s168 = smul.addr %s167, 8
      %s169 = scalar_lea.vmem %s0, %s168
      %p170 = pneg %p49
      %p171 = pneg %p46
      %p172 = pneg %p70
      %p173 = pneg %p67
      %p174 = pneg %p91
      %p175 = pneg %p88
      %p176 = pneg %p119
      %p177 = pneg %p116
      %p178 = scmp.lt.s32.totalorder %s18, 1
      %s179 = scalar_select %p178, %s18, 1
      %p180 = scmp.lt.s32.totalorder %s19, 0
      %s181 = scalar_select %p180, %s19, 0
      %s182 = smul.addr %s179, 136
      %s183 = sadd.s32 %s181, %s182
      %s184 = smul.addr %s183, 8
      %s185 = scalar_lea.vmem %s3, %s184
      %p186 = scmp.lt.s32.totalorder %s18, 1
      %s187 = scalar_select %p186, %s18, 1
      %p188 = scmp.lt.s32.totalorder %s19, 0
      %s189 = scalar_select %p188, %s19, 0
      %s190 = smul.addr %s187, 1204
      %s191 = sadd.s32 %s189, %s190
      %s192 = smul.addr %s191, 8
      %s193 = scalar_lea.vmem %s0, %s192
      %p194 = scmp.lt.s32.totalorder %s18, 1
      %s195 = scalar_select %p194, %s18, 1
      %p196 = scmp.lt.s32.totalorder %s19, 0
      %s197 = scalar_select %p196, %s19, 0
      %s198 = smul.addr %s195, 136
      %s199 = sadd.s32 %s197, %s198
      %s200 = smul.addr %s199, 8
      %s201 = scalar_lea.vmem %s3, %s200
      %v202 = vld [vmem:[%s2] sm:$0xff]
      %v203 = vld [vmem:[%s2 + $0x8] sm:$0xff]
      %v204 = vld [vmem:[%s2 + $0x10] sm:$0xff]
      %v205 = vld [vmem:[%s2 + $0x18] sm:$0xff]
      %v206 = vld [vmem:[%s2 + $0x20] sm:$0xff]
      %v207 = vld [vmem:[%s2 + $0x28] sm:$0xff]
      %v208 = vld [vmem:[%s2 + $0x30] sm:$0xff]
      %v209 = vld [vmem:[%s2 + $0x38] sm:$0xff]
      loop: start=0, step=1, limit=17
      $region33: #{listener_forward.11} parent=31 // loop_pre_header
        _
      $region34: #{listener_forward.11} parent=31 // loop_header
        %s211 = sphi 0, %s215
        %p212 = scmp.ge.s32.totalorder %s211, 17
      $region35: #{listener_forward.11} parent=31 // loop_header_branch
        %214 = sbr.rel (%p212) target = $region39
      $region36: #{listener_forward.11} parent=31 // loop_body
        %s216 = smul.u32 %s211, 2
        loop: start=0, step=1, limit=11
        $region40: #{listener_forward.11} parent=36 // loop_pre_header
          _
        $region41: #{listener_forward.11} parent=36 // loop_header
          %s218 = sphi 0, %s222
          %p219 = scmp.ge.s32.totalorder %s218, 11
          %v223 = vphi 0.0, %v411
          %v224 = vphi 0.0, %v412
          %v225 = vphi 0.0, %v413
          %v226 = vphi 0.0, %v414
          %v227 = vphi 0.0, %v415
          %v228 = vphi 0.0, %v416
          %v229 = vphi 0.0, %v417
          %v230 = vphi 0.0, %v418
        $region42: #{listener_forward.11} parent=36 // loop_header_branch
          %221 = sbr.rel (%p219) target = $region46
        $region43: #{listener_forward.11} parent=36 // loop_body
          %s231 = smul.u32 %s218, 16
          %s232 = smul.addr %s231, 8
          %s233 = scalar_lea.vmem %s1, %s232
          %v234 = vld [vmem:[%s233] sm:$0xff]
          %v235 = vld [vmem:[%s233 + $0x8] sm:$0xff]
          %v236 = vld [vmem:[%s233 + $0x10] sm:$0xff]
          %v237 = vld [vmem:[%s233 + $0x18] sm:$0xff]
          %v238 = vld [vmem:[%s233 + $0x20] sm:$0xff]
          %v239 = vld [vmem:[%s233 + $0x28] sm:$0xff]
          %v240 = vld [vmem:[%s233 + $0x30] sm:$0xff]
          %v241 = vld [vmem:[%s233 + $0x38] sm:$0xff]
          %v242 = vld [vmem:[%s233 + $0x40] sm:$0xff]
          %v243 = vld [vmem:[%s233 + $0x48] sm:$0xff]
          %v244 = vld [vmem:[%s233 + $0x50] sm:$0xff]
          %v245 = vld [vmem:[%s233 + $0x58] sm:$0xff]
          %v246 = vld [vmem:[%s233 + $0x60] sm:$0xff]
          %v247 = vld [vmem:[%s233 + $0x68] sm:$0xff]
          %v248 = vld [vmem:[%s233 + $0x70] sm:$0xff]
          %v249 = vld [vmem:[%s233 + $0x78] sm:$0xff]
          %s250 = sadd.s32 %s216, %s218
          %s251 = smul.u32 %s250, 224
          %s252 = scalar_lea.vmem %s193, %s251
          %v253 = vld [vmem:[%s252] sm:$0xff]
          %v254 = vld [vmem:[%s252 + $0x8] sm:$0xff]
          %v255 = vld [vmem:[%s252 + $0x10] sm:$0xff]
          %v256 = vld [vmem:[%s252 + $0x18] sm:$0xff]
          %v257 = vld [vmem:[%s252 + $0x20] sm:$0xff]
          %v258 = vld [vmem:[%s252 + $0x28] sm:$0xff]
          %v259 = vld [vmem:[%s252 + $0x30] sm:$0xff]
          %v260 = vld [vmem:[%s252 + $0x38] sm:$0xff]
          %v261 = vld [vmem:[%s252 + $0x40] sm:$0xff]
          %v262 = vld [vmem:[%s252 + $0x48] sm:$0xff]
          %v263 = vld [vmem:[%s252 + $0x50] sm:$0xff]
          %v264 = vld [vmem:[%s252 + $0x58] sm:$0xff]
          %v265 = vld [vmem:[%s252 + $0x60] sm:$0xff]
          %v266 = vld [vmem:[%s252 + $0x68] sm:$0xff]
          %v267 = vld [vmem:[%s252 + $0x70] sm:$0xff]
          %v268 = vld [vmem:[%s252 + $0x78] sm:$0xff]
          %v269 = vld [vmem:[%s252 + $0x80] sm:$0xff]
          %v270 = vld [vmem:[%s252 + $0x88] sm:$0xff]
          %v271 = vld [vmem:[%s252 + $0x90] sm:$0xff]
          %v272 = vld [vmem:[%s252 + $0x98] sm:$0xff]
          %v273 = vld [vmem:[%s252 + $0xa0] sm:$0xff]
          %v274 = vld [vmem:[%s252 + $0xa8] sm:$0xff]
          %v275 = vld [vmem:[%s252 + $0xb0] sm:$0xff]
          %v276 = vld [vmem:[%s252 + $0xb8] sm:$0xff]
          %v277 = vld [vmem:[%s252 + $0xc0] sm:$0xff]
          %v278 = vld [vmem:[%s252 + $0xc8] sm:$0xff]
          %v279 = vld [vmem:[%s252 + $0xd0] sm:$0xff]
          %v280 = vld [vmem:[%s252 + $0xd8] sm:$0xff]
          %vm281 = vcmask 785408
          %v283 = vsel %vm281, %v235, 0
          %v286 = vsel %vm281, %v237, 0
          %v289 = vsel %vm281, %v239, 0
          %v292 = vsel %vm281, %v241, 0
          %v295 = vsel %vm281, %v243, 0
          %v298 = vsel %vm281, %v245, 0
          %v301 = vsel %vm281, %v247, 0
          %v304 = vsel %vm281, %v249, 0
          %306 = vmatprep.subr.mxu0 0.0
          %307 = vmatpush1.msra.mxu0 %v268
          %308 = vmatprep.subr.mxu0 0.0
          %309 = vmatpush1.msra.mxu0 %v267
          %310 = vmatprep.subr.mxu0 0.0
          %311 = vmatpush1.msra.mxu0 %v266
          %312 = vmatprep.subr.mxu0 0.0
          %313 = vmatpush1.msra.mxu0 %v265
          %314 = vmatprep.subr.mxu0 0.0
          %315 = vmatpush1.msra.mxu0 %v264
          %316 = vmatprep.subr.mxu0 0.0
          %317 = vmatpush1.msra.mxu0 %v263
          %318 = vmatprep.subr.mxu0 0.0
          %319 = vmatpush1.msra.mxu0 %v262
          %320 = vmatprep.subr.mxu0 0.0
          %321 = vmatpush1.msra.mxu0 %v261
          %322 = vmatprep.subr.mxu0 0.0
          %323 = vmatpush1.msra.mxu0 %v260
          %324 = vmatprep.subr.mxu0 0.0
          %325 = vmatpush1.msra.mxu0 %v259
          %326 = vmatprep.subr.mxu0 0.0
          %327 = vmatpush1.msra.mxu0 %v258
          %328 = vmatprep.subr.mxu0 0.0
          %329 = vmatpush1.msra.mxu0 %v257
          %330 = vmatprep.subr.mxu0 0.0
          %331 = vmatpush1.msra.mxu0 %v256
          %332 = vmatprep.subr.mxu0 0.0
          %333 = vmatpush1.msra.mxu0 %v255
          %334 = vmatprep.subr.mxu0 0.0
          %335 = vmatpush1.msra.mxu0 %v254
          %336 = vmatprep.subr.mxu0 0.0
          %337 = vmatpush1.msra.mxu0 %v253
          %338 = vmatprep.subr.mxu0 0.0
          %339 = vmatpush2.msra.mxu0 0.0
          %340 = vmatprep.subr.mxu0 0.0
          %341 = vmatpush2.msra.mxu0 0.0
          %342 = vmatprep.subr.mxu0 0.0
          %343 = vmatpush2.msra.mxu0 0.0
          %344 = vmatprep.subr.mxu0 0.0
          %345 = vmatpush2.msra.mxu0 0.0
          %346 = vmatprep.subr.mxu0 0.0
          %347 = vmatpush2.msra.mxu0 %v280
          %348 = vmatprep.subr.mxu0 0.0
          %349 = vmatpush2.msra.mxu0 %v279
          %350 = vmatprep.subr.mxu0 0.0
          %351 = vmatpush2.msra.mxu0 %v278
          %352 = vmatprep.subr.mxu0 0.0
          %353 = vmatpush2.msra.mxu0 %v277
          %354 = vmatprep.subr.mxu0 0.0
          %355 = vmatpush2.msra.mxu0 %v276
          %356 = vmatprep.subr.mxu0 0.0
          %357 = vmatpush2.msra.mxu0 %v275
          %358 = vmatprep.subr.mxu0 0.0
          %359 = vmatpush2.msra.mxu0 %v274
          %360 = vmatprep.subr.mxu0 0.0
          %361 = vmatpush2.msra.mxu0 %v273
          %362 = vmatprep.subr.mxu0 0.0
          %363 = vmatpush2.msra.mxu0 %v272
          %364 = vmatprep.subr.mxu0 0.0
          %365 = vmatpush2.msra.mxu0 %v271
          %366 = vmatprep.subr.mxu0 0.0
          %367 = vmatpush2.msra.mxu0 %v270
          %368 = vmatprep.subr.mxu0 0.0
          %369 = vmatpush2.msra.mxu0 %v269
          %370 = vmatprep.mubr.f32.mxu0 %v283
          %371 = vmatmul.mubr.f32.gmra.mxu0 %v234
          %v372 = vpop.f32.mrf.mxu0
          %v373 = vadd.f32 0.0, %v372
          %v374 = vpop.f32.mrf.mxu0
          %375 = vmatprep.mubr.f32.mxu0 %v286
          %376 = vmatmul.mubr.f32.gmra.mxu0 %v236
          %v377 = vpop.f32.mrf.mxu0
          %v378 = vadd.f32 0.0, %v377
          %v379 = vpop.f32.mrf.mxu0
          %380 = vmatprep.mubr.f32.mxu0 %v289
          %381 = vmatmul.mubr.f32.gmra.mxu0 %v238
          %v382 = vpop.f32.mrf.mxu0
          %v383 = vadd.f32 0.0, %v382
          %v384 = vpop.f32.mrf.mxu0
          %385 = vmatprep.mubr.f32.mxu0 %v292
          %386 = vmatmul.mubr.f32.gmra.mxu0 %v240
          %v387 = vpop.f32.mrf.mxu0
          %v388 = vadd.f32 0.0, %v387
          %v389 = vpop.f32.mrf.mxu0
          %390 = vmatprep.mubr.f32.mxu0 %v295
          %391 = vmatmul.mubr.f32.gmra.mxu0 %v242
          %v392 = vpop.f32.mrf.mxu0
          %v393 = vadd.f32 0.0, %v392
          %v394 = vpop.f32.mrf.mxu0
          %395 = vmatprep.mubr.f32.mxu0 %v298
          %396 = vmatmul.mubr.f32.gmra.mxu0 %v244
          %v397 = vpop.f32.mrf.mxu0
          %v398 = vadd.f32 0.0, %v397
          %v399 = vpop.f32.mrf.mxu0
          %400 = vmatprep.mubr.f32.mxu0 %v301
          %401 = vmatmul.mubr.f32.gmra.mxu0 %v246
          %v402 = vpop.f32.mrf.mxu0
          %v403 = vadd.f32 0.0, %v402
          %v404 = vpop.f32.mrf.mxu0
          %405 = vmatprep.mubr.f32.mxu0 %v304
          %406 = vmatmul.mubr.f32.gmra.mxu0 %v248
          %v407 = vpop.f32.mrf.mxu0
          %v408 = vadd.f32 0.0, %v407
          %v409 = vpop.f32.mrf.mxu0
          %410 = vdwg.mxu0
          %v411 = vadd.f32 %v223, %v373
          %v412 = vadd.f32 %v224, %v378
          %v413 = vadd.f32 %v225, %v383
          %v414 = vadd.f32 %v226, %v388
          %v415 = vadd.f32 %v227, %v393
          %v416 = vadd.f32 %v228, %v398
          %v417 = vadd.f32 %v229, %v403
          %v418 = vadd.f32 %v230, %v408
        $region44: #{listener_forward.11} parent=36 // loop_footer
          %s222 = sadd.s32 1, %s218
        $region45: #{listener_forward.11} parent=36 // loop_footer_branch
          %217 = sbr.rel target = $region41
        $region46: #{listener_forward.11} parent=36 // loop_exit
          _
        %420 = vset.pattern.permute.xlu0 0
        %421 = vperm.xlu0 %420, %v202
        %v422 = vpop.permute.xlu0 %421
        %425 = vset.pattern.permute.xlu0 0
        %426 = vperm.xlu0 %425, %v203
        %v427 = vpop.permute.xlu0 %426
        %430 = vset.pattern.permute.xlu0 0
        %431 = vperm.xlu0 %430, %v204
        %v432 = vpop.permute.xlu0 %431
        %435 = vset.pattern.permute.xlu0 0
        %436 = vperm.xlu0 %435, %v205
        %v437 = vpop.permute.xlu0 %436
        %440 = vset.pattern.permute.xlu0 0
        %441 = vperm.xlu0 %440, %v206
        %v442 = vpop.permute.xlu0 %441
        %445 = vset.pattern.permute.xlu0 0
        %446 = vperm.xlu0 %445, %v207
        %v447 = vpop.permute.xlu0 %446
        %450 = vset.pattern.permute.xlu0 0
        %451 = vperm.xlu0 %450, %v208
        %v452 = vpop.permute.xlu0 %451
        %455 = vset.pattern.permute.xlu0 0
        %456 = vperm.xlu0 %455, %v209
        %v457 = vpop.permute.xlu0 %456
        %v459 = vadd.f32 %v223, %v422
        %v460 = vadd.f32 %v224, %v427
        %v461 = vadd.f32 %v225, %v432
        %v462 = vadd.f32 %v226, %v437
        %v463 = vadd.f32 %v227, %v442
        %v464 = vadd.f32 %v228, %v447
        %v465 = vadd.f32 %v229, %v452
        %v466 = vadd.f32 %v230, %v457
        %vm467 = vcmp.ge.f32.partialorder %v459, 0.0
        %vm468 = vcmp.ge.f32.partialorder %v460, 0.0
        %vm469 = vcmp.ge.f32.partialorder %v461, 0.0
        %vm470 = vcmp.ge.f32.partialorder %v462, 0.0
        %vm471 = vcmp.ge.f32.partialorder %v463, 0.0
        %vm472 = vcmp.ge.f32.partialorder %v464, 0.0
        %vm473 = vcmp.ge.f32.partialorder %v465, 0.0
        %vm474 = vcmp.ge.f32.partialorder %v466, 0.0
        %v475 = vmul.f32 %v459, 0.01
        %v476 = vmul.f32 %v460, 0.01
        %v477 = vmul.f32 %v461, 0.01
        %v478 = vmul.f32 %v462, 0.01
        %v479 = vmul.f32 %v463, 0.01
        %v480 = vmul.f32 %v464, 0.01
        %v481 = vmul.f32 %v465, 0.01
        %v482 = vmul.f32 %v466, 0.01
        %v483 = vsel %vm467, %v459, %v475
        %v484 = vsel %vm468, %v460, %v476
        %v485 = vsel %vm469, %v461, %v477
        %v486 = vsel %vm470, %v462, %v478
        %v487 = vsel %vm471, %v463, %v479
        %v488 = vsel %vm472, %v464, %v480
        %v489 = vsel %vm473, %v465, %v481
        %v490 = vsel %vm474, %v466, %v482
        %s491 = smul.u32 %s211, 64
        %s492 = scalar_lea.vmem %s201, %s491
        %vm493 = vcmask 64512
        %494 = vst.msk [vmem:[%s492] sm:$0xff] %vm493, %v483
        %495 = vst.msk [vmem:[%s492 + $0x8] sm:$0xff] %vm493, %v484
        %496 = vst.msk [vmem:[%s492 + $0x10] sm:$0xff] %vm493, %v485
        %497 = vst.msk [vmem:[%s492 + $0x18] sm:$0xff] %vm493, %v486
        %498 = vst.msk [vmem:[%s492 + $0x20] sm:$0xff] %vm493, %v487
        %499 = vst.msk [vmem:[%s492 + $0x28] sm:$0xff] %vm493, %v488
        %500 = vst.msk [vmem:[%s492 + $0x30] sm:$0xff] %vm493, %v489
        %501 = vst.msk [vmem:[%s492 + $0x38] sm:$0xff] %vm493, %v490
      $region37: #{listener_forward.11} parent=31 // loop_footer
        %s215 = sadd.s32 1, %s211
      $region38: #{listener_forward.11} parent=31 // loop_footer_branch
        %210 = sbr.rel target = $region34
      $region39: #{listener_forward.11} parent=31 // loop_exit
        _
      %p502 = scmp.lt.s32.totalorder %s18, 1
      %s503 = scalar_select %p502, %s18, 1
      %p504 = scmp.lt.s32.totalorder %s19, 0
      %s505 = scalar_select %p504, %s19, 0
      %s506 = smul.addr %s503, 136
      %s507 = sadd.s32 %s505, %s506
      %s508 = smul.addr %s507, 8
      %s509 = scalar_lea.vmem %s3, %s508
      // Predicated region
      $region47: #{listener_forward.11} parent=31 // pred_check
        %p510 = pneg %p116
      $region48: #{listener_forward.11} parent=31 // pred_check_branch
        %512 = sbr.rel (%p510) target = $region50
      $region49: #{listener_forward.11} parent=31 // pred_region
        _
      $region50: #{listener_forward.11} parent=31 // pred_fallthru
        _
    $region32: #{listener_forward.11} parent=5 // pred_fallthru
      _
    %p513 = scmp.le.s32.totalorder 2, %s9
    // Predicated region
    $region51: #{listener_forward.11} parent=5 // pred_check
      %p514 = pneg %p513
    $region52: #{listener_forward.11} parent=5 // pred_check_branch
      %516 = sbr.rel (%p514) target = $region54
    $region53: #{listener_forward.11} parent=5 // pred_region
      %s517 = ssub.s32 %s9, 2
      // Predicated region
      $region55: #{listener_forward.11} parent=53 // pred_check
        %p518 = pneg %p122
      $region56: #{listener_forward.11} parent=53 // pred_check_branch
        %520 = sbr.rel (%p518) target = $region58
      $region57: #{listener_forward.11} parent=53 // pred_region
        %p521 = scmp.lt.s32.totalorder %s20, 1
        %s522 = scalar_select %p521, %s20, 1
        %p523 = scmp.lt.s32.totalorder %s21, 0
        %s524 = scalar_select %p523, %s21, 0
        %s525 = smul.addr %s522, 136
        %s526 = sadd.s32 %s524, %s525
        %s527 = smul.addr %s526, 8
        %s528 = scalar_lea.vmem %s3, %s527
      $region58: #{listener_forward.11} parent=53 // pred_fallthru
        _
    $region54: #{listener_forward.11} parent=5 // pred_fallthru
      _
  $region6: #{listener_forward.11} parent=0 // loop_footer
    %s13 = sadd.s32 1, %s9
  $region7: #{listener_forward.11} parent=0 // loop_footer_branch
    %8 = sbr.rel target = $region3
  $region8: #{listener_forward.11} parent=0 // loop_exit
    _

// kernel: listener_forward.12
$region0: #{listener_forward.12}
  #allocation0 [shape = 'u32[]', space=smem, size = 0x4, offset = 0x4, fixed_abs, tag = 'smem constant byte address 0x4 - core index']
  #allocation1 [shape = 'u32[144,128]{1,0:T(1,128)}', space=vmem, size = 0x12000, scoped, tag = 'internal scratch']
  #allocation2 [shape = 'f32[16,32]{1,0:T(8,128)}', space=vmem, size = 0x2000, scoped, tag = 'scratch operand']
  %s0 = inlined_call_operand.vmem [shape: f32[16,1088], index: 0, kind: input, shape index: {}]
  %s1 = inlined_call_operand.vmem [shape: f32[1088,32], index: 1, kind: input, shape index: {}]
  %s2 = inlined_call_operand.vmem [shape: f32[1,32], index: 2, kind: input, shape index: {}]
  %s3 = inlined_call_operand.vmem [shape: f32[16,32], index: 3, kind: output, shape index: {}]
  %s4 = sld [smem:[#allocation0]]
  $region22: #{listener_forward.12} parent=0
    _
  %s6 = ssub.s32 1, %s4
  %s7 = scalar_select 0, %s6, %s4
  // Predicated region
  $region2: #{listener_forward.12} parent=0 // pred_check
    _
  $region3: #{listener_forward.12} parent=0 // pred_check_branch
    %9 = sbr.rel (0) target = $region5
  $region4: #{listener_forward.12} parent=0 // pred_region
    _
  $region5: #{listener_forward.12} parent=0 // pred_fallthru
    _
  // Predicated region
  $region6: #{listener_forward.12} parent=0 // pred_check
    _
  $region7: #{listener_forward.12} parent=0 // pred_check_branch
    %11 = sbr.rel (0) target = $region9
  $region8: #{listener_forward.12} parent=0 // pred_region
    _
  $region9: #{listener_forward.12} parent=0 // pred_fallthru
    _
  // Predicated region
  $region10: #{listener_forward.12} parent=0 // pred_check
    _
  $region11: #{listener_forward.12} parent=0 // pred_check_branch
    %13 = sbr.rel (0) target = $region13
  $region12: #{listener_forward.12} parent=0 // pred_region
    _
  $region13: #{listener_forward.12} parent=0 // pred_fallthru
    _
  %v14 = vld [vmem:[%s0] sm:$0xff]
  %v15 = vld [vmem:[%s0 + $0x8] sm:$0xff]
  %v16 = vld [vmem:[%s0 + $0x10] sm:$0xff]
  %v17 = vld [vmem:[%s0 + $0x18] sm:$0xff]
  %v18 = vld [vmem:[%s0 + $0x20] sm:$0xff]
  %v19 = vld [vmem:[%s0 + $0x28] sm:$0xff]
  %v20 = vld [vmem:[%s0 + $0x30] sm:$0xff]
  %v21 = vld [vmem:[%s0 + $0x38] sm:$0xff]
  %v22 = vld [vmem:[%s0 + $0x40] sm:$0xff]
  %v23 = vld [vmem:[%s0 + $0x48] sm:$0xff]
  %v24 = vld [vmem:[%s0 + $0x50] sm:$0xff]
  %v25 = vld [vmem:[%s0 + $0x58] sm:$0xff]
  %v26 = vld [vmem:[%s0 + $0x60] sm:$0xff]
  %v27 = vld [vmem:[%s0 + $0x68] sm:$0xff]
  %v28 = vld [vmem:[%s0 + $0x70] sm:$0xff]
  %v29 = vld [vmem:[%s0 + $0x78] sm:$0xff]
  %v30 = vld [vmem:[%s0 + $0x80] sm:$0xff]
  %v31 = vld [vmem:[%s0 + $0x88] sm:$0xff]
  %v32 = vld [vmem:[%s1] sm:$0xff]
  %v33 = vld [vmem:[%s1 + $0x8] sm:$0xff]
  %v34 = vld [vmem:[%s1 + $0x10] sm:$0xff]
  %v35 = vld [vmem:[%s1 + $0x18] sm:$0xff]
  %v36 = vld [vmem:[%s1 + $0x20] sm:$0xff]
  %v37 = vld [vmem:[%s1 + $0x28] sm:$0xff]
  %v38 = vld [vmem:[%s1 + $0x30] sm:$0xff]
  %v39 = vld [vmem:[%s1 + $0x38] sm:$0xff]
  %v40 = vld [vmem:[%s1 + $0x40] sm:$0xff]
  %v41 = vld [vmem:[%s1 + $0x48] sm:$0xff]
  %v42 = vld [vmem:[%s1 + $0x50] sm:$0xff]
  %v43 = vld [vmem:[%s1 + $0x58] sm:$0xff]
  %v44 = vld [vmem:[%s1 + $0x60] sm:$0xff]
  %v45 = vld [vmem:[%s1 + $0x68] sm:$0xff]
  %v46 = vld [vmem:[%s1 + $0x70] sm:$0xff]
  %v47 = vld [vmem:[%s1 + $0x78] sm:$0xff]
  %v48 = vld [vmem:[%s1 + $0x80] sm:$0xff]
  %v49 = vld [vmem:[%s1 + $0x88] sm:$0xff]
  %v50 = vld [vmem:[%s1 + $0x90] sm:$0xff]
  %v51 = vld [vmem:[%s1 + $0x98] sm:$0xff]
  %v52 = vld [vmem:[%s1 + $0xa0] sm:$0xff]
  %v53 = vld [vmem:[%s1 + $0xa8] sm:$0xff]
  %v54 = vld [vmem:[%s1 + $0xb0] sm:$0xff]
  %v55 = vld [vmem:[%s1 + $0xb8] sm:$0xff]
  %v56 = vld [vmem:[%s1 + $0xc0] sm:$0xff]
  %v57 = vld [vmem:[%s1 + $0xc8] sm:$0xff]
  %v58 = vld [vmem:[%s1 + $0xd0] sm:$0xff]
  %v59 = vld [vmem:[%s1 + $0xd8] sm:$0xff]
  %v60 = vld [vmem:[%s1 + $0xe0] sm:$0xff]
  %v61 = vld [vmem:[%s1 + $0xe8] sm:$0xff]
  %v62 = vld [vmem:[%s1 + $0xf0] sm:$0xff]
  %v63 = vld [vmem:[%s1 + $0xf8] sm:$0xff]
  %v64 = vld [vmem:[%s1 + $0x100] sm:$0xff]
  %v65 = vld [vmem:[%s1 + $0x108] sm:$0xff]
  %v66 = vld [vmem:[%s1 + $0x110] sm:$0xff]
  %v67 = vld [vmem:[%s1 + $0x118] sm:$0xff]
  %v68 = vld [vmem:[%s1 + $0x120] sm:$0xff]
  %v69 = vld [vmem:[%s1 + $0x128] sm:$0xff]
  %v70 = vld [vmem:[%s1 + $0x130] sm:$0xff]
  %v71 = vld [vmem:[%s1 + $0x138] sm:$0xff]
  %v72 = vld [vmem:[%s1 + $0x140] sm:$0xff]
  %v73 = vld [vmem:[%s1 + $0x148] sm:$0xff]
  %v74 = vld [vmem:[%s1 + $0x150] sm:$0xff]
  %v75 = vld [vmem:[%s1 + $0x158] sm:$0xff]
  %v76 = vld [vmem:[%s1 + $0x160] sm:$0xff]
  %v77 = vld [vmem:[%s1 + $0x168] sm:$0xff]
  %v78 = vld [vmem:[%s1 + $0x170] sm:$0xff]
  %v79 = vld [vmem:[%s1 + $0x178] sm:$0xff]
  %v80 = vld [vmem:[%s1 + $0x180] sm:$0xff]
  %v81 = vld [vmem:[%s1 + $0x188] sm:$0xff]
  %v82 = vld [vmem:[%s1 + $0x190] sm:$0xff]
  %v83 = vld [vmem:[%s1 + $0x198] sm:$0xff]
  %v84 = vld [vmem:[%s1 + $0x1a0] sm:$0xff]
  %v85 = vld [vmem:[%s1 + $0x1a8] sm:$0xff]
  %v86 = vld [vmem:[%s1 + $0x1b0] sm:$0xff]
  %v87 = vld [vmem:[%s1 + $0x1b8] sm:$0xff]
  %v88 = vld [vmem:[%s1 + $0x1c0] sm:$0xff]
  %v89 = vld [vmem:[%s1 + $0x1c8] sm:$0xff]
  %v90 = vld [vmem:[%s1 + $0x1d0] sm:$0xff]
  %v91 = vld [vmem:[%s1 + $0x1d8] sm:$0xff]
  %v92 = vld [vmem:[%s1 + $0x1e0] sm:$0xff]
  %v93 = vld [vmem:[%s1 + $0x1e8] sm:$0xff]
  %v94 = vld [vmem:[%s1 + $0x1f0] sm:$0xff]
  %v95 = vld [vmem:[%s1 + $0x1f8] sm:$0xff]
  %v96 = vld [vmem:[%s1 + $0x200] sm:$0xff]
  %v97 = vld [vmem:[%s1 + $0x208] sm:$0xff]
  %v98 = vld [vmem:[%s1 + $0x210] sm:$0xff]
  %v99 = vld [vmem:[%s1 + $0x218] sm:$0xff]
  %v100 = vld [vmem:[%s1 + $0x220] sm:$0xff]
  %v101 = vld [vmem:[%s1 + $0x228] sm:$0xff]
  %v102 = vld [vmem:[%s1 + $0x230] sm:$0xff]
  %v103 = vld [vmem:[%s1 + $0x238] sm:$0xff]
  %v104 = vld [vmem:[%s1 + $0x240] sm:$0xff]
  %v105 = vld [vmem:[%s1 + $0x248] sm:$0xff]
  %v106 = vld [vmem:[%s1 + $0x250] sm:$0xff]
  %v107 = vld [vmem:[%s1 + $0x258] sm:$0xff]
  %v108 = vld [vmem:[%s1 + $0x260] sm:$0xff]
  %v109 = vld [vmem:[%s1 + $0x268] sm:$0xff]
  %v110 = vld [vmem:[%s1 + $0x270] sm:$0xff]
  %v111 = vld [vmem:[%s1 + $0x278] sm:$0xff]
  %v112 = vld [vmem:[%s1 + $0x280] sm:$0xff]
  %v113 = vld [vmem:[%s1 + $0x288] sm:$0xff]
  %v114 = vld [vmem:[%s1 + $0x290] sm:$0xff]
  %v115 = vld [vmem:[%s1 + $0x298] sm:$0xff]
  %v116 = vld [vmem:[%s1 + $0x2a0] sm:$0xff]
  %v117 = vld [vmem:[%s1 + $0x2a8] sm:$0xff]
  %v118 = vld [vmem:[%s1 + $0x2b0] sm:$0xff]
  %v119 = vld [vmem:[%s1 + $0x2b8] sm:$0xff]
  %v120 = vld [vmem:[%s1 + $0x2c0] sm:$0xff]
  %v121 = vld [vmem:[%s1 + $0x2c8] sm:$0xff]
  %v122 = vld [vmem:[%s1 + $0x2d0] sm:$0xff]
  %v123 = vld [vmem:[%s1 + $0x2d8] sm:$0xff]
  %v124 = vld [vmem:[%s1 + $0x2e0] sm:$0xff]
  %v125 = vld [vmem:[%s1 + $0x2e8] sm:$0xff]
  %v126 = vld [vmem:[%s1 + $0x2f0] sm:$0xff]
  %v127 = vld [vmem:[%s1 + $0x2f8] sm:$0xff]
  %v128 = vld [vmem:[%s1 + $0x300] sm:$0xff]
  %v129 = vld [vmem:[%s1 + $0x308] sm:$0xff]
  %v130 = vld [vmem:[%s1 + $0x310] sm:$0xff]
  %v131 = vld [vmem:[%s1 + $0x318] sm:$0xff]
  %v132 = vld [vmem:[%s1 + $0x320] sm:$0xff]
  %v133 = vld [vmem:[%s1 + $0x328] sm:$0xff]
  %v134 = vld [vmem:[%s1 + $0x330] sm:$0xff]
  %v135 = vld [vmem:[%s1 + $0x338] sm:$0xff]
  %v136 = vld [vmem:[%s1 + $0x340] sm:$0xff]
  %v137 = vld [vmem:[%s1 + $0x348] sm:$0xff]
  %v138 = vld [vmem:[%s1 + $0x350] sm:$0xff]
  %v139 = vld [vmem:[%s1 + $0x358] sm:$0xff]
  %v140 = vld [vmem:[%s1 + $0x360] sm:$0xff]
  %v141 = vld [vmem:[%s1 + $0x368] sm:$0xff]
  %v142 = vld [vmem:[%s1 + $0x370] sm:$0xff]
  %v143 = vld [vmem:[%s1 + $0x378] sm:$0xff]
  %v144 = vld [vmem:[%s1 + $0x380] sm:$0xff]
  %v145 = vld [vmem:[%s1 + $0x388] sm:$0xff]
  %v146 = vld [vmem:[%s1 + $0x390] sm:$0xff]
  %v147 = vld [vmem:[%s1 + $0x398] sm:$0xff]
  %v148 = vld [vmem:[%s1 + $0x3a0] sm:$0xff]
  %v149 = vld [vmem:[%s1 + $0x3a8] sm:$0xff]
  %v150 = vld [vmem:[%s1 + $0x3b0] sm:$0xff]
  %v151 = vld [vmem:[%s1 + $0x3b8] sm:$0xff]
  %v152 = vld [vmem:[%s1 + $0x3c0] sm:$0xff]
  %v153 = vld [vmem:[%s1 + $0x3c8] sm:$0xff]
  %v154 = vld [vmem:[%s1 + $0x3d0] sm:$0xff]
  %v155 = vld [vmem:[%s1 + $0x3d8] sm:$0xff]
  %v156 = vld [vmem:[%s1 + $0x3e0] sm:$0xff]
  %v157 = vld [vmem:[%s1 + $0x3e8] sm:$0xff]
  %v158 = vld [vmem:[%s1 + $0x3f0] sm:$0xff]
  %v159 = vld [vmem:[%s1 + $0x3f8] sm:$0xff]
  %v160 = vld [vmem:[%s1 + $0x400] sm:$0xff]
  %v161 = vld [vmem:[%s1 + $0x408] sm:$0xff]
  %v162 = vld [vmem:[%s1 + $0x410] sm:$0xff]
  %v163 = vld [vmem:[%s1 + $0x418] sm:$0xff]
  %v164 = vld [vmem:[%s1 + $0x420] sm:$0xff]
  %v165 = vld [vmem:[%s1 + $0x428] sm:$0xff]
  %v166 = vld [vmem:[%s1 + $0x430] sm:$0xff]
  %v167 = vld [vmem:[%s1 + $0x438] sm:$0xff]
  %v168 = vld [vmem:[%s2] sm:$0x1]
  %v170 = vlaneseq
  %v171 = vshrl.u32 %v170, 7
  %v172 = vsub.s32 0, %v171
  %v173 = vrot.slane %v168, %v172
  %vm175 = vcmask 523264
  %v177 = vsel %vm175, %v22, 0
  %v180 = vsel %vm175, %v31, 0
  %182 = vmatprep.subr.mxu0 0.0
  %183 = vmatpush1.msra.mxu0 %v47
  %184 = vmatprep.subr.mxu0 0.0
  %185 = vmatpush1.msra.mxu0 %v46
  %186 = vmatprep.subr.mxu0 0.0
  %187 = vmatpush1.msra.mxu0 %v45
  %188 = vmatprep.subr.mxu0 0.0
  %189 = vmatpush1.msra.mxu0 %v44
  %190 = vmatprep.subr.mxu0 0.0
  %191 = vmatpush1.msra.mxu0 %v43
  %192 = vmatprep.subr.mxu0 0.0
  %193 = vmatpush1.msra.mxu0 %v42
  %194 = vmatprep.subr.mxu0 0.0
  %195 = vmatpush1.msra.mxu0 %v41
  %196 = vmatprep.subr.mxu0 0.0
  %197 = vmatpush1.msra.mxu0 %v40
  %198 = vmatprep.subr.mxu0 0.0
  %199 = vmatpush1.msra.mxu0 %v39
  %200 = vmatprep.subr.mxu0 0.0
  %201 = vmatpush1.msra.mxu0 %v38
  %202 = vmatprep.subr.mxu0 0.0
  %203 = vmatpush1.msra.mxu0 %v37
  %204 = vmatprep.subr.mxu0 0.0
  %205 = vmatpush1.msra.mxu0 %v36
  %206 = vmatprep.subr.mxu0 0.0
  %207 = vmatpush1.msra.mxu0 %v35
  %208 = vmatprep.subr.mxu0 0.0
  %209 = vmatpush1.msra.mxu0 %v34
  %210 = vmatprep.subr.mxu0 0.0
  %211 = vmatpush1.msra.mxu0 %v33
  %212 = vmatprep.subr.mxu0 0.0
  %213 = vmatpush1.msra.mxu0 %v32
  %214 = vmatprep.subr.mxu0 0.0
  %215 = vmatpush2.msra.mxu0 %v63
  %216 = vmatprep.subr.mxu0 0.0
  %217 = vmatpush2.msra.mxu0 %v62
  %218 = vmatprep.subr.mxu0 0.0
  %219 = vmatpush2.msra.mxu0 %v61
  %220 = vmatprep.subr.mxu0 0.0
  %221 = vmatpush2.msra.mxu0 %v60
  %222 = vmatprep.subr.mxu0 0.0
  %223 = vmatpush2.msra.mxu0 %v59
  %224 = vmatprep.subr.mxu0 0.0
  %225 = vmatpush2.msra.mxu0 %v58
  %226 = vmatprep.subr.mxu0 0.0
  %227 = vmatpush2.msra.mxu0 %v57
  %228 = vmatprep.subr.mxu0 0.0
  %229 = vmatpush2.msra.mxu0 %v56
  %230 = vmatprep.subr.mxu0 0.0
  %231 = vmatpush2.msra.mxu0 %v55
  %232 = vmatprep.subr.mxu0 0.0
  %233 = vmatpush2.msra.mxu0 %v54
  %234 = vmatprep.subr.mxu0 0.0
  %235 = vmatpush2.msra.mxu0 %v53
  %236 = vmatprep.subr.mxu0 0.0
  %237 = vmatpush2.msra.mxu0 %v52
  %238 = vmatprep.subr.mxu0 0.0
  %239 = vmatpush2.msra.mxu0 %v51
  %240 = vmatprep.subr.mxu0 0.0
  %241 = vmatpush2.msra.mxu0 %v50
  %242 = vmatprep.subr.mxu0 0.0
  %243 = vmatpush2.msra.mxu0 %v49
  %244 = vmatprep.subr.mxu0 0.0
  %245 = vmatpush2.msra.mxu0 %v48
  %246 = vmatprep.mubr.f32.mxu0 %v15
  %247 = vmatmul.mubr.f32.gmra.mxu0 %v14
  %v248 = vpop.f32.mrf.mxu0
  %v249 = vadd.f32 %v173, %v248
  %v250 = vpop.f32.mrf.mxu0
  %251 = vmatprep.mubr.f32.mxu0 %v24
  %252 = vmatmul.mubr.f32.gmra.mxu0 %v23
  %v253 = vpop.f32.mrf.mxu0
  %v254 = vadd.f32 %v173, %v253
  %v255 = vpop.f32.mrf.mxu0
  %256 = vdwg.mxu0
  %257 = vmatprep.subr.mxu0 0.0
  %258 = vmatpush1.msra.mxu0 %v79
  %259 = vmatprep.subr.mxu0 0.0
  %260 = vmatpush1.msra.mxu0 %v78
  %261 = vmatprep.subr.mxu0 0.0
  %262 = vmatpush1.msra.mxu0 %v77
  %263 = vmatprep.subr.mxu0 0.0
  %264 = vmatpush1.msra.mxu0 %v76
  %265 = vmatprep.subr.mxu0 0.0
  %266 = vmatpush1.msra.mxu0 %v75
  %267 = vmatprep.subr.mxu0 0.0
  %268 = vmatpush1.msra.mxu0 %v74
  %269 = vmatprep.subr.mxu0 0.0
  %270 = vmatpush1.msra.mxu0 %v73
  %271 = vmatprep.subr.mxu0 0.0
  %272 = vmatpush1.msra.mxu0 %v72
  %273 = vmatprep.subr.mxu0 0.0
  %274 = vmatpush1.msra.mxu0 %v71
  %275 = vmatprep.subr.mxu0 0.0
  %276 = vmatpush1.msra.mxu0 %v70
  %277 = vmatprep.subr.mxu0 0.0
  %278 = vmatpush1.msra.mxu0 %v69
  %279 = vmatprep.subr.mxu0 0.0
  %280 = vmatpush1.msra.mxu0 %v68
  %281 = vmatprep.subr.mxu0 0.0
  %282 = vmatpush1.msra.mxu0 %v67
  %283 = vmatprep.subr.mxu0 0.0
  %284 = vmatpush1.msra.mxu0 %v66
  %285 = vmatprep.subr.mxu0 0.0
  %286 = vmatpush1.msra.mxu0 %v65
  %287 = vmatprep.subr.mxu0 0.0
  %288 = vmatpush1.msra.mxu0 %v64
  %289 = vmatprep.subr.mxu0 0.0
  %290 = vmatpush2.msra.mxu0 %v95
  %291 = vmatprep.subr.mxu0 0.0
  %292 = vmatpush2.msra.mxu0 %v94
  %293 = vmatprep.subr.mxu0 0.0
  %294 = vmatpush2.msra.mxu0 %v93
  %295 = vmatprep.subr.mxu0 0.0
  %296 = vmatpush2.msra.mxu0 %v92
  %297 = vmatprep.subr.mxu0 0.0
  %298 = vmatpush2.msra.mxu0 %v91
  %299 = vmatprep.subr.mxu0 0.0
  %300 = vmatpush2.msra.mxu0 %v90
  %301 = vmatprep.subr.mxu0 0.0
  %302 = vmatpush2.msra.mxu0 %v89
  %303 = vmatprep.subr.mxu0 0.0
  %304 = vmatpush2.msra.mxu0 %v88
  %305 = vmatprep.subr.mxu0 0.0
  %306 = vmatpush2.msra.mxu0 %v87
  %307 = vmatprep.subr.mxu0 0.0
  %308 = vmatpush2.msra.mxu0 %v86
  %309 = vmatprep.subr.mxu0 0.0
  %310 = vmatpush2.msra.mxu0 %v85
  %311 = vmatprep.subr.mxu0 0.0
  %312 = vmatpush2.msra.mxu0 %v84
  %313 = vmatprep.subr.mxu0 0.0
  %314 = vmatpush2.msra.mxu0 %v83
  %315 = vmatprep.subr.mxu0 0.0
  %316 = vmatpush2.msra.mxu0 %v82
  %317 = vmatprep.subr.mxu0 0.0
  %318 = vmatpush2.msra.mxu0 %v81
  %319 = vmatprep.subr.mxu0 0.0
  %320 = vmatpush2.msra.mxu0 %v80
  %321 = vmatprep.mubr.f32.mxu0 %v17
  %322 = vmatmul.mubr.f32.gmra.mxu0 %v16
  %v323 = vpop.f32.mrf.mxu0
  %v324 = vadd.f32 %v249, %v323
  %v325 = vpop.f32.mrf.mxu0
  %326 = vmatprep.mubr.f32.mxu0 %v26
  %327 = vmatmul.mubr.f32.gmra.mxu0 %v25
  %v328 = vpop.f32.mrf.mxu0
  %v329 = vadd.f32 %v254, %v328
  %v330 = vpop.f32.mrf.mxu0
  %331 = vdwg.mxu0
  %332 = vmatprep.subr.mxu0 0.0
  %333 = vmatpush1.msra.mxu0 %v111
  %334 = vmatprep.subr.mxu0 0.0
  %335 = vmatpush1.msra.mxu0 %v110
  %336 = vmatprep.subr.mxu0 0.0
  %337 = vmatpush1.msra.mxu0 %v109
  %338 = vmatprep.subr.mxu0 0.0
  %339 = vmatpush1.msra.mxu0 %v108
  %340 = vmatprep.subr.mxu0 0.0
  %341 = vmatpush1.msra.mxu0 %v107
  %342 = vmatprep.subr.mxu0 0.0
  %343 = vmatpush1.msra.mxu0 %v106
  %344 = vmatprep.subr.mxu0 0.0
  %345 = vmatpush1.msra.mxu0 %v105
  %346 = vmatprep.subr.mxu0 0.0
  %347 = vmatpush1.msra.mxu0 %v104
  %348 = vmatprep.subr.mxu0 0.0
  %349 = vmatpush1.msra.mxu0 %v103
  %350 = vmatprep.subr.mxu0 0.0
  %351 = vmatpush1.msra.mxu0 %v102
  %352 = vmatprep.subr.mxu0 0.0
  %353 = vmatpush1.msra.mxu0 %v101
  %354 = vmatprep.subr.mxu0 0.0
  %355 = vmatpush1.msra.mxu0 %v100
  %356 = vmatprep.subr.mxu0 0.0
  %357 = vmatpush1.msra.mxu0 %v99
  %358 = vmatprep.subr.mxu0 0.0
  %359 = vmatpush1.msra.mxu0 %v98
  %360 = vmatprep.subr.mxu0 0.0
  %361 = vmatpush1.msra.mxu0 %v97
  %362 = vmatprep.subr.mxu0 0.0
  %363 = vmatpush1.msra.mxu0 %v96
  %364 = vmatprep.subr.mxu0 0.0
  %365 = vmatpush2.msra.mxu0 %v127
  %366 = vmatprep.subr.mxu0 0.0
  %367 = vmatpush2.msra.mxu0 %v126
  %368 = vmatprep.subr.mxu0 0.0
  %369 = vmatpush2.msra.mxu0 %v125
  %370 = vmatprep.subr.mxu0 0.0
  %371 = vmatpush2.msra.mxu0 %v124
  %372 = vmatprep.subr.mxu0 0.0
  %373 = vmatpush2.msra.mxu0 %v123
  %374 = vmatprep.subr.mxu0 0.0
  %375 = vmatpush2.msra.mxu0 %v122
  %376 = vmatprep.subr.mxu0 0.0
  %377 = vmatpush2.msra.mxu0 %v121
  %378 = vmatprep.subr.mxu0 0.0
  %379 = vmatpush2.msra.mxu0 %v120
  %380 = vmatprep.subr.mxu0 0.0
  %381 = vmatpush2.msra.mxu0 %v119
  %382 = vmatprep.subr.mxu0 0.0
  %383 = vmatpush2.msra.mxu0 %v118
  %384 = vmatprep.subr.mxu0 0.0
  %385 = vmatpush2.msra.mxu0 %v117
  %386 = vmatprep.subr.mxu0 0.0
  %387 = vmatpush2.msra.mxu0 %v116
  %388 = vmatprep.subr.mxu0 0.0
  %389 = vmatpush2.msra.mxu0 %v115
  %390 = vmatprep.subr.mxu0 0.0
  %391 = vmatpush2.msra.mxu0 %v114
  %392 = vmatprep.subr.mxu0 0.0
  %393 = vmatpush2.msra.mxu0 %v113
  %394 = vmatprep.subr.mxu0 0.0
  %395 = vmatpush2.msra.mxu0 %v112
  %396 = vmatprep.mubr.f32.mxu0 %v19
  %397 = vmatmul.mubr.f32.gmra.mxu0 %v18
  %v398 = vpop.f32.mrf.mxu0
  %v399 = vadd.f32 %v324, %v398
  %v400 = vpop.f32.mrf.mxu0
  %401 = vmatprep.mubr.f32.mxu0 %v28
  %402 = vmatmul.mubr.f32.gmra.mxu0 %v27
  %v403 = vpop.f32.mrf.mxu0
  %v404 = vadd.f32 %v329, %v403
  %v405 = vpop.f32.mrf.mxu0
  %406 = vdwg.mxu0
  %407 = vmatprep.subr.mxu0 0.0
  %408 = vmatpush1.msra.mxu0 %v143
  %409 = vmatprep.subr.mxu0 0.0
  %410 = vmatpush1.msra.mxu0 %v142
  %411 = vmatprep.subr.mxu0 0.0
  %412 = vmatpush1.msra.mxu0 %v141
  %413 = vmatprep.subr.mxu0 0.0
  %414 = vmatpush1.msra.mxu0 %v140
  %415 = vmatprep.subr.mxu0 0.0
  %416 = vmatpush1.msra.mxu0 %v139
  %417 = vmatprep.subr.mxu0 0.0
  %418 = vmatpush1.msra.mxu0 %v138
  %419 = vmatprep.subr.mxu0 0.0
  %420 = vmatpush1.msra.mxu0 %v137
  %421 = vmatprep.subr.mxu0 0.0
  %422 = vmatpush1.msra.mxu0 %v136
  %423 = vmatprep.subr.mxu0 0.0
  %424 = vmatpush1.msra.mxu0 %v135
  %425 = vmatprep.subr.mxu0 0.0
  %426 = vmatpush1.msra.mxu0 %v134
  %427 = vmatprep.subr.mxu0 0.0
  %428 = vmatpush1.msra.mxu0 %v133
  %429 = vmatprep.subr.mxu0 0.0
  %430 = vmatpush1.msra.mxu0 %v132
  %431 = vmatprep.subr.mxu0 0.0
  %432 = vmatpush1.msra.mxu0 %v131
  %433 = vmatprep.subr.mxu0 0.0
  %434 = vmatpush1.msra.mxu0 %v130
  %435 = vmatprep.subr.mxu0 0.0
  %436 = vmatpush1.msra.mxu0 %v129
  %437 = vmatprep.subr.mxu0 0.0
  %438 = vmatpush1.msra.mxu0 %v128
  %439 = vmatprep.subr.mxu0 0.0
  %440 = vmatpush2.msra.mxu0 %v159
  %441 = vmatprep.subr.mxu0 0.0
  %442 = vmatpush2.msra.mxu0 %v158
  %443 = vmatprep.subr.mxu0 0.0
  %444 = vmatpush2.msra.mxu0 %v157
  %445 = vmatprep.subr.mxu0 0.0
  %446 = vmatpush2.msra.mxu0 %v156
  %447 = vmatprep.subr.mxu0 0.0
  %448 = vmatpush2.msra.mxu0 %v155
  %449 = vmatprep.subr.mxu0 0.0
  %450 = vmatpush2.msra.mxu0 %v154
  %451 = vmatprep.subr.mxu0 0.0
  %452 = vmatpush2.msra.mxu0 %v153
  %453 = vmatprep.subr.mxu0 0.0
  %454 = vmatpush2.msra.mxu0 %v152
  %455 = vmatprep.subr.mxu0 0.0
  %456 = vmatpush2.msra.mxu0 %v151
  %457 = vmatprep.subr.mxu0 0.0
  %458 = vmatpush2.msra.mxu0 %v150
  %459 = vmatprep.subr.mxu0 0.0
  %460 = vmatpush2.msra.mxu0 %v149
  %461 = vmatprep.subr.mxu0 0.0
  %462 = vmatpush2.msra.mxu0 %v148
  %463 = vmatprep.subr.mxu0 0.0
  %464 = vmatpush2.msra.mxu0 %v147
  %465 = vmatprep.subr.mxu0 0.0
  %466 = vmatpush2.msra.mxu0 %v146
  %467 = vmatprep.subr.mxu0 0.0
  %468 = vmatpush2.msra.mxu0 %v145
  %469 = vmatprep.subr.mxu0 0.0
  %470 = vmatpush2.msra.mxu0 %v144
  %471 = vmatprep.mubr.f32.mxu0 %v21
  %472 = vmatmul.mubr.f32.gmra.mxu0 %v20
  %v473 = vpop.f32.mrf.mxu0
  %v474 = vadd.f32 %v399, %v473
  %v475 = vpop.f32.mrf.mxu0
  %476 = vmatprep.mubr.f32.mxu0 %v30
  %477 = vmatmul.mubr.f32.gmra.mxu0 %v29
  %v478 = vpop.f32.mrf.mxu0
  %v479 = vadd.f32 %v404, %v478
  %v480 = vpop.f32.mrf.mxu0
  %481 = vdwg.mxu0
  %482 = vmatprep.subr.mxu0 0.0
  %483 = vmatpush1.msra.mxu0 0.0
  %484 = vmatprep.subr.mxu0 0.0
  %485 = vmatpush1.msra.mxu0 0.0
  %486 = vmatprep.subr.mxu0 0.0
  %487 = vmatpush1.msra.mxu0 0.0
  %488 = vmatprep.subr.mxu0 0.0
  %489 = vmatpush1.msra.mxu0 0.0
  %490 = vmatprep.subr.mxu0 0.0
  %491 = vmatpush1.msra.mxu0 0.0
  %492 = vmatprep.subr.mxu0 0.0
  %493 = vmatpush1.msra.mxu0 0.0
  %494 = vmatprep.subr.mxu0 0.0
  %495 = vmatpush1.msra.mxu0 0.0
  %496 = vmatprep.subr.mxu0 0.0
  %497 = vmatpush1.msra.mxu0 0.0
  %498 = vmatprep.subr.mxu0 0.0
  %499 = vmatpush1.msra.mxu0 %v167
  %500 = vmatprep.subr.mxu0 0.0
  %501 = vmatpush1.msra.mxu0 %v166
  %502 = vmatprep.subr.mxu0 0.0
  %503 = vmatpush1.msra.mxu0 %v165
  %504 = vmatprep.subr.mxu0 0.0
  %505 = vmatpush1.msra.mxu0 %v164
  %506 = vmatprep.subr.mxu0 0.0
  %507 = vmatpush1.msra.mxu0 %v163
  %508 = vmatprep.subr.mxu0 0.0
  %509 = vmatpush1.msra.mxu0 %v162
  %510 = vmatprep.subr.mxu0 0.0
  %511 = vmatpush1.msra.mxu0 %v161
  %512 = vmatprep.subr.mxu0 0.0
  %513 = vmatpush1.msra.mxu0 %v160
  %514 = vmatprep.subr.mxu0 0.0
  %515 = vmatpush2.msra.mxu0 0.0
  %516 = vmatprep.subr.mxu0 0.0
  %517 = vmatpush2.msra.mxu0 0.0
  %518 = vmatprep.subr.mxu0 0.0
  %519 = vmatpush2.msra.mxu0 0.0
  %520 = vmatprep.subr.mxu0 0.0
  %521 = vmatpush2.msra.mxu0 0.0
  %522 = vmatprep.subr.mxu0 0.0
  %523 = vmatpush2.msra.mxu0 0.0
  %524 = vmatprep.subr.mxu0 0.0
  %525 = vmatpush2.msra.mxu0 0.0
  %526 = vmatprep.subr.mxu0 0.0
  %527 = vmatpush2.msra.mxu0 0.0
  %528 = vmatprep.subr.mxu0 0.0
  %529 = vmatpush2.msra.mxu0 0.0
  %530 = vmatprep.subr.mxu0 0.0
  %531 = vmatpush2.msra.mxu0 0.0
  %532 = vmatprep.subr.mxu0 0.0
  %533 = vmatpush2.msra.mxu0 0.0
  %534 = vmatprep.subr.mxu0 0.0
  %535 = vmatpush2.msra.mxu0 0.0
  %536 = vmatprep.subr.mxu0 0.0
  %537 = vmatpush2.msra.mxu0 0.0
  %538 = vmatprep.subr.mxu0 0.0
  %539 = vmatpush2.msra.mxu0 0.0
  %540 = vmatprep.subr.mxu0 0.0
  %541 = vmatpush2.msra.mxu0 0.0
  %542 = vmatprep.subr.mxu0 0.0
  %543 = vmatpush2.msra.mxu0 0.0
  %544 = vmatprep.subr.mxu0 0.0
  %545 = vmatpush2.msra.mxu0 0.0
  %546 = vmatprep.mubr.f32.mxu0 0.0
  %547 = vmatmul.mubr.f32.gmra.mxu0 %v177
  %v548 = vpop.f32.mrf.mxu0
  %v549 = vadd.f32 %v474, %v548
  %v550 = vpop.f32.mrf.mxu0
  %551 = vmatprep.mubr.f32.mxu0 0.0
  %552 = vmatmul.mubr.f32.gmra.mxu0 %v180
  %v553 = vpop.f32.mrf.mxu0
  %v554 = vadd.f32 %v479, %v553
  %v555 = vpop.f32.mrf.mxu0
  %556 = vdwg.mxu0
  %vm557 = vcmp.ge.f32.partialorder %v549, 0.0
  %vm558 = vcmp.ge.f32.partialorder %v554, 0.0
  %v559 = vmul.f32 %v549, 0.01
  %v560 = vmul.f32 %v554, 0.01
  %v561 = vsel %vm557, %v549, %v559
  %v562 = vsel %vm558, %v554, %v560
  %vm563 = vcmask 261120
  %564 = vst.msk [vmem:[%s3] sm:$0xff] %vm563, %v561
  %565 = vst.msk [vmem:[%s3 + $0x8] sm:$0xff] %vm563, %v562
  // Predicated region
  $region14: #{listener_forward.12} parent=0 // pred_check
    _
  $region15: #{listener_forward.12} parent=0 // pred_check_branch
    %567 = sbr.rel (0) target = $region17
  $region16: #{listener_forward.12} parent=0 // pred_region
    _
  $region17: #{listener_forward.12} parent=0 // pred_fallthru
    _
  // Predicated region
  $region18: #{listener_forward.12} parent=0 // pred_check
    _
  $region19: #{listener_forward.12} parent=0 // pred_check_branch
    %569 = sbr.rel (0) target = $region21
  $region20: #{listener_forward.12} parent=0 // pred_region
    _
  $region21: #{listener_forward.12} parent=0 // pred_fallthru
    _

// kernel: listener_forward.13
$region0: #{listener_forward.13}
  #allocation0 [shape = 'u32[]', space=smem, size = 0x4, offset = 0x4, fixed_abs, tag = 'smem constant byte address 0x4 - core index']
  #allocation1 [shape = 'u32[144,128]{1,0:T(1,128)}', space=vmem, size = 0x12000, scoped, tag = 'internal scratch']
  #allocation2 [shape = 'f32[16,256]{1,0:T(8,128)}', space=vmem, size = 0x4000, scoped, tag = 'scratch operand']
  %s0 = inlined_call_operand.vmem [shape: f32[16,32], index: 0, kind: input, shape index: {}]
  %s1 = inlined_call_operand.vmem [shape: f32[32,256], index: 1, kind: input, shape index: {}]
  %s2 = inlined_call_operand.vmem [shape: f32[1,256], index: 2, kind: input, shape index: {}]
  %s3 = inlined_call_operand.vmem [shape: f32[16,256], index: 3, kind: output, shape index: {}]
  %s4 = sld [smem:[#allocation0]]
  $region22: #{listener_forward.13} parent=0
    _
  %s6 = ssub.s32 1, %s4
  %s7 = scalar_select 0, %s6, %s4
  // Predicated region
  $region2: #{listener_forward.13} parent=0 // pred_check
    _
  $region3: #{listener_forward.13} parent=0 // pred_check_branch
    %9 = sbr.rel (0) target = $region5
  $region4: #{listener_forward.13} parent=0 // pred_region
    _
  $region5: #{listener_forward.13} parent=0 // pred_fallthru
    _
  // Predicated region
  $region6: #{listener_forward.13} parent=0 // pred_check
    _
  $region7: #{listener_forward.13} parent=0 // pred_check_branch
    %11 = sbr.rel (0) target = $region9
  $region8: #{listener_forward.13} parent=0 // pred_region
    _
  $region9: #{listener_forward.13} parent=0 // pred_fallthru
    _
  // Predicated region
  $region10: #{listener_forward.13} parent=0 // pred_check
    _
  $region11: #{listener_forward.13} parent=0 // pred_check_branch
    %13 = sbr.rel (0) target = $region13
  $region12: #{listener_forward.13} parent=0 // pred_region
    _
  $region13: #{listener_forward.13} parent=0 // pred_fallthru
    _
  %v14 = vld [vmem:[%s0] sm:$0xff]
  %v15 = vld [vmem:[%s0 + $0x8] sm:$0xff]
  %vm16 = vcmask 261120
  %v17 = vsel %vm16, %v14, 0.0
  %18 = vadd.xlane.f32.xlu0 %v17
  %v19 = vpop.xlane.xlu0 %18
  %v20 = vsel %vm16, %v15, 0.0
  %21 = vadd.xlane.f32.xlu0 %v20
  %v22 = vpop.xlane.xlu0 %21
  %v23 = vrcp.pop 32.0
  %v24 = vmul.f32 %v19, %v23
  %v25 = vmul.f32 %v22, %v23
  %v26 = vsub.f32 %v14, %v24
  %v27 = vsub.f32 %v15, %v25
  %v28 = vmul.f32 %v26, %v26
  %v29 = vmul.f32 %v27, %v27
  %v30 = vsel %vm16, %v28, 0.0
  %31 = vadd.xlane.f32.xlu0 %v30
  %v32 = vpop.xlane.xlu0 %31
  %v33 = vsel %vm16, %v29, 0.0
  %34 = vadd.xlane.f32.xlu0 %v33
  %v35 = vpop.xlane.xlu0 %34
  %v36 = vmul.f32 %v32, %v23
  %v37 = vmul.f32 %v35, %v23
  %v38 = vadd.f32 %v36, 1e-05
  %v39 = vadd.f32 %v37, 1e-05
  %v40 = vrsqrt.pop %v38
  %v41 = vrsqrt.pop %v39
  %v42 = vmul.f32 %v26, %v40
  %v43 = vmul.f32 %v27, %v41
  %v44 = vld [vmem:[%s1] sm:$0xff]
  %v45 = vld [vmem:[%s1 + $0x8] sm:$0xff]
  %v46 = vld [vmem:[%s1 + $0x10] sm:$0xff]
  %v47 = vld [vmem:[%s1 + $0x18] sm:$0xff]
  %v48 = vld [vmem:[%s1 + $0x20] sm:$0xff]
  %v49 = vld [vmem:[%s1 + $0x28] sm:$0xff]
  %v50 = vld [vmem:[%s1 + $0x30] sm:$0xff]
  %v51 = vld [vmem:[%s1 + $0x38] sm:$0xff]
  %v52 = vld [vmem:[%s2] sm:$0x3]
  %v54 = vlaneseq
  %v55 = vshrl.u32 %v54, 7
  %v56 = vsub.s32 0, %v55
  %v57 = vrot.slane %v52, %v56
  %v58 = vlaneseq
  %v59 = vshrl.u32 %v58, 7
  %v60 = vsub.s32 1, %v59
  %v61 = vrot.slane %v52, %v60
  %v65 = vsel %vm16, %v42, 0
  %v68 = vsel %vm16, %v43, 0
  %70 = vmatprep.subr.mxu0 0.0
  %71 = vmatpush1.msra.mxu0 0.0
  %72 = vmatprep.subr.mxu0 0.0
  %73 = vmatpush1.msra.mxu0 0.0
  %74 = vmatprep.subr.mxu0 0.0
  %75 = vmatpush1.msra.mxu0 0.0
  %76 = vmatprep.subr.mxu0 0.0
  %77 = vmatpush1.msra.mxu0 0.0
  %78 = vmatprep.subr.mxu0 0.0
  %79 = vmatpush1.msra.mxu0 0.0
  %80 = vmatprep.subr.mxu0 0.0
  %81 = vmatpush1.msra.mxu0 0.0
  %82 = vmatprep.subr.mxu0 0.0
  %83 = vmatpush1.msra.mxu0 0.0
  %84 = vmatprep.subr.mxu0 0.0
  %85 = vmatpush1.msra.mxu0 0.0
  %86 = vmatprep.subr.mxu0 0.0
  %87 = vmatpush1.msra.mxu0 0.0
  %88 = vmatprep.subr.mxu0 0.0
  %89 = vmatpush1.msra.mxu0 0.0
  %90 = vmatprep.subr.mxu0 0.0
  %91 = vmatpush1.msra.mxu0 0.0
  %92 = vmatprep.subr.mxu0 0.0
  %93 = vmatpush1.msra.mxu0 0.0
  %94 = vmatprep.subr.mxu0 %v51
  %95 = vmatpush1.msra.mxu0 %v50
  %96 = vmatprep.subr.mxu0 %v49
  %97 = vmatpush1.msra.mxu0 %v48
  %98 = vmatprep.subr.mxu0 %v47
  %99 = vmatpush1.msra.mxu0 %v46
  %100 = vmatprep.subr.mxu0 %v45
  %101 = vmatpush1.msra.mxu0 %v44
  %102 = vmatprep.subr.mxu0 0.0
  %103 = vmatpush2.msra.mxu0 0.0
  %104 = vmatprep.subr.mxu0 0.0
  %105 = vmatpush2.msra.mxu0 0.0
  %106 = vmatprep.subr.mxu0 0.0
  %107 = vmatpush2.msra.mxu0 0.0
  %108 = vmatprep.subr.mxu0 0.0
  %109 = vmatpush2.msra.mxu0 0.0
  %110 = vmatprep.subr.mxu0 0.0
  %111 = vmatpush2.msra.mxu0 0.0
  %112 = vmatprep.subr.mxu0 0.0
  %113 = vmatpush2.msra.mxu0 0.0
  %114 = vmatprep.subr.mxu0 0.0
  %115 = vmatpush2.msra.mxu0 0.0
  %116 = vmatprep.subr.mxu0 0.0
  %117 = vmatpush2.msra.mxu0 0.0
  %118 = vmatprep.subr.mxu0 0.0
  %119 = vmatpush2.msra.mxu0 0.0
  %120 = vmatprep.subr.mxu0 0.0
  %121 = vmatpush2.msra.mxu0 0.0
  %122 = vmatprep.subr.mxu0 0.0
  %123 = vmatpush2.msra.mxu0 0.0
  %124 = vmatprep.subr.mxu0 0.0
  %125 = vmatpush2.msra.mxu0 0.0
  %126 = vmatprep.subr.mxu0 0.0
  %127 = vmatpush2.msra.mxu0 0.0
  %128 = vmatprep.subr.mxu0 0.0
  %129 = vmatpush2.msra.mxu0 0.0
  %130 = vmatprep.subr.mxu0 0.0
  %131 = vmatpush2.msra.mxu0 0.0
  %132 = vmatprep.subr.mxu0 0.0
  %133 = vmatpush2.msra.mxu0 0.0
  %134 = vmatprep.mubr.f32.mxu0 0.0
  %135 = vmatmul.mubr.f32.gmra.mxu0 %v65
  %v136 = vpop.f32.mrf.mxu0
  %v137 = vadd.f32 %v57, %v136
  %v138 = vpop.f32.mrf.mxu0
  %v139 = vadd.f32 %v61, %v138
  %140 = vmatprep.mubr.f32.mxu0 0.0
  %141 = vmatmul.mubr.f32.gmra.mxu0 %v68
  %v142 = vpop.f32.mrf.mxu0
  %v143 = vadd.f32 %v57, %v142
  %v144 = vpop.f32.mrf.mxu0
  %v145 = vadd.f32 %v61, %v144
  %146 = vdwg.mxu0
  %147 = vst [vmem:[%s3] sm:$0xff] %v137
  %148 = vst [vmem:[%s3 + $0x8] sm:$0xff] %v139
  %149 = vst [vmem:[%s3 + $0x10] sm:$0xff] %v143
  %150 = vst [vmem:[%s3 + $0x18] sm:$0xff] %v145
  // Predicated region
  $region14: #{listener_forward.13} parent=0 // pred_check
    _
  $region15: #{listener_forward.13} parent=0 // pred_check_branch
    %152 = sbr.rel (0) target = $region17
  $region16: #{listener_forward.13} parent=0 // pred_region
    _
  $region17: #{listener_forward.13} parent=0 // pred_fallthru
    _
  // Predicated region
  $region18: #{listener_forward.13} parent=0 // pred_check
    _
  $region19: #{listener_forward.13} parent=0 // pred_check_branch
    %154 = sbr.rel (0) target = $region21
  $region20: #{listener_forward.13} parent=0 // pred_region
    _
  $region21: #{listener_forward.13} parent=0 // pred_fallthru
    _

// kernel: squeeze.10
$region0: #{squeeze.10}
  %s0 = inlined_call_operand.vmem [shape: f32[1,1,2,256], index: 0, kind: input, shape index: {}]
  %s1 = inlined_call_operand.vmem [shape: f32[2,8,32], index: 1, kind: output, shape index: {}]
  $region1: #{squeeze.10} parent=0
    #allocation0 [shape = 'u8[8192]{0}', space=vmem, size = 0x2000, scoped, tag = 'scoped mem for input reshape']
    %s3 = sshll.u32 1, 2
    %s4 = ssub.s32 %s3, 1
    %s5 = scalar_lea.vmem %s0, 2
    %v6 = vld [vmem:[%s5] sm:%s4]
    %s7 = scalar_lea.vmem [#allocation0], 8
    %8 = vst [vmem:[%s7] sm:%s4] %v6
    %v9 = vld [vmem:[%s0] sm:%s4]
    %10 = vst [vmem:[#allocation0] sm:%s4] %v9
    %v11 = vld [vmem:[#allocation0] sm:$0x3]
    %vm12 = vcmask 261120
    %13 = vst.msk [vmem:[%s1] ss:$8 sm:$0x3] %vm12, %v11
    %s14 = scalar_lea.vmem [#allocation0], 8
    %v15 = vld [vmem:[%s14] sm:$0x3]
    %vm16 = vcmask 261120
    %s17 = scalar_lea.vmem %s1, 4
    %18 = vst.msk [vmem:[%s17] ss:$8 sm:$0x3] %vm16, %v15
    %v19 = vld.sshfl [vmem:[#allocation0] sm:$0xff pattern:$0x99999180]
    %20 = vrot.lane.b32.xlu0 %v19, 96
    %v21 = vpop.permute.xlu0 %20
    %vm22 = vcmask 261120
    %s23 = scalar_lea.vmem %s1, 1
    %24 = vst.msk [vmem:[%s23] ss:$4 sm:$0xf] %vm22, %v21
    %v25 = vld.sshfl [vmem:[#allocation0] sm:$0xff pattern:$0x99999180]
    %26 = vrot.lane.b32.xlu0 %v25, 64
    %v27 = vpop.permute.xlu0 %26
    %vm28 = vcmask 261120
    %s29 = scalar_lea.vmem %s1, 2
    %30 = vst.msk [vmem:[%s29] ss:$4 sm:$0xf] %vm28, %v27
    %v31 = vld.sshfl [vmem:[#allocation0] sm:$0xff pattern:$0x99999180]
    %32 = vrot.lane.b32.xlu0 %v31, 32
    %v33 = vpop.permute.xlu0 %32
    %vm34 = vcmask 261120
    %s35 = scalar_lea.vmem %s1, 3
    %36 = vst.msk [vmem:[%s35] ss:$4 sm:$0xf] %vm34, %v33

// kernel: listener_forward.14
$region0: #{listener_forward.14}
  #allocation0 [shape = 'u32[]', space=smem, size = 0x4, offset = 0x4, fixed_abs, tag = 'smem constant byte address 0x4 - core index']
  #allocation1 [shape = 'u32[144,128]{1,0:T(1,128)}', space=vmem, size = 0x12000, scoped, tag = 'internal scratch']
  #allocation2 [shape = 'f32[2,32]{1,0:T(2,128)}', space=vmem, size = 0x400, scoped, tag = 'scratch operand']
  #allocation3 [shape = 'f32[2,32]{1,0:T(2,128)}', space=vmem, size = 0x400, scoped, tag = 'scratch operand']
  %s0 = inlined_call_operand.vmem [shape: f32[2,1,8,2,128], index: 0, kind: input, shape index: {}]
  %s1 = inlined_call_operand.vmem [shape: f32[2,32,128], index: 1, kind: input, shape index: {}]
  %s2 = inlined_call_operand.vmem [shape: f32[2,1,2,256], index: 2, kind: output, shape index: {}]
  %s3 = sld [smem:[#allocation0]]
  $region45: #{listener_forward.14} parent=0
    _
  %s5 = ssub.s32 1, %s3
  %s6 = scalar_select 0, %s5, %s3
  loop: start=0, step=1, limit=4
  $region2: #{listener_forward.14} parent=0 // loop_pre_header
    _
  $region3: #{listener_forward.14} parent=0 // loop_header
    %s8 = sphi 0, %s12
    %p9 = scmp.ge.s32.totalorder %s8, 4
    %s15 = sphi 0, %s27
    %s16 = sphi 0, %s23
    %s17 = sphi 0, %s15
    %s18 = sphi 0, %s16
    %s19 = sphi 0, %s17
    %s20 = sphi 0, %s18
    %s32 = sphi 0, %s34
    %s35 = sphi 0, %s32
    %s36 = sphi 0, %s35
    %s52 = sphi 0, %s36
    %s58 = sphi 0, %s60
    %s61 = sphi 0, %s58
    %s62 = sphi 0, %s61
    %s78 = sphi 0, %s62
    %s86 = sphi 0, %s88
    %s89 = sphi 0, %s86
    %s90 = sphi 0, %s89
    %s106 = sphi 0, %s90
  $region4: #{listener_forward.14} parent=0 // loop_header_branch
    %11 = sbr.rel (%p9) target = $region8
  $region5: #{listener_forward.14} parent=0 // loop_body
    %s13 = ssub.s32 %s8, 1
    %s14 = ssub.s32 %s8, 2
    %s21 = sadd.s32 1, %s16
    %p22 = scmp.ge.s32.totalorder %s21, 1
    %s23 = scalar_select %p22, 0, %s21
    %s24 = sadd.s32 1, %s15
    %s25 = scalar_select %p22, %s24, %s15
    %p26 = scmp.ge.s32.totalorder %s25, 2
    %s27 = scalar_select %p26, 0, %s25
    %s28 = ssub.s32 %s15, %s27
    %s29 = ssub.s32 %s16, %s23
    %s30 = sor.u32 %s28, %s29
    %p31 = scmp.eq.s32.totalorder %s30, 0
    %s33 = sadd.s32 %s32, 1
    %s34 = scalar_select %p31, %s32, %s33
    %p37 = pneg %p31
    %p38 = scmp.eq.s32.totalorder %s8, 1
    %p39 = por %p37, %p38
    %p40 = scmp.ne.s32.totalorder %s32, %s35
    %p41 = scmp.eq.s32.totalorder %s8, 0
    %p42 = por %p40, %p41
    %p43 = scmp.ne.s32.totalorder %s32, %s35
    %p44 = scmp.eq.s32.totalorder %s13, 1
    %p45 = por %p43, %p44
    %p46 = scmp.ne.s32.totalorder %s35, %s36
    %p47 = scmp.eq.s32.totalorder %s13, 0
    %p48 = por %p46, %p47
    %p49 = scmp.ne.s32.totalorder %s35, %s36
    %p50 = scmp.eq.s32.totalorder %s14, 1
    %p51 = por %p49, %p50
    %p53 = scmp.ne.s32.totalorder %s36, %s52
    %p54 = scmp.eq.s32.totalorder %s14, 0
    %p55 = por %p53, %p54
    %s56 = ssub.s32 %s15, %s27
    %p57 = scmp.eq.s32.totalorder %s56, 0
    %s59 = sadd.s32 %s58, 1
    %s60 = scalar_select %p57, %s58, %s59
    %p63 = pneg %p57
    %p64 = scmp.eq.s32.totalorder %s8, 1
    %p65 = por %p63, %p64
    %p66 = scmp.ne.s32.totalorder %s58, %s61
    %p67 = scmp.eq.s32.totalorder %s8, 0
    %p68 = por %p66, %p67
    %p69 = scmp.ne.s32.totalorder %s58, %s61
    %p70 = scmp.eq.s32.totalorder %s13, 1
    %p71 = por %p69, %p70
    %p72 = scmp.ne.s32.totalorder %s61, %s62
    %p73 = scmp.eq.s32.totalorder %s13, 0
    %p74 = por %p72, %p73
    %p75 = scmp.ne.s32.totalorder %s61, %s62
    %p76 = scmp.eq.s32.totalorder %s14, 1
    %p77 = por %p75, %p76
    %p79 = scmp.ne.s32.totalorder %s62, %s78
    %p80 = scmp.eq.s32.totalorder %s14, 0
    %p81 = por %p79, %p80
    %s82 = ssub.s32 %s15, %s27
    %s83 = ssub.s32 %s16, %s23
    %s84 = sor.u32 %s82, %s83
    %p85 = scmp.eq.s32.totalorder %s84, 0
    %s87 = sadd.s32 %s86, 1
    %s88 = scalar_select %p85, %s86, %s87
    %p91 = pneg %p85
    %p92 = scmp.eq.s32.totalorder %s8, 1
    %p93 = por %p91, %p92
    %p94 = scmp.ne.s32.totalorder %s86, %s89
    %p95 = scmp.eq.s32.totalorder %s8, 0
    %p96 = por %p94, %p95
    %p97 = scmp.ne.s32.totalorder %s86, %s89
    %p98 = scmp.eq.s32.totalorder %s13, 1
    %p99 = por %p97, %p98
    %p100 = scmp.ne.s32.totalorder %s89, %s90
    %p101 = scmp.eq.s32.totalorder %s13, 0
    %p102 = por %p100, %p101
    %p103 = scmp.ne.s32.totalorder %s89, %s90
    %p104 = scmp.eq.s32.totalorder %s14, 1
    %p105 = por %p103, %p104
    %p107 = scmp.ne.s32.totalorder %s90, %s106
    %p108 = scmp.eq.s32.totalorder %s14, 0
    %p109 = por %p107, %p108
    %p110 = scmp.le.s32.totalorder 1, %s8
    %p111 = scmp.lt.s32.totalorder %s8, 3
    %p112 = pnand %p110, %p111
    %p113 = pneg %p112
    // Predicated region
    $region9: #{listener_forward.14} parent=5 // pred_check
      _
    $region10: #{listener_forward.14} parent=5 // pred_check_branch
      %115 = sbr.rel (%p112) target = $region12
    $region11: #{listener_forward.14} parent=5 // pred_region
      %s116 = ssub.s32 %s8, 1
    $region12: #{listener_forward.14} parent=5 // pred_fallthru
      _
    %p117 = scmp.lt.s32.totalorder %s8, 2
    // Predicated region
    $region13: #{listener_forward.14} parent=5 // pred_check
      %p118 = pneg %p117
    $region14: #{listener_forward.14} parent=5 // pred_check_branch
      %120 = sbr.rel (%p118) target = $region16
    $region15: #{listener_forward.14} parent=5 // pred_region
      // Predicated region
      $region17: #{listener_forward.14} parent=15 // pred_check
        %p121 = pneg %p42
      $region18: #{listener_forward.14} parent=15 // pred_check_branch
        %123 = sbr.rel (%p121) target = $region20
      $region19: #{listener_forward.14} parent=15 // pred_region
        %p124 = scmp.lt.s32.totalorder %s15, 1
        %s125 = scalar_select %p124, %s15, 1
        %p126 = scmp.lt.s32.totalorder %s16, 0
        %s127 = scalar_select %p126, %s16, 0
        %s128 = smul.addr %s127, 8
        %s129 = smul.addr %s125, 8
        %s130 = sadd.s32 %s128, %s129
        %s131 = smul.addr %s130, 2
        %s132 = scalar_lea.vmem %s0, %s131
      $region20: #{listener_forward.14} parent=15 // pred_fallthru
        _
      // Predicated region
      $region21: #{listener_forward.14} parent=15 // pred_check
        %p133 = pneg %p68
      $region22: #{listener_forward.14} parent=15 // pred_check_branch
        %135 = sbr.rel (%p133) target = $region24
      $region23: #{listener_forward.14} parent=15 // pred_region
        %p136 = scmp.lt.s32.totalorder %s15, 1
        %s137 = scalar_select %p136, %s15, 1
        %s138 = smul.addr %s137, 4
        %s139 = smul.addr %s138, 8
        %s140 = scalar_lea.vmem %s1, %s139
      $region24: #{listener_forward.14} parent=15 // pred_fallthru
        _
    $region16: #{listener_forward.14} parent=5 // pred_fallthru
      _
    %p141 = scmp.le.s32.totalorder 1, %s8
    %p142 = scmp.lt.s32.totalorder %s8, 3
    %p143 = pnand %p141, %p142
    %p144 = pneg %p143
    // Predicated region
    $region25: #{listener_forward.14} parent=5 // pred_check
      _
    $region26: #{listener_forward.14} parent=5 // pred_check_branch
      %146 = sbr.rel (%p143) target = $region28
    $region27: #{listener_forward.14} parent=5 // pred_region
      %s147 = ssub.s32 %s8, 1
      %p148 = scmp.lt.s32.totalorder %s17, 1
      %s149 = scalar_select %p148, %s17, 1
      %p150 = scmp.lt.s32.totalorder %s18, 0
      %s151 = scalar_select %p150, %s18, 0
      %s152 = smul.addr %s151, 8
      %s153 = smul.addr %s149, 8
      %s154 = sadd.s32 %s152, %s153
      %s155 = smul.addr %s154, 2
      %s156 = scalar_lea.vmem %s0, %s155
      %p157 = pneg %p48
      %p158 = pneg %p45
      %p159 = scmp.lt.s32.totalorder %s17, 1
      %s160 = scalar_select %p159, %s17, 1
      %s161 = smul.addr %s160, 4
      %s162 = smul.addr %s161, 8
      %s163 = scalar_lea.vmem %s1, %s162
      %p164 = pneg %p74
      %p165 = pneg %p71
      %p166 = pneg %p102
      %p167 = pneg %p99
      %p168 = scmp.lt.s32.totalorder %s17, 1
      %s169 = scalar_select %p168, %s17, 1
      %p170 = scmp.lt.s32.totalorder %s18, 0
      %s171 = scalar_select %p170, %s18, 0
      %s172 = smul.addr %s171, 2
      %s173 = smul.addr %s169, 2
      %s174 = sadd.s32 %s172, %s173
      %s175 = smul.addr %s174, 2
      %s176 = scalar_lea.vmem %s2, %s175
      %p177 = scmp.lt.s32.totalorder %s17, 1
      %s178 = scalar_select %p177, %s17, 1
      %p179 = scmp.lt.s32.totalorder %s18, 0
      %s180 = scalar_select %p179, %s18, 0
      %s181 = smul.addr %s180, 8
      %s182 = smul.addr %s178, 8
      %s183 = sadd.s32 %s181, %s182
      %s184 = smul.addr %s183, 2
      %s185 = scalar_lea.vmem %s0, %s184
      %p186 = scmp.lt.s32.totalorder %s17, 1
      %s187 = scalar_select %p186, %s17, 1
      %s188 = smul.addr %s187, 4
      %s189 = smul.addr %s188, 8
      %s190 = scalar_lea.vmem %s1, %s189
      %p191 = scmp.lt.s32.totalorder %s17, 1
      %s192 = scalar_select %p191, %s17, 1
      %p193 = scmp.lt.s32.totalorder %s18, 0
      %s194 = scalar_select %p193, %s18, 0
      %s195 = smul.addr %s194, 2
      %s196 = smul.addr %s192, 2
      %s197 = sadd.s32 %s195, %s196
      %s198 = smul.addr %s197, 2
      %s199 = scalar_lea.vmem %s2, %s198
      %p200 = scmp.eq.s32.totalorder %s18, 0
      // Predicated region
      $region29: #{listener_forward.14} parent=27 // pred_check
        %p201 = pneg %p200
      $region30: #{listener_forward.14} parent=27 // pred_check_branch
        %203 = sbr.rel (%p201) target = $region32
      $region31: #{listener_forward.14} parent=27 // pred_region
        %vm204 = vcmask 254976
        %205 = vst.msk [vmem:[#allocation2] sm:$0x3] %vm204, 0.0
        %206 = vst.msk [vmem:[#allocation3] sm:$0x3] %vm204, 0.0
      $region32: #{listener_forward.14} parent=27 // pred_fallthru
        _
      %v207 = vld [vmem:[%s190] sm:$0xff]
      %v208 = vld [vmem:[%s190 + $0x8] sm:$0xff]
      %v209 = vld [vmem:[%s190 + $0x10] sm:$0xff]
      %v210 = vld [vmem:[%s190 + $0x18] sm:$0xff]
      %v211 = vld [vmem:[#allocation2] sm:$0x3]
      %v212 = vld [vmem:[#allocation3] sm:$0x3]
      %v213 = vld [vmem:[%s185] sm:$0x3]
      %vm214 = vcmask 261120
      %v216 = vsel %vm214, %v211, 0
      %218 = vmatprep.subr.mxu0 0.0
      %219 = vmatpush1.msra.mxu0 0.0
      %220 = vmatprep.subr.mxu0 0.0
      %221 = vmatpush1.msra.mxu0 0.0
      %222 = vmatprep.subr.mxu0 0.0
      %223 = vmatpush1.msra.mxu0 0.0
      %224 = vmatprep.subr.mxu0 0.0
      %225 = vmatpush1.msra.mxu0 0.0
      %226 = vmatprep.subr.mxu0 0.0
      %227 = vmatpush1.msra.mxu0 0.0
      %228 = vmatprep.subr.mxu0 0.0
      %229 = vmatpush1.msra.mxu0 0.0
      %230 = vmatprep.subr.mxu0 0.0
      %231 = vmatpush1.msra.mxu0 0.0
      %232 = vmatprep.subr.mxu0 0.0
      %233 = vmatpush1.msra.mxu0 0.0
      %234 = vmatprep.subr.mxu0 0.0
      %235 = vmatpush1.msra.mxu0 0.0
      %236 = vmatprep.subr.mxu0 0.0
      %237 = vmatpush1.msra.mxu0 0.0
      %238 = vmatprep.subr.mxu0 0.0
      %239 = vmatpush1.msra.mxu0 0.0
      %240 = vmatprep.subr.mxu0 0.0
      %241 = vmatpush1.msra.mxu0 0.0
      %242 = vmatprep.subr.mxu0 0.0
      %243 = vmatpush1.msra.mxu0 %v210
      %244 = vmatprep.subr.mxu0 0.0
      %245 = vmatpush1.msra.mxu0 %v209
      %246 = vmatprep.subr.mxu0 0.0
      %247 = vmatpush1.msra.mxu0 %v208
      %248 = vmatprep.subr.mxu0 0.0
      %249 = vmatpush1.msra.mxu0 %v207
      %250 = vmatprep.subr.mxu0 0.0
      %251 = vmatpush2.msra.mxu0 0.0
      %252 = vmatprep.subr.mxu0 0.0
      %253 = vmatpush2.msra.mxu0 0.0
      %254 = vmatprep.subr.mxu0 0.0
      %255 = vmatpush2.msra.mxu0 0.0
      %256 = vmatprep.subr.mxu0 0.0
      %257 = vmatpush2.msra.mxu0 0.0
      %258 = vmatprep.subr.mxu0 0.0
      %259 = vmatpush2.msra.mxu0 0.0
      %260 = vmatprep.subr.mxu0 0.0
      %261 = vmatpush2.msra.mxu0 0.0
      %262 = vmatprep.subr.mxu0 0.0
      %263 = vmatpush2.msra.mxu0 0.0
      %264 = vmatprep.subr.mxu0 0.0
      %265 = vmatpush2.msra.mxu0 0.0
      %266 = vmatprep.subr.mxu0 0.0
      %267 = vmatpush2.msra.mxu0 0.0
      %268 = vmatprep.subr.mxu0 0.0
      %269 = vmatpush2.msra.mxu0 0.0
      %270 = vmatprep.subr.mxu0 0.0
      %271 = vmatpush2.msra.mxu0 0.0
      %272 = vmatprep.subr.mxu0 0.0
      %273 = vmatpush2.msra.mxu0 0.0
      %274 = vmatprep.subr.mxu0 0.0
      %275 = vmatpush2.msra.mxu0 0.0
      %276 = vmatprep.subr.mxu0 0.0
      %277 = vmatpush2.msra.mxu0 0.0
      %278 = vmatprep.subr.mxu0 0.0
      %279 = vmatpush2.msra.mxu0 0.0
      %280 = vmatprep.subr.mxu0 0.0
      %281 = vmatpush2.msra.mxu0 0.0
      %282 = vmatprep.mubr.f32.mxu0 0.0
      %283 = vmatmul.mubr.f32.gmra.mxu0 %v216
      %v284 = vpop.f32.mrf.mxu0
      %v285 = vadd.f32 0.0, %v284
      %v286 = vpop.f32.mrf.mxu0
      %287 = vdwg.mxu0
      %v288 = vadd.f32 %v213, %v285
      %v289 = vxor.u32 %v288, 2147483648
      %v290 = vmul.f32 %v289, 1.442695
      %v291 = vpow.pop %v290
      %v292 = vadd.f32 %v291, 1.0
      %v293 = vrcp.pop %v292
      %v294 = vmul.f32 1.0, %v293
      %v295 = vtanh.pop %v288
      %297 = vrot.lane.b32.xlu0 %v212, 32
      %v298 = vpop.permute.xlu0 %297
      %v300 = vmul.f32 %v294, %v298
      %302 = vrot.lane.b32.xlu0 %v295, 64
      %v303 = vpop.permute.xlu0 %302
      %v305 = vmul.f32 %v294, %v303
      %307 = vrot.lane.b32.xlu0 %v305, 32
      %v308 = vpop.permute.xlu0 %307
      %v310 = vadd.f32 %v300, %v308
      %v311 = vtanh.pop %v310
      %313 = vrot.lane.b32.xlu0 %v311, 64
      %v314 = vpop.permute.xlu0 %313
      %v316 = vmul.f32 %v294, %v314
      %v319 = vunpack.c.l.s4 1983009808
      %v320 = vunpack.c.0.s8 %v319
      %v321 = vlaneseq
      %v322 = vshrl.u32 %v321, 7
      %v323 = vsub.s32 %v320, %v322
      %v324 = vrot.slane %v316, %v323
      %325 = vrot.lane.b32.xlu0 %v324, 32
      %v326 = vpop.permute.xlu0 %325
      %vm328 = vcmask 254976
      %329 = vst.msk [vmem:[%s199] sm:$0x3] %vm328, %v326
      %s330 = scalar_lea.vmem %s185, 2
      %v331 = vld [vmem:[%s330] sm:$0x3]
      %332 = vrot.lane.b32.xlu0 %v316, 32
      %v333 = vpop.permute.xlu0 %332
      %v334 = vsel %vm214, %v333, 0
      %336 = vmatprep.subr.mxu0 0.0
      %337 = vmatpush1.msra.mxu0 0.0
      %338 = vmatprep.subr.mxu0 0.0
      %339 = vmatpush1.msra.mxu0 0.0
      %340 = vmatprep.subr.mxu0 0.0
      %341 = vmatpush1.msra.mxu0 0.0
      %342 = vmatprep.subr.mxu0 0.0
      %343 = vmatpush1.msra.mxu0 0.0
      %344 = vmatprep.subr.mxu0 0.0
      %345 = vmatpush1.msra.mxu0 0.0
      %346 = vmatprep.subr.mxu0 0.0
      %347 = vmatpush1.msra.mxu0 0.0
      %348 = vmatprep.subr.mxu0 0.0
      %349 = vmatpush1.msra.mxu0 0.0
      %350 = vmatprep.subr.mxu0 0.0
      %351 = vmatpush1.msra.mxu0 0.0
      %352 = vmatprep.subr.mxu0 0.0
      %353 = vmatpush1.msra.mxu0 0.0
      %354 = vmatprep.subr.mxu0 0.0
      %355 = vmatpush1.msra.mxu0 0.0
      %356 = vmatprep.subr.mxu0 0.0
      %357 = vmatpush1.msra.mxu0 0.0
      %358 = vmatprep.subr.mxu0 0.0
      %359 = vmatpush1.msra.mxu0 0.0
      %360 = vmatprep.subr.mxu0 0.0
      %361 = vmatpush1.msra.mxu0 %v210
      %362 = vmatprep.subr.mxu0 0.0
      %363 = vmatpush1.msra.mxu0 %v209
      %364 = vmatprep.subr.mxu0 0.0
      %365 = vmatpush1.msra.mxu0 %v208
      %366 = vmatprep.subr.mxu0 0.0
      %367 = vmatpush1.msra.mxu0 %v207
      %368 = vmatprep.subr.mxu0 0.0
      %369 = vmatpush2.msra.mxu0 0.0
      %370 = vmatprep.subr.mxu0 0.0
      %371 = vmatpush2.msra.mxu0 0.0
      %372 = vmatprep.subr.mxu0 0.0
      %373 = vmatpush2.msra.mxu0 0.0
      %374 = vmatprep.subr.mxu0 0.0
      %375 = vmatpush2.msra.mxu0 0.0
      %376 = vmatprep.subr.mxu0 0.0
      %377 = vmatpush2.msra.mxu0 0.0
      %378 = vmatprep.subr.mxu0 0.0
      %379 = vmatpush2.msra.mxu0 0.0
      %380 = vmatprep.subr.mxu0 0.0
      %381 = vmatpush2.msra.mxu0 0.0
      %382 = vmatprep.subr.mxu0 0.0
      %383 = vmatpush2.msra.mxu0 0.0
      %384 = vmatprep.subr.mxu0 0.0
      %385 = vmatpush2.msra.mxu0 0.0
      %386 = vmatprep.subr.mxu0 0.0
      %387 = vmatpush2.msra.mxu0 0.0
      %388 = vmatprep.subr.mxu0 0.0
      %389 = vmatpush2.msra.mxu0 0.0
      %390 = vmatprep.subr.mxu0 0.0
      %391 = vmatpush2.msra.mxu0 0.0
      %392 = vmatprep.subr.mxu0 0.0
      %393 = vmatpush2.msra.mxu0 0.0
      %394 = vmatprep.subr.mxu0 0.0
      %395 = vmatpush2.msra.mxu0 0.0
      %396 = vmatprep.subr.mxu0 0.0
      %397 = vmatpush2.msra.mxu0 0.0
      %398 = vmatprep.subr.mxu0 0.0
      %399 = vmatpush2.msra.mxu0 0.0
      %400 = vmatprep.mubr.f32.mxu0 0.0
      %401 = vmatmul.mubr.f32.gmra.mxu0 %v334
      %v402 = vpop.f32.mrf.mxu0
      %v403 = vadd.f32 0.0, %v402
      %v404 = vpop.f32.mrf.mxu0
      %405 = vdwg.mxu0
      %v406 = vadd.f32 %v331, %v403
      %v407 = vxor.u32 %v406, 2147483648
      %v408 = vmul.f32 %v407, 1.442695
      %v409 = vpow.pop %v408
      %v410 = vadd.f32 %v409, 1.0
      %v411 = vrcp.pop %v410
      %v412 = vmul.f32 1.0, %v411
      %v413 = vtanh.pop %v406
      %v414 = vmul.f32 %v412, %v310
      %416 = vrot.lane.b32.xlu0 %v413, 64
      %v417 = vpop.permute.xlu0 %416
      %v419 = vmul.f32 %v412, %v417
      %421 = vrot.lane.b32.xlu0 %v419, 32
      %v422 = vpop.permute.xlu0 %421
      %v424 = vadd.f32 %v414, %v422
      %v425 = vtanh.pop %v424
      %427 = vrot.lane.b32.xlu0 %v425, 64
      %v428 = vpop.permute.xlu0 %427
      %v430 = vmul.f32 %v412, %v428
      %v433 = vunpack.c.l.s4 1983009808
      %v434 = vunpack.c.0.s8 %v433
      %v435 = vlaneseq
      %v436 = vshrl.u32 %v435, 7
      %v437 = vsub.s32 %v434, %v436
      %v438 = vrot.slane %v430, %v437
      %439 = vrot.lane.b32.xlu0 %v438, 64
      %v440 = vpop.permute.xlu0 %439
      %vm442 = vcmask 517376
      %443 = vst.msk [vmem:[%s199] sm:$0x3] %vm442, %v440
      %s444 = scalar_lea.vmem %s185, 4
      %v445 = vld [vmem:[%s444] sm:$0x3]
      %446 = vrot.lane.b32.xlu0 %v430, 32
      %v447 = vpop.permute.xlu0 %446
      %v448 = vsel %vm214, %v447, 0
      %450 = vmatprep.subr.mxu0 0.0
      %451 = vmatpush1.msra.mxu0 0.0
      %452 = vmatprep.subr.mxu0 0.0
      %453 = vmatpush1.msra.mxu0 0.0
      %454 = vmatprep.subr.mxu0 0.0
      %455 = vmatpush1.msra.mxu0 0.0
      %456 = vmatprep.subr.mxu0 0.0
      %457 = vmatpush1.msra.mxu0 0.0
      %458 = vmatprep.subr.mxu0 0.0
      %459 = vmatpush1.msra.mxu0 0.0
      %460 = vmatprep.subr.mxu0 0.0
      %461 = vmatpush1.msra.mxu0 0.0
      %462 = vmatprep.subr.mxu0 0.0
      %463 = vmatpush1.msra.mxu0 0.0
      %464 = vmatprep.subr.mxu0 0.0
      %465 = vmatpush1.msra.mxu0 0.0
      %466 = vmatprep.subr.mxu0 0.0
      %467 = vmatpush1.msra.mxu0 0.0
      %468 = vmatprep.subr.mxu0 0.0
      %469 = vmatpush1.msra.mxu0 0.0
      %470 = vmatprep.subr.mxu0 0.0
      %471 = vmatpush1.msra.mxu0 0.0
      %472 = vmatprep.subr.mxu0 0.0
      %473 = vmatpush1.msra.mxu0 0.0
      %474 = vmatprep.subr.mxu0 0.0
      %475 = vmatpush1.msra.mxu0 %v210
      %476 = vmatprep.subr.mxu0 0.0
      %477 = vmatpush1.msra.mxu0 %v209
      %478 = vmatprep.subr.mxu0 0.0
      %479 = vmatpush1.msra.mxu0 %v208
      %480 = vmatprep.subr.mxu0 0.0
      %481 = vmatpush1.msra.mxu0 %v207
      %482 = vmatprep.subr.mxu0 0.0
      %483 = vmatpush2.msra.mxu0 0.0
      %484 = vmatprep.subr.mxu0 0.0
      %485 = vmatpush2.msra.mxu0 0.0
      %486 = vmatprep.subr.mxu0 0.0
      %487 = vmatpush2.msra.mxu0 0.0
      %488 = vmatprep.subr.mxu0 0.0
      %489 = vmatpush2.msra.mxu0 0.0
      %490 = vmatprep.subr.mxu0 0.0
      %491 = vmatpush2.msra.mxu0 0.0
      %492 = vmatprep.subr.mxu0 0.0
      %493 = vmatpush2.msra.mxu0 0.0
      %494 = vmatprep.subr.mxu0 0.0
      %495 = vmatpush2.msra.mxu0 0.0
      %496 = vmatprep.subr.mxu0 0.0
      %497 = vmatpush2.msra.mxu0 0.0
      %498 = vmatprep.subr.mxu0 0.0
      %499 = vmatpush2.msra.mxu0 0.0
      %500 = vmatprep.subr.mxu0 0.0
      %501 = vmatpush2.msra.mxu0 0.0
      %502 = vmatprep.subr.mxu0 0.0
      %503 = vmatpush2.msra.mxu0 0.0
      %504 = vmatprep.subr.mxu0 0.0
      %505 = vmatpush2.msra.mxu0 0.0
      %506 = vmatprep.subr.mxu0 0.0
      %507 = vmatpush2.msra.mxu0 0.0
      %508 = vmatprep.subr.mxu0 0.0
      %509 = vmatpush2.msra.mxu0 0.0
      %510 = vmatprep.subr.mxu0 0.0
      %511 = vmatpush2.msra.mxu0 0.0
      %512 = vmatprep.subr.mxu0 0.0
      %513 = vmatpush2.msra.mxu0 0.0
      %514 = vmatprep.mubr.f32.mxu0 0.0
      %515 = vmatmul.mubr.f32.gmra.mxu0 %v448
      %v516 = vpop.f32.mrf.mxu0
      %v517 = vadd.f32 0.0, %v516
      %v518 = vpop.f32.mrf.mxu0
      %519 = vdwg.mxu0
      %v520 = vadd.f32 %v445, %v517
      %v521 = vxor.u32 %v520, 2147483648
      %v522 = vmul.f32 %v521, 1.442695
      %v523 = vpow.pop %v522
      %v524 = vadd.f32 %v523, 1.0
      %v525 = vrcp.pop %v524
      %v526 = vmul.f32 1.0, %v525
      %v527 = vtanh.pop %v520
      %v528 = vmul.f32 %v526, %v424
      %530 = vrot.lane.b32.xlu0 %v527, 64
      %v531 = vpop.permute.xlu0 %530
      %v533 = vmul.f32 %v526, %v531
      %535 = vrot.lane.b32.xlu0 %v533, 32
      %v536 = vpop.permute.xlu0 %535
      %v538 = vadd.f32 %v528, %v536
      %v539 = vtanh.pop %v538
      %541 = vrot.lane.b32.xlu0 %v539, 64
      %v542 = vpop.permute.xlu0 %541
      %v544 = vmul.f32 %v526, %v542
      %v547 = vunpack.c.l.s4 1983009808
      %v548 = vunpack.c.0.s8 %v547
      %v549 = vlaneseq
      %v550 = vshrl.u32 %v549, 7
      %v551 = vsub.s32 %v548, %v550
      %v552 = vrot.slane %v544, %v551
      %553 = vrot.lane.b32.xlu0 %v552, 96
      %v554 = vpop.permute.xlu0 %553
      %vm556 = vcmask 779776
      %557 = vst.msk [vmem:[%s199] sm:$0x3] %vm556, %v554
      %s558 = scalar_lea.vmem %s185, 6
      %v559 = vld [vmem:[%s558] sm:$0x3]
      %560 = vrot.lane.b32.xlu0 %v544, 32
      %v561 = vpop.permute.xlu0 %560
      %v562 = vsel %vm214, %v561, 0
      %564 = vmatprep.subr.mxu0 0.0
      %565 = vmatpush1.msra.mxu0 0.0
      %566 = vmatprep.subr.mxu0 0.0
      %567 = vmatpush1.msra.mxu0 0.0
      %568 = vmatprep.subr.mxu0 0.0
      %569 = vmatpush1.msra.mxu0 0.0
      %570 = vmatprep.subr.mxu0 0.0
      %571 = vmatpush1.msra.mxu0 0.0
      %572 = vmatprep.subr.mxu0 0.0
      %573 = vmatpush1.msra.mxu0 0.0
      %574 = vmatprep.subr.mxu0 0.0
      %575 = vmatpush1.msra.mxu0 0.0
      %576 = vmatprep.subr.mxu0 0.0
      %577 = vmatpush1.msra.mxu0 0.0
      %578 = vmatprep.subr.mxu0 0.0
      %579 = vmatpush1.msra.mxu0 0.0
      %580 = vmatprep.subr.mxu0 0.0
      %581 = vmatpush1.msra.mxu0 0.0
      %582 = vmatprep.subr.mxu0 0.0
      %583 = vmatpush1.msra.mxu0 0.0
      %584 = vmatprep.subr.mxu0 0.0
      %585 = vmatpush1.msra.mxu0 0.0
      %586 = vmatprep.subr.mxu0 0.0
      %587 = vmatpush1.msra.mxu0 0.0
      %588 = vmatprep.subr.mxu0 0.0
      %589 = vmatpush1.msra.mxu0 %v210
      %590 = vmatprep.subr.mxu0 0.0
      %591 = vmatpush1.msra.mxu0 %v209
      %592 = vmatprep.subr.mxu0 0.0
      %593 = vmatpush1.msra.mxu0 %v208
      %594 = vmatprep.subr.mxu0 0.0
      %595 = vmatpush1.msra.mxu0 %v207
      %596 = vmatprep.subr.mxu0 0.0
      %597 = vmatpush2.msra.mxu0 0.0
      %598 = vmatprep.subr.mxu0 0.0
      %599 = vmatpush2.msra.mxu0 0.0
      %600 = vmatprep.subr.mxu0 0.0
      %601 = vmatpush2.msra.mxu0 0.0
      %602 = vmatprep.subr.mxu0 0.0
      %603 = vmatpush2.msra.mxu0 0.0
      %604 = vmatprep.subr.mxu0 0.0
      %605 = vmatpush2.msra.mxu0 0.0
      %606 = vmatprep.subr.mxu0 0.0
      %607 = vmatpush2.msra.mxu0 0.0
      %608 = vmatprep.subr.mxu0 0.0
      %609 = vmatpush2.msra.mxu0 0.0
      %610 = vmatprep.subr.mxu0 0.0
      %611 = vmatpush2.msra.mxu0 0.0
      %612 = vmatprep.subr.mxu0 0.0
      %613 = vmatpush2.msra.mxu0 0.0
      %614 = vmatprep.subr.mxu0 0.0
      %615 = vmatpush2.msra.mxu0 0.0
      %616 = vmatprep.subr.mxu0 0.0
      %617 = vmatpush2.msra.mxu0 0.0
      %618 = vmatprep.subr.mxu0 0.0
      %619 = vmatpush2.msra.mxu0 0.0
      %620 = vmatprep.subr.mxu0 0.0
      %621 = vmatpush2.msra.mxu0 0.0
      %622 = vmatprep.subr.mxu0 0.0
      %623 = vmatpush2.msra.mxu0 0.0
      %624 = vmatprep.subr.mxu0 0.0
      %625 = vmatpush2.msra.mxu0 0.0
      %626 = vmatprep.subr.mxu0 0.0
      %627 = vmatpush2.msra.mxu0 0.0
      %628 = vmatprep.mubr.f32.mxu0 0.0
      %629 = vmatmul.mubr.f32.gmra.mxu0 %v562
      %v630 = vpop.f32.mrf.mxu0
      %v631 = vadd.f32 0.0, %v630
      %v632 = vpop.f32.mrf.mxu0
      %633 = vdwg.mxu0
      %v634 = vadd.f32 %v559, %v631
      %v635 = vxor.u32 %v634, 2147483648
      %v636 = vmul.f32 %v635, 1.442695
      %v637 = vpow.pop %v636
      %v638 = vadd.f32 %v637, 1.0
      %v639 = vrcp.pop %v638
      %v640 = vmul.f32 1.0, %v639
      %v641 = vtanh.pop %v634
      %v642 = vmul.f32 %v640, %v538
      %644 = vrot.lane.b32.xlu0 %v641, 64
      %v645 = vpop.permute.xlu0 %644
      %v647 = vmul.f32 %v640, %v645
      %649 = vrot.lane.b32.xlu0 %v647, 32
      %v650 = vpop.permute.xlu0 %649
      %v652 = vadd.f32 %v642, %v650
      %v653 = vtanh.pop %v652
      %655 = vrot.lane.b32.xlu0 %v653, 64
      %v656 = vpop.permute.xlu0 %655
      %v658 = vmul.f32 %v640, %v656
      %vm659 = vcmask 1042176
      %660 = vst.msk [vmem:[%s199] sm:$0x3] %vm659, %v658
      %s661 = scalar_lea.vmem %s185, 8
      %v662 = vld [vmem:[%s661] sm:$0x3]
      %664 = vrot.lane.b32.xlu0 %v658, 32
      %v665 = vpop.permute.xlu0 %664
      %v666 = vsel %vm214, %v665, 0
      %668 = vmatprep.subr.mxu0 0.0
      %669 = vmatpush1.msra.mxu0 0.0
      %670 = vmatprep.subr.mxu0 0.0
      %671 = vmatpush1.msra.mxu0 0.0
      %672 = vmatprep.subr.mxu0 0.0
      %673 = vmatpush1.msra.mxu0 0.0
      %674 = vmatprep.subr.mxu0 0.0
      %675 = vmatpush1.msra.mxu0 0.0
      %676 = vmatprep.subr.mxu0 0.0
      %677 = vmatpush1.msra.mxu0 0.0
      %678 = vmatprep.subr.mxu0 0.0
      %679 = vmatpush1.msra.mxu0 0.0
      %680 = vmatprep.subr.mxu0 0.0
      %681 = vmatpush1.msra.mxu0 0.0
      %682 = vmatprep.subr.mxu0 0.0
      %683 = vmatpush1.msra.mxu0 0.0
      %684 = vmatprep.subr.mxu0 0.0
      %685 = vmatpush1.msra.mxu0 0.0
      %686 = vmatprep.subr.mxu0 0.0
      %687 = vmatpush1.msra.mxu0 0.0
      %688 = vmatprep.subr.mxu0 0.0
      %689 = vmatpush1.msra.mxu0 0.0
      %690 = vmatprep.subr.mxu0 0.0
      %691 = vmatpush1.msra.mxu0 0.0
      %692 = vmatprep.subr.mxu0 0.0
      %693 = vmatpush1.msra.mxu0 %v210
      %694 = vmatprep.subr.mxu0 0.0
      %695 = vmatpush1.msra.mxu0 %v209
      %696 = vmatprep.subr.mxu0 0.0
      %697 = vmatpush1.msra.mxu0 %v208
      %698 = vmatprep.subr.mxu0 0.0
      %699 = vmatpush1.msra.mxu0 %v207
      %700 = vmatprep.subr.mxu0 0.0
      %701 = vmatpush2.msra.mxu0 0.0
      %702 = vmatprep.subr.mxu0 0.0
      %703 = vmatpush2.msra.mxu0 0.0
      %704 = vmatprep.subr.mxu0 0.0
      %705 = vmatpush2.msra.mxu0 0.0
      %706 = vmatprep.subr.mxu0 0.0
      %707 = vmatpush2.msra.mxu0 0.0
      %708 = vmatprep.subr.mxu0 0.0
      %709 = vmatpush2.msra.mxu0 0.0
      %710 = vmatprep.subr.mxu0 0.0
      %711 = vmatpush2.msra.mxu0 0.0
      %712 = vmatprep.subr.mxu0 0.0
      %713 = vmatpush2.msra.mxu0 0.0
      %714 = vmatprep.subr.mxu0 0.0
      %715 = vmatpush2.msra.mxu0 0.0
      %716 = vmatprep.subr.mxu0 0.0
      %717 = vmatpush2.msra.mxu0 0.0
      %718 = vmatprep.subr.mxu0 0.0
      %719 = vmatpush2.msra.mxu0 0.0
      %720 = vmatprep.subr.mxu0 0.0
      %721 = vmatpush2.msra.mxu0 0.0
      %722 = vmatprep.subr.mxu0 0.0
      %723 = vmatpush2.msra.mxu0 0.0
      %724 = vmatprep.subr.mxu0 0.0
      %725 = vmatpush2.msra.mxu0 0.0
      %726 = vmatprep.subr.mxu0 0.0
      %727 = vmatpush2.msra.mxu0 0.0
      %728 = vmatprep.subr.mxu0 0.0
      %729 = vmatpush2.msra.mxu0 0.0
      %730 = vmatprep.subr.mxu0 0.0
      %731 = vmatpush2.msra.mxu0 0.0
      %732 = vmatprep.mubr.f32.mxu0 0.0
      %733 = vmatmul.mubr.f32.gmra.mxu0 %v666
      %v734 = vpop.f32.mrf.mxu0
      %v735 = vadd.f32 0.0, %v734
      %v736 = vpop.f32.mrf.mxu0
      %737 = vdwg.mxu0
      %v738 = vadd.f32 %v662, %v735
      %v739 = vxor.u32 %v738, 2147483648
      %v740 = vmul.f32 %v739, 1.442695
      %v741 = vpow.pop %v740
      %v742 = vadd.f32 %v741, 1.0
      %v743 = vrcp.pop %v742
      %v744 = vmul.f32 1.0, %v743
      %v745 = vtanh.pop %v738
      %v746 = vmul.f32 %v744, %v652
      %748 = vrot.lane.b32.xlu0 %v745, 64
      %v749 = vpop.permute.xlu0 %748
      %v751 = vmul.f32 %v744, %v749
      %753 = vrot.lane.b32.xlu0 %v751, 32
      %v754 = vpop.permute.xlu0 %753
      %v756 = vadd.f32 %v746, %v754
      %v757 = vtanh.pop %v756
      %759 = vrot.lane.b32.xlu0 %v757, 64
      %v760 = vpop.permute.xlu0 %759
      %v762 = vmul.f32 %v744, %v760
      %v765 = vunpack.c.l.s4 1983009808
      %v766 = vunpack.c.0.s8 %v765
      %v767 = vlaneseq
      %v768 = vshrl.u32 %v767, 7
      %v769 = vsub.s32 %v766, %v768
      %v770 = vrot.slane %v762, %v769
      %771 = vrot.lane.b32.xlu0 %v770, 32
      %v772 = vpop.permute.xlu0 %771
      %774 = vst.msk [vmem:[%s199 + $0x2] sm:$0x3] %vm328, %v772
      %s775 = scalar_lea.vmem %s185, 10
      %v776 = vld [vmem:[%s775] sm:$0x3]
      %777 = vrot.lane.b32.xlu0 %v762, 32
      %v778 = vpop.permute.xlu0 %777
      %v779 = vsel %vm214, %v778, 0
      %781 = vmatprep.subr.mxu0 0.0
      %782 = vmatpush1.msra.mxu0 0.0
      %783 = vmatprep.subr.mxu0 0.0
      %784 = vmatpush1.msra.mxu0 0.0
      %785 = vmatprep.subr.mxu0 0.0
      %786 = vmatpush1.msra.mxu0 0.0
      %787 = vmatprep.subr.mxu0 0.0
      %788 = vmatpush1.msra.mxu0 0.0
      %789 = vmatprep.subr.mxu0 0.0
      %790 = vmatpush1.msra.mxu0 0.0
      %791 = vmatprep.subr.mxu0 0.0
      %792 = vmatpush1.msra.mxu0 0.0
      %793 = vmatprep.subr.mxu0 0.0
      %794 = vmatpush1.msra.mxu0 0.0
      %795 = vmatprep.subr.mxu0 0.0
      %796 = vmatpush1.msra.mxu0 0.0
      %797 = vmatprep.subr.mxu0 0.0
      %798 = vmatpush1.msra.mxu0 0.0
      %799 = vmatprep.subr.mxu0 0.0
      %800 = vmatpush1.msra.mxu0 0.0
      %801 = vmatprep.subr.mxu0 0.0
      %802 = vmatpush1.msra.mxu0 0.0
      %803 = vmatprep.subr.mxu0 0.0
      %804 = vmatpush1.msra.mxu0 0.0
      %805 = vmatprep.subr.mxu0 0.0
      %806 = vmatpush1.msra.mxu0 %v210
      %807 = vmatprep.subr.mxu0 0.0
      %808 = vmatpush1.msra.mxu0 %v209
      %809 = vmatprep.subr.mxu0 0.0
      %810 = vmatpush1.msra.mxu0 %v208
      %811 = vmatprep.subr.mxu0 0.0
      %812 = vmatpush1.msra.mxu0 %v207
      %813 = vmatprep.subr.mxu0 0.0
      %814 = vmatpush2.msra.mxu0 0.0
      %815 = vmatprep.subr.mxu0 0.0
      %816 = vmatpush2.msra.mxu0 0.0
      %817 = vmatprep.subr.mxu0 0.0
      %818 = vmatpush2.msra.mxu0 0.0
      %819 = vmatprep.subr.mxu0 0.0
      %820 = vmatpush2.msra.mxu0 0.0
      %821 = vmatprep.subr.mxu0 0.0
      %822 = vmatpush2.msra.mxu0 0.0
      %823 = vmatprep.subr.mxu0 0.0
      %824 = vmatpush2.msra.mxu0 0.0
      %825 = vmatprep.subr.mxu0 0.0
      %826 = vmatpush2.msra.mxu0 0.0
      %827 = vmatprep.subr.mxu0 0.0
      %828 = vmatpush2.msra.mxu0 0.0
      %829 = vmatprep.subr.mxu0 0.0
      %830 = vmatpush2.msra.mxu0 0.0
      %831 = vmatprep.subr.mxu0 0.0
      %832 = vmatpush2.msra.mxu0 0.0
      %833 = vmatprep.subr.mxu0 0.0
      %834 = vmatpush2.msra.mxu0 0.0
      %835 = vmatprep.subr.mxu0 0.0
      %836 = vmatpush2.msra.mxu0 0.0
      %837 = vmatprep.subr.mxu0 0.0
      %838 = vmatpush2.msra.mxu0 0.0
      %839 = vmatprep.subr.mxu0 0.0
      %840 = vmatpush2.msra.mxu0 0.0
      %841 = vmatprep.subr.mxu0 0.0
      %842 = vmatpush2.msra.mxu0 0.0
      %843 = vmatprep.subr.mxu0 0.0
      %844 = vmatpush2.msra.mxu0 0.0
      %845 = vmatprep.mubr.f32.mxu0 0.0
      %846 = vmatmul.mubr.f32.gmra.mxu0 %v779
      %v847 = vpop.f32.mrf.mxu0
      %v848 = vadd.f32 0.0, %v847
      %v849 = vpop.f32.mrf.mxu0
      %850 = vdwg.mxu0
      %v851 = vadd.f32 %v776, %v848
      %v852 = vxor.u32 %v851, 2147483648
      %v853 = vmul.f32 %v852, 1.442695
      %v854 = vpow.pop %v853
      %v855 = vadd.f32 %v854, 1.0
      %v856 = vrcp.pop %v855
      %v857 = vmul.f32 1.0, %v856
      %v858 = vtanh.pop %v851
      %v859 = vmul.f32 %v857, %v756
      %861 = vrot.lane.b32.xlu0 %v858, 64
      %v862 = vpop.permute.xlu0 %861
      %v864 = vmul.f32 %v857, %v862
      %866 = vrot.lane.b32.xlu0 %v864, 32
      %v867 = vpop.permute.xlu0 %866
      %v869 = vadd.f32 %v859, %v867
      %v870 = vtanh.pop %v869
      %872 = vrot.lane.b32.xlu0 %v870, 64
      %v873 = vpop.permute.xlu0 %872
      %v875 = vmul.f32 %v857, %v873
      %v878 = vunpack.c.l.s4 1983009808
      %v879 = vunpack.c.0.s8 %v878
      %v880 = vlaneseq
      %v881 = vshrl.u32 %v880, 7
      %v882 = vsub.s32 %v879, %v881
      %v883 = vrot.slane %v875, %v882
      %884 = vrot.lane.b32.xlu0 %v883, 64
      %v885 = vpop.permute.xlu0 %884
      %887 = vst.msk [vmem:[%s199 + $0x2] sm:$0x3] %vm442, %v885
      %s888 = scalar_lea.vmem %s185, 12
      %v889 = vld [vmem:[%s888] sm:$0x3]
      %890 = vrot.lane.b32.xlu0 %v875, 32
      %v891 = vpop.permute.xlu0 %890
      %v892 = vsel %vm214, %v891, 0
      %894 = vmatprep.subr.mxu0 0.0
      %895 = vmatpush1.msra.mxu0 0.0
      %896 = vmatprep.subr.mxu0 0.0
      %897 = vmatpush1.msra.mxu0 0.0
      %898 = vmatprep.subr.mxu0 0.0
      %899 = vmatpush1.msra.mxu0 0.0
      %900 = vmatprep.subr.mxu0 0.0
      %901 = vmatpush1.msra.mxu0 0.0
      %902 = vmatprep.subr.mxu0 0.0
      %903 = vmatpush1.msra.mxu0 0.0
      %904 = vmatprep.subr.mxu0 0.0
      %905 = vmatpush1.msra.mxu0 0.0
      %906 = vmatprep.subr.mxu0 0.0
      %907 = vmatpush1.msra.mxu0 0.0
      %908 = vmatprep.subr.mxu0 0.0
      %909 = vmatpush1.msra.mxu0 0.0
      %910 = vmatprep.subr.mxu0 0.0
      %911 = vmatpush1.msra.mxu0 0.0
      %912 = vmatprep.subr.mxu0 0.0
      %913 = vmatpush1.msra.mxu0 0.0
      %914 = vmatprep.subr.mxu0 0.0
      %915 = vmatpush1.msra.mxu0 0.0
      %916 = vmatprep.subr.mxu0 0.0
      %917 = vmatpush1.msra.mxu0 0.0
      %918 = vmatprep.subr.mxu0 0.0
      %919 = vmatpush1.msra.mxu0 %v210
      %920 = vmatprep.subr.mxu0 0.0
      %921 = vmatpush1.msra.mxu0 %v209
      %922 = vmatprep.subr.mxu0 0.0
      %923 = vmatpush1.msra.mxu0 %v208
      %924 = vmatprep.subr.mxu0 0.0
      %925 = vmatpush1.msra.mxu0 %v207
      %926 = vmatprep.subr.mxu0 0.0
      %927 = vmatpush2.msra.mxu0 0.0
      %928 = vmatprep.subr.mxu0 0.0
      %929 = vmatpush2.msra.mxu0 0.0
      %930 = vmatprep.subr.mxu0 0.0
      %931 = vmatpush2.msra.mxu0 0.0
      %932 = vmatprep.subr.mxu0 0.0
      %933 = vmatpush2.msra.mxu0 0.0
      %934 = vmatprep.subr.mxu0 0.0
      %935 = vmatpush2.msra.mxu0 0.0
      %936 = vmatprep.subr.mxu0 0.0
      %937 = vmatpush2.msra.mxu0 0.0
      %938 = vmatprep.subr.mxu0 0.0
      %939 = vmatpush2.msra.mxu0 0.0
      %940 = vmatprep.subr.mxu0 0.0
      %941 = vmatpush2.msra.mxu0 0.0
      %942 = vmatprep.subr.mxu0 0.0
      %943 = vmatpush2.msra.mxu0 0.0
      %944 = vmatprep.subr.mxu0 0.0
      %945 = vmatpush2.msra.mxu0 0.0
      %946 = vmatprep.subr.mxu0 0.0
      %947 = vmatpush2.msra.mxu0 0.0
      %948 = vmatprep.subr.mxu0 0.0
      %949 = vmatpush2.msra.mxu0 0.0
      %950 = vmatprep.subr.mxu0 0.0
      %951 = vmatpush2.msra.mxu0 0.0
      %952 = vmatprep.subr.mxu0 0.0
      %953 = vmatpush2.msra.mxu0 0.0
      %954 = vmatprep.subr.mxu0 0.0
      %955 = vmatpush2.msra.mxu0 0.0
      %956 = vmatprep.subr.mxu0 0.0
      %957 = vmatpush2.msra.mxu0 0.0
      %958 = vmatprep.mubr.f32.mxu0 0.0
      %959 = vmatmul.mubr.f32.gmra.mxu0 %v892
      %v960 = vpop.f32.mrf.mxu0
      %v961 = vadd.f32 0.0, %v960
      %v962 = vpop.f32.mrf.mxu0
      %963 = vdwg.mxu0
      %v964 = vadd.f32 %v889, %v961
      %v965 = vxor.u32 %v964, 2147483648
      %v966 = vmul.f32 %v965, 1.442695
      %v967 = vpow.pop %v966
      %v968 = vadd.f32 %v967, 1.0
      %v969 = vrcp.pop %v968
      %v970 = vmul.f32 1.0, %v969
      %v971 = vtanh.pop %v964
      %v972 = vmul.f32 %v970, %v869
      %974 = vrot.lane.b32.xlu0 %v971, 64
      %v975 = vpop.permute.xlu0 %974
      %v977 = vmul.f32 %v970, %v975
      %979 = vrot.lane.b32.xlu0 %v977, 32
      %v980 = vpop.permute.xlu0 %979
      %v982 = vadd.f32 %v972, %v980
      %v983 = vtanh.pop %v982
      %985 = vrot.lane.b32.xlu0 %v983, 64
      %v986 = vpop.permute.xlu0 %985
      %v988 = vmul.f32 %v970, %v986
      %v991 = vunpack.c.l.s4 1983009808
      %v992 = vunpack.c.0.s8 %v991
      %v993 = vlaneseq
      %v994 = vshrl.u32 %v993, 7
      %v995 = vsub.s32 %v992, %v994
      %v996 = vrot.slane %v988, %v995
      %997 = vrot.lane.b32.xlu0 %v996, 96
      %v998 = vpop.permute.xlu0 %997
      %1000 = vst.msk [vmem:[%s199 + $0x2] sm:$0x3] %vm556, %v998
      %s1001 = scalar_lea.vmem %s185, 14
      %v1002 = vld [vmem:[%s1001] sm:$0x3]
      %1003 = vrot.lane.b32.xlu0 %v988, 32
      %v1004 = vpop.permute.xlu0 %1003
      %v1005 = vsel %vm214, %v1004, 0
      %1007 = vmatprep.subr.mxu0 0.0
      %1008 = vmatpush1.msra.mxu0 0.0
      %1009 = vmatprep.subr.mxu0 0.0
      %1010 = vmatpush1.msra.mxu0 0.0
      %1011 = vmatprep.subr.mxu0 0.0
      %1012 = vmatpush1.msra.mxu0 0.0
      %1013 = vmatprep.subr.mxu0 0.0
      %1014 = vmatpush1.msra.mxu0 0.0
      %1015 = vmatprep.subr.mxu0 0.0
      %1016 = vmatpush1.msra.mxu0 0.0
      %1017 = vmatprep.subr.mxu0 0.0
      %1018 = vmatpush1.msra.mxu0 0.0
      %1019 = vmatprep.subr.mxu0 0.0
      %1020 = vmatpush1.msra.mxu0 0.0
      %1021 = vmatprep.subr.mxu0 0.0
      %1022 = vmatpush1.msra.mxu0 0.0
      %1023 = vmatprep.subr.mxu0 0.0
      %1024 = vmatpush1.msra.mxu0 0.0
      %1025 = vmatprep.subr.mxu0 0.0
      %1026 = vmatpush1.msra.mxu0 0.0
      %1027 = vmatprep.subr.mxu0 0.0
      %1028 = vmatpush1.msra.mxu0 0.0
      %1029 = vmatprep.subr.mxu0 0.0
      %1030 = vmatpush1.msra.mxu0 0.0
      %1031 = vmatprep.subr.mxu0 0.0
      %1032 = vmatpush1.msra.mxu0 %v210
      %1033 = vmatprep.subr.mxu0 0.0
      %1034 = vmatpush1.msra.mxu0 %v209
      %1035 = vmatprep.subr.mxu0 0.0
      %1036 = vmatpush1.msra.mxu0 %v208
      %1037 = vmatprep.subr.mxu0 0.0
      %1038 = vmatpush1.msra.mxu0 %v207
      %1039 = vmatprep.subr.mxu0 0.0
      %1040 = vmatpush2.msra.mxu0 0.0
      %1041 = vmatprep.subr.mxu0 0.0
      %1042 = vmatpush2.msra.mxu0 0.0
      %1043 = vmatprep.subr.mxu0 0.0
      %1044 = vmatpush2.msra.mxu0 0.0
      %1045 = vmatprep.subr.mxu0 0.0
      %1046 = vmatpush2.msra.mxu0 0.0
      %1047 = vmatprep.subr.mxu0 0.0
      %1048 = vmatpush2.msra.mxu0 0.0
      %1049 = vmatprep.subr.mxu0 0.0
      %1050 = vmatpush2.msra.mxu0 0.0
      %1051 = vmatprep.subr.mxu0 0.0
      %1052 = vmatpush2.msra.mxu0 0.0
      %1053 = vmatprep.subr.mxu0 0.0
      %1054 = vmatpush2.msra.mxu0 0.0
      %1055 = vmatprep.subr.mxu0 0.0
      %1056 = vmatpush2.msra.mxu0 0.0
      %1057 = vmatprep.subr.mxu0 0.0
      %1058 = vmatpush2.msra.mxu0 0.0
      %1059 = vmatprep.subr.mxu0 0.0
      %1060 = vmatpush2.msra.mxu0 0.0
      %1061 = vmatprep.subr.mxu0 0.0
      %1062 = vmatpush2.msra.mxu0 0.0
      %1063 = vmatprep.subr.mxu0 0.0
      %1064 = vmatpush2.msra.mxu0 0.0
      %1065 = vmatprep.subr.mxu0 0.0
      %1066 = vmatpush2.msra.mxu0 0.0
      %1067 = vmatprep.subr.mxu0 0.0
      %1068 = vmatpush2.msra.mxu0 0.0
      %1069 = vmatprep.subr.mxu0 0.0
      %1070 = vmatpush2.msra.mxu0 0.0
      %1071 = vmatprep.mubr.f32.mxu0 0.0
      %1072 = vmatmul.mubr.f32.gmra.mxu0 %v1005
      %v1073 = vpop.f32.mrf.mxu0
      %v1074 = vadd.f32 0.0, %v1073
      %v1075 = vpop.f32.mrf.mxu0
      %1076 = vdwg.mxu0
      %v1077 = vadd.f32 %v1002, %v1074
      %v1078 = vxor.u32 %v1077, 2147483648
      %v1079 = vmul.f32 %v1078, 1.442695
      %v1080 = vpow.pop %v1079
      %v1081 = vadd.f32 %v1080, 1.0
      %v1082 = vrcp.pop %v1081
      %v1083 = vmul.f32 1.0, %v1082
      %v1084 = vtanh.pop %v1077
      %v1085 = vmul.f32 %v1083, %v982
      %1087 = vrot.lane.b32.xlu0 %v1084, 64
      %v1088 = vpop.permute.xlu0 %1087
      %v1090 = vmul.f32 %v1083, %v1088
      %1092 = vrot.lane.b32.xlu0 %v1090, 32
      %v1093 = vpop.permute.xlu0 %1092
      %v1095 = vadd.f32 %v1085, %v1093
      %v1096 = vtanh.pop %v1095
      %1098 = vrot.lane.b32.xlu0 %v1096, 64
      %v1099 = vpop.permute.xlu0 %1098
      %v1101 = vmul.f32 %v1083, %v1099
      %1102 = vst.msk [vmem:[%s199 + $0x2] sm:$0x3] %vm659, %v1101
      %1104 = vrot.lane.b32.xlu0 %v1101, 32
      %v1105 = vpop.permute.xlu0 %1104
      %1107 = vst.msk [vmem:[#allocation2] sm:$0x3] %vm328, %v1105
      %1109 = vrot.lane.b32.xlu0 %v1095, 96
      %v1110 = vpop.permute.xlu0 %1109
      %1112 = vst.msk [vmem:[#allocation3] sm:$0x3] %vm328, %v1110
      %p1113 = scmp.lt.s32.totalorder %s17, 1
      %s1114 = scalar_select %p1113, %s17, 1
      %p1115 = scmp.lt.s32.totalorder %s18, 0
      %s1116 = scalar_select %p1115, %s18, 0
      %s1117 = smul.addr %s1116, 2
      %s1118 = smul.addr %s1114, 2
      %s1119 = sadd.s32 %s1117, %s1118
      %s1120 = smul.addr %s1119, 2
      %s1121 = scalar_lea.vmem %s2, %s1120
      // Predicated region
      $region33: #{listener_forward.14} parent=27 // pred_check
        %p1122 = pneg %p99
      $region34: #{listener_forward.14} parent=27 // pred_check_branch
        %1124 = sbr.rel (%p1122) target = $region36
      $region35: #{listener_forward.14} parent=27 // pred_region
        _
      $region36: #{listener_forward.14} parent=27 // pred_fallthru
        _
    $region28: #{listener_forward.14} parent=5 // pred_fallthru
      _
    %p1125 = scmp.le.s32.totalorder 2, %s8
    // Predicated region
    $region37: #{listener_forward.14} parent=5 // pred_check
      %p1126 = pneg %p1125
    $region38: #{listener_forward.14} parent=5 // pred_check_branch
      %1128 = sbr.rel (%p1126) target = $region40
    $region39: #{listener_forward.14} parent=5 // pred_region
      %s1129 = ssub.s32 %s8, 2
      // Predicated region
      $region41: #{listener_forward.14} parent=39 // pred_check
        %p1130 = pneg %p105
      $region42: #{listener_forward.14} parent=39 // pred_check_branch
        %1132 = sbr.rel (%p1130) target = $region44
      $region43: #{listener_forward.14} parent=39 // pred_region
        %p1133 = scmp.lt.s32.totalorder %s19, 1
        %s1134 = scalar_select %p1133, %s19, 1
        %p1135 = scmp.lt.s32.totalorder %s20, 0
        %s1136 = scalar_select %p1135, %s20, 0
        %s1137 = smul.addr %s1136, 2
        %s1138 = smul.addr %s1134, 2
        %s1139 = sadd.s32 %s1137, %s1138
        %s1140 = smul.addr %s1139, 2
        %s1141 = scalar_lea.vmem %s2, %s1140
      $region44: #{listener_forward.14} parent=39 // pred_fallthru
        _
    $region40: #{listener_forward.14} parent=5 // pred_fallthru
      _
  $region6: #{listener_forward.14} parent=0 // loop_footer
    %s12 = sadd.s32 1, %s8
  $region7: #{listener_forward.14} parent=0 // loop_footer_branch
    %7 = sbr.rel target = $region3
  $region8: #{listener_forward.14} parent=0 // loop_exit
    _

// kernel: listener_forward.17
$region0: #{listener_forward.17}
  #allocation0 [shape = 'u32[]', space=smem, size = 0x4, offset = 0x4, fixed_abs, tag = 'smem constant byte address 0x4 - core index']
  #allocation1 [shape = 'u32[144,128]{1,0:T(1,128)}', space=vmem, size = 0x12000, scoped, tag = 'internal scratch']
  #allocation2 [shape = 'f32[16,64]{1,0:T(8,128)}', space=vmem, size = 0x2000, scoped, tag = 'scratch operand']
  %s0 = inlined_call_operand.vmem [shape: f32[16,32], index: 0, kind: input, shape index: {}]
  %s1 = inlined_call_operand.vmem [shape: f32[32,64], index: 1, kind: input, shape index: {}]
  %s2 = inlined_call_operand.vmem [shape: f32[1,64], index: 2, kind: input, shape index: {}]
  %s3 = inlined_call_operand.hbm [shape: f32[16,64], index: 3, kind: output, shape index: {}]
  %s4 = sld [smem:[#allocation0]]
  $region22: #{listener_forward.17} parent=0
    _
  %s6 = ssub.s32 1, %s4
  %s7 = scalar_select 0, %s6, %s4
  $region1: #{listener_forward.17} parent=0
    #allocation3 [shape = 'u8[8192]{0}', space=vmem, size = 0x2000, scoped, tag = 'output window, operand 0, single buffered']
    #allocation4 [shape = 's32[1]{0}', space=sflag, size = 0x4, scoped, tag = 'scoped memory for listener_forward.17']
    %8 = vsyncpa [#allocation4], 0
    // Predicated region
    $region2: #{listener_forward.17} parent=1 // pred_check
      _
    $region3: #{listener_forward.17} parent=1 // pred_check_branch
      %10 = sbr.rel (0) target = $region5
    $region4: #{listener_forward.17} parent=1 // pred_region
      _
    $region5: #{listener_forward.17} parent=1 // pred_fallthru
      _
    // Predicated region
    $region6: #{listener_forward.17} parent=1 // pred_check
      _
    $region7: #{listener_forward.17} parent=1 // pred_check_branch
      %12 = sbr.rel (0) target = $region9
    $region8: #{listener_forward.17} parent=1 // pred_region
      _
    $region9: #{listener_forward.17} parent=1 // pred_fallthru
      _
    // Predicated region
    $region10: #{listener_forward.17} parent=1 // pred_check
      _
    $region11: #{listener_forward.17} parent=1 // pred_check_branch
      %14 = sbr.rel (0) target = $region13
    $region12: #{listener_forward.17} parent=1 // pred_region
      _
    $region13: #{listener_forward.17} parent=1 // pred_fallthru
      _
    %v15 = vld [vmem:[%s0] sm:$0xff]
    %v16 = vld [vmem:[%s0 + $0x8] sm:$0xff]
    %vm17 = vcmask 261120
    %v18 = vsel %vm17, %v15, 0.0
    %19 = vadd.xlane.f32.xlu0 %v18
    %v20 = vpop.xlane.xlu0 %19
    %v21 = vsel %vm17, %v16, 0.0
    %22 = vadd.xlane.f32.xlu0 %v21
    %v23 = vpop.xlane.xlu0 %22
    %v24 = vrcp.pop 32.0
    %v25 = vmul.f32 %v20, %v24
    %v26 = vmul.f32 %v23, %v24
    %v27 = vsub.f32 %v15, %v25
    %v28 = vsub.f32 %v16, %v26
    %v29 = vmul.f32 %v27, %v27
    %v30 = vmul.f32 %v28, %v28
    %v31 = vsel %vm17, %v29, 0.0
    %32 = vadd.xlane.f32.xlu0 %v31
    %v33 = vpop.xlane.xlu0 %32
    %v34 = vsel %vm17, %v30, 0.0
    %35 = vadd.xlane.f32.xlu0 %v34
    %v36 = vpop.xlane.xlu0 %35
    %v37 = vmul.f32 %v33, %v24
    %v38 = vmul.f32 %v36, %v24
    %v39 = vadd.f32 %v37, 1e-05
    %v40 = vadd.f32 %v38, 1e-05
    %v41 = vrsqrt.pop %v39
    %v42 = vrsqrt.pop %v40
    %v43 = vmul.f32 %v27, %v41
    %v44 = vmul.f32 %v28, %v42
    %v45 = vld [vmem:[%s1] sm:$0xff]
    %v46 = vld [vmem:[%s1 + $0x8] sm:$0xff]
    %v47 = vld [vmem:[%s1 + $0x10] sm:$0xff]
    %v48 = vld [vmem:[%s1 + $0x18] sm:$0xff]
    %v49 = vld [vmem:[%s2] sm:$0x1]
    %v51 = vlaneseq
    %v52 = vshrl.u32 %v51, 7
    %v53 = vsub.s32 0, %v52
    %v54 = vrot.slane %v49, %v53
    %v57 = vsel %vm17, %v43, 0
    %v60 = vsel %vm17, %v44, 0
    %62 = vmatprep.subr.mxu0 0.0
    %63 = vmatpush1.msra.mxu0 0.0
    %64 = vmatprep.subr.mxu0 0.0
    %65 = vmatpush1.msra.mxu0 0.0
    %66 = vmatprep.subr.mxu0 0.0
    %67 = vmatpush1.msra.mxu0 0.0
    %68 = vmatprep.subr.mxu0 0.0
    %69 = vmatpush1.msra.mxu0 0.0
    %70 = vmatprep.subr.mxu0 0.0
    %71 = vmatpush1.msra.mxu0 0.0
    %72 = vmatprep.subr.mxu0 0.0
    %73 = vmatpush1.msra.mxu0 0.0
    %74 = vmatprep.subr.mxu0 0.0
    %75 = vmatpush1.msra.mxu0 0.0
    %76 = vmatprep.subr.mxu0 0.0
    %77 = vmatpush1.msra.mxu0 0.0
    %78 = vmatprep.subr.mxu0 0.0
    %79 = vmatpush1.msra.mxu0 0.0
    %80 = vmatprep.subr.mxu0 0.0
    %81 = vmatpush1.msra.mxu0 0.0
    %82 = vmatprep.subr.mxu0 0.0
    %83 = vmatpush1.msra.mxu0 0.0
    %84 = vmatprep.subr.mxu0 0.0
    %85 = vmatpush1.msra.mxu0 0.0
    %86 = vmatprep.subr.mxu0 0.0
    %87 = vmatpush1.msra.mxu0 %v48
    %88 = vmatprep.subr.mxu0 0.0
    %89 = vmatpush1.msra.mxu0 %v47
    %90 = vmatprep.subr.mxu0 0.0
    %91 = vmatpush1.msra.mxu0 %v46
    %92 = vmatprep.subr.mxu0 0.0
    %93 = vmatpush1.msra.mxu0 %v45
    %94 = vmatprep.subr.mxu0 0.0
    %95 = vmatpush2.msra.mxu0 0.0
    %96 = vmatprep.subr.mxu0 0.0
    %97 = vmatpush2.msra.mxu0 0.0
    %98 = vmatprep.subr.mxu0 0.0
    %99 = vmatpush2.msra.mxu0 0.0
    %100 = vmatprep.subr.mxu0 0.0
    %101 = vmatpush2.msra.mxu0 0.0
    %102 = vmatprep.subr.mxu0 0.0
    %103 = vmatpush2.msra.mxu0 0.0
    %104 = vmatprep.subr.mxu0 0.0
    %105 = vmatpush2.msra.mxu0 0.0
    %106 = vmatprep.subr.mxu0 0.0
    %107 = vmatpush2.msra.mxu0 0.0
    %108 = vmatprep.subr.mxu0 0.0
    %109 = vmatpush2.msra.mxu0 0.0
    %110 = vmatprep.subr.mxu0 0.0
    %111 = vmatpush2.msra.mxu0 0.0
    %112 = vmatprep.subr.mxu0 0.0
    %113 = vmatpush2.msra.mxu0 0.0
    %114 = vmatprep.subr.mxu0 0.0
    %115 = vmatpush2.msra.mxu0 0.0
    %116 = vmatprep.subr.mxu0 0.0
    %117 = vmatpush2.msra.mxu0 0.0
    %118 = vmatprep.subr.mxu0 0.0
    %119 = vmatpush2.msra.mxu0 0.0
    %120 = vmatprep.subr.mxu0 0.0
    %121 = vmatpush2.msra.mxu0 0.0
    %122 = vmatprep.subr.mxu0 0.0
    %123 = vmatpush2.msra.mxu0 0.0
    %124 = vmatprep.subr.mxu0 0.0
    %125 = vmatpush2.msra.mxu0 0.0
    %126 = vmatprep.mubr.f32.mxu0 0.0
    %127 = vmatmul.mubr.f32.gmra.mxu0 %v57
    %v128 = vpop.f32.mrf.mxu0
    %v129 = vadd.f32 %v54, %v128
    %v130 = vpop.f32.mrf.mxu0
    %131 = vmatprep.mubr.f32.mxu0 0.0
    %132 = vmatmul.mubr.f32.gmra.mxu0 %v60
    %v133 = vpop.f32.mrf.mxu0
    %v134 = vadd.f32 %v54, %v133
    %v135 = vpop.f32.mrf.mxu0
    %136 = vdwg.mxu0
    %vm137 = vcmask 523264
    %138 = vst.msk [vmem:[#allocation3] sm:$0xff] %vm137, %v129
    %139 = vst.msk [vmem:[#allocation3 + $0x8] sm:$0xff] %vm137, %v134
    // Predicated region
    $region14: #{listener_forward.17} parent=1 // pred_check
      _
    $region15: #{listener_forward.17} parent=1 // pred_check_branch
      %141 = sbr.rel (0) target = $region17
    $region16: #{listener_forward.17} parent=1 // pred_region
      %s143 = ssub.s32 256, 256
      %144 = vsyncadd [#allocation4], %s143
      %s145 = sshll.u32 [#allocation3], 4
      %s146 = int_to_ptr.vmem [resolvable:$true] %s145
      %151 = dma.vmem_to_hbm [thread:$0]  %s146, 256, %s3, [#allocation4], 128, 128, 8
    $region17: #{listener_forward.17} parent=1 // pred_fallthru
      _
    // Predicated region
    $region18: #{listener_forward.17} parent=1 // pred_check
      _
    $region19: #{listener_forward.17} parent=1 // pred_check_branch
      %153 = sbr.rel (0) target = $region21
    $region20: #{listener_forward.17} parent=1 // pred_region
      %154 = dma.done [#allocation4], 256
    $region21: #{listener_forward.17} parent=1 // pred_fallthru
      _
    %155 = vsyncpa [#allocation4], 1

</llo_original>
